<compile_context>
chip_gen: v5e
topology: v5e:2x2
jax: 0.10.0
libtpu: 0.0.40
codegen_flags: <defaults>
</compile_context>

<pallas_src>
import functools
import math

import jax
import jax.numpy as jnp
from jax.experimental import pallas as pl
from jax.experimental.pallas import tpu as pltpu


def _layernorm(x, w, b, eps):
    u = jnp.mean(x, axis=-1, keepdims=True)
    s = jnp.mean((x - u) ** 2, axis=-1, keepdims=True)
    return w * ((x - u) / jnp.sqrt(s + eps)) + b


def _gelu(x):
    # Exact erf-based GELU to match the PyTorch module's `gelu`.
    return x * 0.5 * (1.0 + jax.lax.erf(x / math.sqrt(2.0)))


def bert_layer_kernel(num_heads, head_size, tq, ln_eps, use_bf16_exp,
                      hs_ref, mask_ref,
                      wq_ref, bq_ref, wk_ref, bk_ref, wv_ref, bv_ref,
                      wo_ref, bo_ref, ln1w_ref, ln1b_ref,
                      wi_ref, bi_ref, wo2_ref, bo2_ref, ln2w_ref, ln2b_ref,
                      out_ref, qh_ref, attn_acc_ref):
    x = hs_ref[0]                                # (S, H) f32
    mask = mask_ref[0]                           # (1, S) f32 additive mask
    S, H = x.shape

    x_bf = x.astype(jnp.bfloat16)

    # QKV projections: bf16 MXU inputs, f32 accumulation.
    q = jnp.dot(x_bf, wq_ref[...], preferred_element_type=jnp.float32) + bq_ref[0]
    k = jnp.dot(x_bf, wk_ref[...], preferred_element_type=jnp.float32) + bk_ref[0]
    v = jnp.dot(x_bf, wv_ref[...], preferred_element_type=jnp.float32) + bv_ref[0]

    # Fold 1/sqrt(head_size) into Q once (S*H multiplies, not nh*S*S).
    q = q * (1.0 / math.sqrt(head_size))

    # Head relayout (S, H) -> (nh, S, hd); cast to bf16 BEFORE the XLU move
    # so the relayout moves half the bytes.
    def to_heads(t):
        t3 = t.astype(jnp.bfloat16).reshape(S, num_heads, head_size)
        return pltpu.einshape("snd->nsd", t3)

    qh_ref[...] = to_heads(q)                    # staged in VMEM for q-tiling
    kh = to_heads(k)                             # (nh, S, hd) bf16
    vh = to_heads(v)

    wo_w = wo_ref[...]                           # (nh, hd, H) bf16
    bo = bo_ref[0]                               # (H,) f32

    def do_chunk(qs):
        q_chunk = qh_ref[:, pl.ds(qs, tq), :]                       # (nh, tq, hd)
        scores = jnp.einsum("nqd,nkd->nqk", q_chunk, kh,
                            preferred_element_type=jnp.float32)     # (nh, tq, S)
        scores = scores + mask[None, :, :]
        m = jnp.max(scores, axis=-1, keepdims=True)
        if use_bf16_exp:               # bf16 EUP on v6e/v7x; f32 on v5e / v4
            p = jnp.exp((scores - m).astype(jnp.bfloat16))
        else:
            p = jnp.exp(scores - m)
        denom = jnp.sum(p.astype(jnp.float32), axis=-1, keepdims=True)
        # TODO(synk): attention_probs / hidden dropout are identity (inference).
        ctx = jnp.einsum("nqk,nkd->nqd", p.astype(jnp.bfloat16), vh,
                         preferred_element_type=jnp.float32)        # (nh, tq, hd)
        # Softmax normalization after P@V (linear in P); reciprocal on the EUP.
        ctx = ctx * pl.reciprocal(denom, approx=True)
        # Head-merge folded into the output projection: per-head matmul, then
        # reduce over heads — no reverse XLU relayout; stores lane-dense in H.
        parts = jnp.einsum("nqd,ndh->nqh", ctx.astype(jnp.bfloat16), wo_w,
                           preferred_element_type=jnp.float32)      # (nh, tq, H)
        attn_acc_ref[pl.ds(qs, tq), :] = jnp.sum(parts, axis=0) + bo

    n_qtiles = S // tq
    if n_qtiles == 1:
        do_chunk(0)
    else:
        @pl.loop(0, n_qtiles)
        def _(t):
            do_chunk(pl.multiple_of(t * tq, tq))

    # Attention output projection + residual + LayerNorm (f32 elementwise).
    attn = _layernorm(attn_acc_ref[...] + x, ln1w_ref[0], ln1b_ref[0], ln_eps)

    # Feed-forward: GELU(attn @ Wi + bi) @ Wo2 + bo2, residual + LayerNorm.
    inter = jnp.dot(attn.astype(jnp.bfloat16), wi_ref[...],
                    preferred_element_type=jnp.float32) + bi_ref[0]
    inter = _gelu(inter)

    out = jnp.dot(inter.astype(jnp.bfloat16), wo2_ref[...],
                  preferred_element_type=jnp.float32) + bo2_ref[0]
    out_ref[0] = _layernorm(out + attn, ln2w_ref[0], ln2b_ref[0], ln_eps)


_PARAM_ORDER = ("wq", "bq", "wk", "bk", "wv", "bv", "wo", "bo",
                "ln1w", "ln1b", "wi", "bi", "wo2", "bo2", "ln2w", "ln2b")
_WEIGHT_KEYS = ("wq", "wk", "wv", "wo", "wi", "wo2")


def _device_vmem_bytes():
    try:
        return int(pltpu.get_tpu_info().vmem_capacity_bytes)
    except Exception:
        return 64 << 20            # conservative fallback: v7x per-core VMEM


def _prepare_inputs(params, num_heads):
    H = params["wq"].shape[0]
    hd = H // num_heads
    prepared = []
    for name in _PARAM_ORDER:
        w = params[name]
        if name == "wo":
            # Reshape once in the wrapper so the kernel's head-merge-free
            # output projection contracts per head: (nh, hd, H) bf16.
            w = w.astype(jnp.bfloat16).reshape(num_heads, hd, w.shape[1])
        elif name in _WEIGHT_KEYS:
            w = w.astype(jnp.bfloat16)       # halve HBM traffic / VMEM
        else:
            w = w.astype(jnp.float32)        # biases / LN params stay f32
        prepared.append(w)
    return prepared


def bert_layer_forward(hidden_states, attention_mask, params, num_heads, ln_eps):
    """hidden_states: (B, S, H) f32; attention_mask: (B, 1, S) additive f32."""
    B, S, H = hidden_states.shape
    inter_size = params["wi"].shape[1]
    hd = H // num_heads

    phys_vmem = _device_vmem_bytes()
    kind = jax.devices()[0].device_kind.lower()
    use_bf16_exp = ("v6" in kind) or ("v7" in kind)   # bf16 EUP generations

    # Query-tile size: cap the (nh, tq, S) attention temporaries; smaller cap
    # on 64 MiB-VMEM parts (v7x).
    tq_cap = 128 if phys_vmem <= (64 << 20) else 256
    if S <= tq_cap:
        tq = S
    else:
        cands = [c for c in (256, 128, 64, 32, 16, 8) if c <= tq_cap]
        tq = next((c for c in cands if S % c == 0), S)

    inputs = _prepare_inputs(params, num_heads)

    # VMEM budget heuristic: single-buffered weights + resident activations +
    # one attention query tile; clamped to ~87.5% of physical VMEM.
    w_bytes = sum(int(w.size) * w.dtype.itemsize for w in inputs)
    act_bytes = (4 * (10 * S * H + 2 * S * inter_size)       # f32 activations
                 + 2 * (6 * S * H + S * inter_size)          # bf16 copies
                 + num_heads * tq * (10 * S + 4 * hd + 4 * H))  # one q-tile
    vmem_limit = int(min(max(w_bytes + act_bytes + (8 << 20), 32 << 20),
                         (phys_vmem * 7) // 8))

    kernel = functools.partial(bert_layer_kernel, num_heads, hd, tq, ln_eps,
                               use_bf16_exp)

    def run(single_buffer_weights):
        def param_spec(w):
            zeros = (0,) * w.ndim
            index_map = lambda b, _z=zeros: _z
            if single_buffer_weights:
                # Constant across the batch grid -> no double buffering.
                return pl.BlockSpec(w.shape, index_map,
                                    pipeline_mode=pl.Buffered(1))
            return pl.BlockSpec(w.shape, index_map)

        in_specs = [
            pl.BlockSpec((1, S, H), lambda b: (b, 0, 0)),   # hidden_states
            pl.BlockSpec((1, 1, S), lambda b: (b, 0, 0)),   # additive mask
        ] + [param_spec(w) for w in inputs]

        out = pl.pallas_call(
            kernel,
            out_shape=jax.ShapeDtypeStruct((B, S, H), jnp.float32),
            grid=(B,),
            in_specs=in_specs,
            out_specs=pl.BlockSpec((1, S, H), lambda b: (b, 0, 0)),
            scratch_shapes=[
                pltpu.VMEM((num_heads, S, hd), jnp.bfloat16),  # staged Q heads
                pltpu.VMEM((S, H), jnp.float32),               # attention output
            ],
            compiler_params=pltpu.CompilerParams(
                dimension_semantics=("parallel",),
                vmem_limit_bytes=vmem_limit),
        )(hidden_states, attention_mask, *inputs)
        return jax.block_until_ready(out)

    try:
        return run(True)
    except Exception:
        # TODO(synk): fallback for jax/Mosaic builds without single-buffer
        # pipeline_mode support; costs only the extra weight VMEM, not correctness.
        return run(False)


def bert_encoder_forward(hidden_states, attention_mask, layer_params, num_heads,
                         ln_eps=1e-12, output_all_encoded_layers=True):
    # TODO(synk): cross-layer weight-DMA prefetch (P10) not implemented; each
    # layer's weight fetch is exposed at small batch sizes.
    all_encoder_layers = []
    for params in layer_params:
        hidden_states = bert_layer_forward(hidden_states, attention_mask, params,
                                           num_heads, ln_eps)
        if output_all_encoded_layers:
            all_encoder_layers.append(hidden_states)
    if not output_all_encoded_layers:
        all_encoder_layers.append(hidden_states)
    return all_encoder_layers


# ---------------- pure-JAX reference for correctness checking -----------------
def _ref_layer(x, mask, p, num_heads, ln_eps):
    B, S, H = x.shape
    hd = H // num_heads

    def proj(inp, w, b):
        return inp @ w + b[0]

    q = proj(x, p["wq"], p["bq"]).reshape(B, S, num_heads, hd).transpose(0, 2, 1, 3)
    k = proj(x, p["wk"], p["bk"]).reshape(B, S, num_heads, hd).transpose(0, 2, 1, 3)
    v = proj(x, p["wv"], p["bv"]).reshape(B, S, num_heads, hd).transpose(0, 2, 1, 3)
    scores = jnp.einsum("bhqd,bhkd->bhqk", q, k) / math.sqrt(hd) + mask[:, None]
    probs = jax.nn.softmax(scores, axis=-1)
    ctx = jnp.einsum("bhqk,bhkd->bhqd", probs, v).transpose(0, 2, 1, 3).reshape(B, S, H)
    attn = _layernorm(proj(ctx, p["wo"], p["bo"]) + x, p["ln1w"][0], p["ln1b"][0], ln_eps)
    inter = _gelu(proj(attn, p["wi"], p["bi"]))
    out = _layernorm(proj(inter, p["wo2"], p["bo2"]) + attn,
                     p["ln2w"][0], p["ln2b"][0], ln_eps)
    return out


def _make_layer_params(key, hidden, intermediate):
    ks = jax.random.split(key, 12)
    init = lambda k, shape: 0.02 * jax.random.normal(k, shape, jnp.float32)
    return dict(
        wq=init(ks[0], (hidden, hidden)),       bq=init(ks[1], (1, hidden)),
        wk=init(ks[2], (hidden, hidden)),       bk=init(ks[3], (1, hidden)),
        wv=init(ks[4], (hidden, hidden)),       bv=init(ks[5], (1, hidden)),
        wo=init(ks[6], (hidden, hidden)),       bo=init(ks[7], (1, hidden)),
        ln1w=jnp.ones((1, hidden), jnp.float32), ln1b=jnp.zeros((1, hidden), jnp.float32),
        wi=init(ks[8], (hidden, intermediate)), bi=init(ks[9], (1, intermediate)),
        wo2=init(ks[10], (intermediate, hidden)), bo2=init(ks[11], (1, hidden)),
        ln2w=jnp.ones((1, hidden), jnp.float32), ln2b=jnp.zeros((1, hidden), jnp.float32),
    )


if __name__ == "__main__":
    B, S, H = 2, 8, 32
    NUM_HEADS = 4
    INTERMEDIATE = 64
    NUM_LAYERS = 2
    LN_EPS = 1e-12

    root = jax.random.PRNGKey(0)
    k_hs, k_params = jax.random.split(root)

    hidden_states = jax.random.normal(k_hs, (B, S, H), jnp.float32)

    # Padding mask: second example has its last 2 positions masked out.
    valid = jnp.array([[1.0] * S, [1.0] * (S - 2) + [0.0] * 2], jnp.float32)  # (B, S)
    attention_mask = ((1.0 - valid) * -10000.0)[:, None, :]                   # (B, 1, S)

    layer_keys = jax.random.split(k_params, NUM_LAYERS)
    layer_params = [_make_layer_params(k, H, INTERMEDIATE) for k in layer_keys]

    outs = bert_encoder_forward(hidden_states, attention_mask, layer_params,
                                NUM_HEADS, LN_EPS, output_all_encoded_layers=True)
    outs = [jax.block_until_ready(o) for o in outs]

    # Pure-JAX f32 reference of the PyTorch semantics, evaluated with the same
    # bf16-rounded weight matrices the kernel uses (matmuls accumulate in f32).
    ref_params = []
    for p in layer_params:
        rp = dict(p)
        for name in _WEIGHT_KEYS:
            rp[name] = p[name].astype(jnp.bfloat16).astype(jnp.float32)
        ref_params.append(rp)

    ref = hidden_states
    for li, p in enumerate(ref_params):
        ref = _ref_layer(ref, attention_mask, p, NUM_HEADS, LN_EPS)
        max_err = float(jnp.max(jnp.abs(outs[li] - ref)))
        assert jnp.allclose(outs[li], ref, rtol=3e-2, atol=3e-2), (
            f"mismatch at layer {li}: max abs err {max_err}")

    print("KERNEL_OK")
</pallas_src>

<mosaic_0001>
module attributes {stable_mosaic.version = 11 : i64} {
  func.func @bert_layer_kernel(%arg0: i32, %arg1: memref<1x8x32xf32, #tpu.memory_space<vmem>>, %arg2: memref<1x1x8xf32, #tpu.memory_space<vmem>>, %arg3: memref<32x32xbf16, #tpu.memory_space<vmem>>, %arg4: memref<1x32xf32, #tpu.memory_space<vmem>>, %arg5: memref<32x32xbf16, #tpu.memory_space<vmem>>, %arg6: memref<1x32xf32, #tpu.memory_space<vmem>>, %arg7: memref<32x32xbf16, #tpu.memory_space<vmem>>, %arg8: memref<1x32xf32, #tpu.memory_space<vmem>>, %arg9: memref<4x8x32xbf16, #tpu.memory_space<vmem>>, %arg10: memref<1x32xf32, #tpu.memory_space<vmem>>, %arg11: memref<1x32xf32, #tpu.memory_space<vmem>>, %arg12: memref<1x32xf32, #tpu.memory_space<vmem>>, %arg13: memref<32x64xbf16, #tpu.memory_space<vmem>>, %arg14: memref<1x64xf32, #tpu.memory_space<vmem>>, %arg15: memref<64x32xbf16, #tpu.memory_space<vmem>>, %arg16: memref<1x32xf32, #tpu.memory_space<vmem>>, %arg17: memref<1x32xf32, #tpu.memory_space<vmem>>, %arg18: memref<1x32xf32, #tpu.memory_space<vmem>>, %arg19: memref<1x8x32xf32, #tpu.memory_space<vmem>>, %arg20: memref<4x8x8xbf16, #tpu.memory_space<vmem>>, %arg21: memref<8x32xf32, #tpu.memory_space<vmem>>) attributes {dimension_semantics = [#tpu.dimension_semantics<parallel>], iteration_bounds = array<i64: 2>, scalar_prefetch = 0 : i64, scratch_operands = 2 : i64, tpu.core_type = #tpu.core_type<tc>, window_params = [{transform_indices = @transform_0, window_bounds = array<i64: 1, 8, 32>}, {transform_indices = @transform_1, window_bounds = array<i64: 1, 1, 8>}, {pipeline_mode = #tpu.pipeline_mode<synchronous>, transform_indices = @transform_2, window_bounds = array<i64: 32, 32>}, {pipeline_mode = #tpu.pipeline_mode<synchronous>, transform_indices = @transform_3, window_bounds = array<i64: 1, 32>}, {pipeline_mode = #tpu.pipeline_mode<synchronous>, transform_indices = @transform_4, window_bounds = array<i64: 32, 32>}, {pipeline_mode = #tpu.pipeline_mode<synchronous>, transform_indices = @transform_5, window_bounds = array<i64: 1, 32>}, {pipeline_mode = #tpu.pipeline_mode<synchronous>, transform_indices = @transform_6, window_bounds = array<i64: 32, 32>}, {pipeline_mode = #tpu.pipeline_mode<synchronous>, transform_indices = @transform_7, window_bounds = array<i64: 1, 32>}, {pipeline_mode = #tpu.pipeline_mode<synchronous>, transform_indices = @transform_8, window_bounds = array<i64: 4, 8, 32>}, {pipeline_mode = #tpu.pipeline_mode<synchronous>, transform_indices = @transform_9, window_bounds = array<i64: 1, 32>}, {pipeline_mode = #tpu.pipeline_mode<synchronous>, transform_indices = @transform_10, window_bounds = array<i64: 1, 32>}, {pipeline_mode = #tpu.pipeline_mode<synchronous>, transform_indices = @transform_11, window_bounds = array<i64: 1, 32>}, {pipeline_mode = #tpu.pipeline_mode<synchronous>, transform_indices = @transform_12, window_bounds = array<i64: 32, 64>}, {pipeline_mode = #tpu.pipeline_mode<synchronous>, transform_indices = @transform_13, window_bounds = array<i64: 1, 64>}, {pipeline_mode = #tpu.pipeline_mode<synchronous>, transform_indices = @transform_14, window_bounds = array<i64: 64, 32>}, {pipeline_mode = #tpu.pipeline_mode<synchronous>, transform_indices = @transform_15, window_bounds = array<i64: 1, 32>}, {pipeline_mode = #tpu.pipeline_mode<synchronous>, transform_indices = @transform_16, window_bounds = array<i64: 1, 32>}, {pipeline_mode = #tpu.pipeline_mode<synchronous>, transform_indices = @transform_17, window_bounds = array<i64: 1, 32>}, {transform_indices = @transform_18, window_bounds = array<i64: 1, 8, 32>}]} {
    %c0 = arith.constant 0 : index
    %c0_0 = arith.constant 0 : index
    %c0_1 = arith.constant 0 : index
    %0 = vector.load %arg1[%c0, %c0_0, %c0_1] : memref<1x8x32xf32, #tpu.memory_space<vmem>>, vector<1x8x32xf32>
    %1 = vector.shape_cast %0 : vector<1x8x32xf32> to vector<8x32xf32>
    %c0_2 = arith.constant 0 : index
    %c0_3 = arith.constant 0 : index
    %c0_4 = arith.constant 0 : index
    %2 = vector.load %arg2[%c0_2, %c0_3, %c0_4] : memref<1x1x8xf32, #tpu.memory_space<vmem>>, vector<1x1x8xf32>
    %3 = vector.shape_cast %2 : vector<1x1x8xf32> to vector<1x8xf32>
    %4 = arith.truncf %1 : vector<8x32xf32> to vector<8x32xbf16>
    %c0_5 = arith.constant 0 : index
    %c0_6 = arith.constant 0 : index
    %5 = vector.load %arg3[%c0_5, %c0_6] : memref<32x32xbf16, #tpu.memory_space<vmem>>, vector<32x32xbf16>
    %cst = arith.constant dense<0.000000e+00> : vector<8x32xf32>
    %6 = tpu.matmul %4, %5, %cst {dimension_numbers = #tpu.dot_dimension_numbers<[1], [0], [0], [1], [0, 0, 1, 1], [], []>} : vector<8x32xbf16>, vector<32x32xbf16>, vector<8x32xf32> -> vector<8x32xf32>
    %c0_7 = arith.constant 0 : index
    %c0_8 = arith.constant 0 : index
    %7 = vector.load %arg4[%c0_7, %c0_8] : memref<1x32xf32, #tpu.memory_space<vmem>>, vector<1x32xf32>
    %8 = vector.shape_cast %7 : vector<1x32xf32> to vector<32xf32>
    %9 = vector.shape_cast %8 : vector<32xf32> to vector<1x32xf32>
    %10 = vector.broadcast %9 : vector<1x32xf32> to vector<8x32xf32>
    %11 = arith.addf %6, %10 : vector<8x32xf32>
    %c0_9 = arith.constant 0 : index
    %c0_10 = arith.constant 0 : index
    %12 = vector.load %arg5[%c0_9, %c0_10] : memref<32x32xbf16, #tpu.memory_space<vmem>>, vector<32x32xbf16>
    %cst_11 = arith.constant dense<0.000000e+00> : vector<8x32xf32>
    %13 = tpu.matmul %4, %12, %cst_11 {dimension_numbers = #tpu.dot_dimension_numbers<[1], [0], [0], [1], [0, 0, 1, 1], [], []>} : vector<8x32xbf16>, vector<32x32xbf16>, vector<8x32xf32> -> vector<8x32xf32>
    %c0_12 = arith.constant 0 : index
    %c0_13 = arith.constant 0 : index
    %14 = vector.load %arg6[%c0_12, %c0_13] : memref<1x32xf32, #tpu.memory_space<vmem>>, vector<1x32xf32>
    %15 = vector.shape_cast %14 : vector<1x32xf32> to vector<32xf32>
    %16 = vector.shape_cast %15 : vector<32xf32> to vector<1x32xf32>
    %17 = vector.broadcast %16 : vector<1x32xf32> to vector<8x32xf32>
    %18 = arith.addf %13, %17 : vector<8x32xf32>
    %c0_14 = arith.constant 0 : index
    %c0_15 = arith.constant 0 : index
    %19 = vector.load %arg7[%c0_14, %c0_15] : memref<32x32xbf16, #tpu.memory_space<vmem>>, vector<32x32xbf16>
    %cst_16 = arith.constant dense<0.000000e+00> : vector<8x32xf32>
    %20 = tpu.matmul %4, %19, %cst_16 {dimension_numbers = #tpu.dot_dimension_numbers<[1], [0], [0], [1], [0, 0, 1, 1], [], []>} : vector<8x32xbf16>, vector<32x32xbf16>, vector<8x32xf32> -> vector<8x32xf32>
    %c0_17 = arith.constant 0 : index
    %c0_18 = arith.constant 0 : index
    %21 = vector.load %arg8[%c0_17, %c0_18] : memref<1x32xf32, #tpu.memory_space<vmem>>, vector<1x32xf32>
    %22 = vector.shape_cast %21 : vector<1x32xf32> to vector<32xf32>
    %23 = vector.shape_cast %22 : vector<32xf32> to vector<1x32xf32>
    %24 = vector.broadcast %23 : vector<1x32xf32> to vector<8x32xf32>
    %25 = arith.addf %20, %24 : vector<8x32xf32>
    %cst_19 = arith.constant 0.353553385 : f32
    %26 = vector.broadcast %cst_19 : f32 to vector<8x32xf32>
    %27 = arith.mulf %11, %26 : vector<8x32xf32>
    %28 = arith.truncf %27 : vector<8x32xf32> to vector<8x32xbf16>
    %29 = vector.shape_cast %28 : vector<8x32xbf16> to vector<8x4x8xbf16>
    %30 = tpu.transpose %29, [1, 0, 2] : vector<8x4x8xbf16> -> vector<4x8x8xbf16>
    %c0_20 = arith.constant 0 : index
    %c0_21 = arith.constant 0 : index
    %c0_22 = arith.constant 0 : index
    %31 = vector.load %arg20[%c0_20, %c0_21, %c0_22] : memref<4x8x8xbf16, #tpu.memory_space<vmem>>, vector<4x8x8xbf16>
    tpu.vector_store %arg20[%c0_20, %c0_21, %c0_22], %30 {strides = array<i32>} : memref<4x8x8xbf16, #tpu.memory_space<vmem>>, vector<4x8x8xbf16>,
    %32 = arith.truncf %18 : vector<8x32xf32> to vector<8x32xbf16>
    %33 = vector.shape_cast %32 : vector<8x32xbf16> to vector<8x4x8xbf16>
    %34 = tpu.transpose %33, [1, 0, 2] : vector<8x4x8xbf16> -> vector<4x8x8xbf16>
    %35 = arith.truncf %25 : vector<8x32xf32> to vector<8x32xbf16>
    %36 = vector.shape_cast %35 : vector<8x32xbf16> to vector<8x4x8xbf16>
    %37 = tpu.transpose %36, [1, 0, 2] : vector<8x4x8xbf16> -> vector<4x8x8xbf16>
    %c0_23 = arith.constant 0 : index
    %c0_24 = arith.constant 0 : index
    %c0_25 = arith.constant 0 : index
    %38 = vector.load %arg9[%c0_23, %c0_24, %c0_25] : memref<4x8x32xbf16, #tpu.memory_space<vmem>>, vector<4x8x32xbf16>
    %c0_26 = arith.constant 0 : index
    %c0_27 = arith.constant 0 : index
    %39 = vector.load %arg10[%c0_26, %c0_27] : memref<1x32xf32, #tpu.memory_space<vmem>>, vector<1x32xf32>
    %40 = vector.shape_cast %39 : vector<1x32xf32> to vector<32xf32>
    %c0_28 = arith.constant 0 : index
    %c0_29 = arith.constant 0 : index
    %c0_30 = arith.constant 0 : index
    %41 = vector.load %arg20[%c0_28, %c0_29, %c0_30] : memref<4x8x8xbf16, #tpu.memory_space<vmem>>, vector<4x8x8xbf16>
    "tpu.trace_start"() <{level = 10 : i32, message = "nqd,nkd->nqk"}> : () -> ()
    %cst_31 = arith.constant dense<0.000000e+00> : vector<4x8x8xf32>
    %42 = tpu.matmul %41, %34, %cst_31 {dimension_numbers = #tpu.dot_dimension_numbers<[2], [2], [1], [1], [0, 0, 0, 1, 1, 1], [0], [0]>} : vector<4x8x8xbf16>, vector<4x8x8xbf16>, vector<4x8x8xf32> -> vector<4x8x8xf32>
    "tpu.trace_stop"() : () -> ()
    %43 = vector.shape_cast %3 : vector<1x8xf32> to vector<1x1x8xf32>
    %44 = vector.broadcast %43 : vector<1x1x8xf32> to vector<4x8x8xf32>
    %45 = arith.addf %42, %44 : vector<4x8x8xf32>
    %cst_32 = arith.constant dense<0xFF800000> : vector<4x8xf32>
    %46 = vector.multi_reduction <maximumf>, %45, %cst_32 [2] : vector<4x8x8xf32> to vector<4x8xf32>
    %47 = vector.shape_cast %46 : vector<4x8xf32> to vector<4x8x1xf32>
    %48 = vector.broadcast %47 : vector<4x8x1xf32> to vector<4x8x8xf32>
    %49 = arith.subf %45, %48 : vector<4x8x8xf32>
    %50 = math.exp %49 : vector<4x8x8xf32>
    %cst_33 = arith.constant dense<0.000000e+00> : vector<4x8xf32>
    %51 = vector.multi_reduction <add>, %50, %cst_33 [2] : vector<4x8x8xf32> to vector<4x8xf32>
    %52 = vector.shape_cast %51 : vector<4x8xf32> to vector<4x8x1xf32>
    %53 = arith.truncf %50 : vector<4x8x8xf32> to vector<4x8x8xbf16>
    "tpu.trace_start"() <{level = 10 : i32, message = "nqk,nkd->nqd"}> : () -> ()
    %cst_34 = arith.constant dense<0.000000e+00> : vector<4x8x8xf32>
    %54 = tpu.matmul %53, %37, %cst_34 {dimension_numbers = #tpu.dot_dimension_numbers<[2], [1], [1], [2], [0, 0, 0, 1, 1, 2], [0], [0]>} : vector<4x8x8xbf16>, vector<4x8x8xbf16>, vector<4x8x8xf32> -> vector<4x8x8xf32>
    "tpu.trace_stop"() : () -> ()
    %55 = tpu.reciprocal %52 {approx = true} : vector<4x8x1xf32> -> vector<4x8x1xf32>
    %56 = vector.broadcast %55 : vector<4x8x1xf32> to vector<4x8x8xf32>
    %57 = arith.mulf %54, %56 : vector<4x8x8xf32>
    %58 = arith.truncf %57 : vector<4x8x8xf32> to vector<4x8x8xbf16>
    "tpu.trace_start"() <{level = 10 : i32, message = "nqd,ndh->nqh"}> : () -> ()
    %cst_35 = arith.constant dense<0.000000e+00> : vector<4x8x32xf32>
    %59 = tpu.matmul %58, %38, %cst_35 {dimension_numbers = #tpu.dot_dimension_numbers<[2], [1], [1], [2], [0, 0, 0, 1, 1, 2], [0], [0]>} : vector<4x8x8xbf16>, vector<4x8x32xbf16>, vector<4x8x32xf32> -> vector<4x8x32xf32>
    "tpu.trace_stop"() : () -> ()
    %cst_36 = arith.constant dense<0.000000e+00> : vector<8x32xf32>
    %60 = vector.multi_reduction <add>, %59, %cst_36 [0] : vector<4x8x32xf32> to vector<8x32xf32>
    %61 = vector.shape_cast %40 : vector<32xf32> to vector<1x32xf32>
    %62 = vector.broadcast %61 : vector<1x32xf32> to vector<8x32xf32>
    %63 = arith.addf %60, %62 : vector<8x32xf32>
    %c0_37 = arith.constant 0 : index
    %c0_38 = arith.constant 0 : index
    %64 = vector.load %arg21[%c0_37, %c0_38] : memref<8x32xf32, #tpu.memory_space<vmem>>, vector<8x32xf32>
    tpu.vector_store %arg21[%c0_37, %c0_38], %63 {strides = array<i32>} : memref<8x32xf32, #tpu.memory_space<vmem>>, vector<8x32xf32>,
    %c0_39 = arith.constant 0 : index
    %c0_40 = arith.constant 0 : index
    %65 = vector.load %arg21[%c0_39, %c0_40] : memref<8x32xf32, #tpu.memory_space<vmem>>, vector<8x32xf32>
    %66 = arith.addf %65, %1 : vector<8x32xf32>
    %c0_41 = arith.constant 0 : index
    %c0_42 = arith.constant 0 : index
    %67 = vector.load %arg11[%c0_41, %c0_42] : memref<1x32xf32, #tpu.memory_space<vmem>>, vector<1x32xf32>
    %68 = vector.shape_cast %67 : vector<1x32xf32> to vector<32xf32>
    %c0_43 = arith.constant 0 : index
    %c0_44 = arith.constant 0 : index
    %69 = vector.load %arg12[%c0_43, %c0_44] : memref<1x32xf32, #tpu.memory_space<vmem>>, vector<1x32xf32>
    %70 = vector.shape_cast %69 : vector<1x32xf32> to vector<32xf32>
    %cst_45 = arith.constant dense<0.000000e+00> : vector<8xf32>
    %71 = vector.multi_reduction <add>, %66, %cst_45 [1] : vector<8x32xf32> to vector<8xf32>
    %72 = vector.shape_cast %71 : vector<8xf32> to vector<8x1xf32>
    %cst_46 = arith.constant 3.200000e+01 : f32
    %73 = vector.broadcast %cst_46 : f32 to vector<8x1xf32>
    %74 = arith.divf %72, %73 : vector<8x1xf32>
    %75 = vector.broadcast %74 : vector<8x1xf32> to vector<8x32xf32>
    %76 = arith.subf %66, %75 : vector<8x32xf32>
    %77 = arith.mulf %76, %76 : vector<8x32xf32>
    %cst_47 = arith.constant dense<0.000000e+00> : vector<8xf32>
    %78 = vector.multi_reduction <add>, %77, %cst_47 [1] : vector<8x32xf32> to vector<8xf32>
    %79 = vector.shape_cast %78 : vector<8xf32> to vector<8x1xf32>
    %cst_48 = arith.constant 3.200000e+01 : f32
    %80 = vector.broadcast %cst_48 : f32 to vector<8x1xf32>
    %81 = arith.divf %79, %80 : vector<8x1xf32>
    %82 = vector.broadcast %74 : vector<8x1xf32> to vector<8x32xf32>
    %83 = arith.subf %66, %82 : vector<8x32xf32>
    %cst_49 = arith.constant 9.99999996E-13 : f32
    %84 = vector.broadcast %cst_49 : f32 to vector<8x1xf32>
    %85 = arith.addf %81, %84 : vector<8x1xf32>
    %86 = math.sqrt %85 : vector<8x1xf32>
    %87 = vector.broadcast %86 : vector<8x1xf32> to vector<8x32xf32>
    %88 = arith.divf %83, %87 : vector<8x32xf32>
    %89 = vector.shape_cast %68 : vector<32xf32> to vector<1x32xf32>
    %90 = vector.broadcast %89 : vector<1x32xf32> to vector<8x32xf32>
    %91 = arith.mulf %90, %88 : vector<8x32xf32>
    %92 = vector.shape_cast %70 : vector<32xf32> to vector<1x32xf32>
    %93 = vector.broadcast %92 : vector<1x32xf32> to vector<8x32xf32>
    %94 = arith.addf %91, %93 : vector<8x32xf32>
    %95 = arith.truncf %94 : vector<8x32xf32> to vector<8x32xbf16>
    %c0_50 = arith.constant 0 : index
    %c0_51 = arith.constant 0 : index
    %96 = vector.load %arg13[%c0_50, %c0_51] : memref<32x64xbf16, #tpu.memory_space<vmem>>, vector<32x64xbf16>
    %cst_52 = arith.constant dense<0.000000e+00> : vector<8x64xf32>
    %97 = tpu.matmul %95, %96, %cst_52 {dimension_numbers = #tpu.dot_dimension_numbers<[1], [0], [0], [1], [0, 0, 1, 1], [], []>} : vector<8x32xbf16>, vector<32x64xbf16>, vector<8x64xf32> -> vector<8x64xf32>
    %c0_53 = arith.constant 0 : index
    %c0_54 = arith.constant 0 : index
    %98 = vector.load %arg14[%c0_53, %c0_54] : memref<1x64xf32, #tpu.memory_space<vmem>>, vector<1x64xf32>
    %99 = vector.shape_cast %98 : vector<1x64xf32> to vector<64xf32>
    %100 = vector.shape_cast %99 : vector<64xf32> to vector<1x64xf32>
    %101 = vector.broadcast %100 : vector<1x64xf32> to vector<8x64xf32>
    %102 = arith.addf %97, %101 : vector<8x64xf32>
    %cst_55 = arith.constant 5.000000e-01 : f32
    %103 = vector.broadcast %cst_55 : f32 to vector<8x64xf32>
    %104 = arith.mulf %102, %103 : vector<8x64xf32>
    %cst_56 = arith.constant 1.41421354 : f32
    %105 = vector.broadcast %cst_56 : f32 to vector<8x64xf32>
    %106 = arith.divf %102, %105 : vector<8x64xf32>
    %107 = math.erf %106 : vector<8x64xf32>
    %cst_57 = arith.constant 1.000000e+00 : f32
    %108 = vector.broadcast %cst_57 : f32 to vector<8x64xf32>
    %109 = arith.addf %108, %107 : vector<8x64xf32>
    %110 = arith.mulf %104, %109 : vector<8x64xf32>
    %111 = arith.truncf %110 : vector<8x64xf32> to vector<8x64xbf16>
    %c0_58 = arith.constant 0 : index
    %c0_59 = arith.constant 0 : index
    %112 = vector.load %arg15[%c0_58, %c0_59] : memref<64x32xbf16, #tpu.memory_space<vmem>>, vector<64x32xbf16>
    %cst_60 = arith.constant dense<0.000000e+00> : vector<8x32xf32>
    %113 = tpu.matmul %111, %112, %cst_60 {dimension_numbers = #tpu.dot_dimension_numbers<[1], [0], [0], [1], [0, 0, 1, 1], [], []>} : vector<8x64xbf16>, vector<64x32xbf16>, vector<8x32xf32> -> vector<8x32xf32>
    %c0_61 = arith.constant 0 : index
    %c0_62 = arith.constant 0 : index
    %114 = vector.load %arg16[%c0_61, %c0_62] : memref<1x32xf32, #tpu.memory_space<vmem>>, vector<1x32xf32>
    %115 = vector.shape_cast %114 : vector<1x32xf32> to vector<32xf32>
    %116 = vector.shape_cast %115 : vector<32xf32> to vector<1x32xf32>
    %117 = vector.broadcast %116 : vector<1x32xf32> to vector<8x32xf32>
    %118 = arith.addf %113, %117 : vector<8x32xf32>
    %119 = arith.addf %118, %94 : vector<8x32xf32>
    %c0_63 = arith.constant 0 : index
    %c0_64 = arith.constant 0 : index
    %120 = vector.load %arg17[%c0_63, %c0_64] : memref<1x32xf32, #tpu.memory_space<vmem>>, vector<1x32xf32>
    %121 = vector.shape_cast %120 : vector<1x32xf32> to vector<32xf32>
    %c0_65 = arith.constant 0 : index
    %c0_66 = arith.constant 0 : index
    %122 = vector.load %arg18[%c0_65, %c0_66] : memref<1x32xf32, #tpu.memory_space<vmem>>, vector<1x32xf32>
    %123 = vector.shape_cast %122 : vector<1x32xf32> to vector<32xf32>
    %cst_67 = arith.constant dense<0.000000e+00> : vector<8xf32>
    %124 = vector.multi_reduction <add>, %119, %cst_67 [1] : vector<8x32xf32> to vector<8xf32>
    %125 = vector.shape_cast %124 : vector<8xf32> to vector<8x1xf32>
    %cst_68 = arith.constant 3.200000e+01 : f32
    %126 = vector.broadcast %cst_68 : f32 to vector<8x1xf32>
    %127 = arith.divf %125, %126 : vector<8x1xf32>
    %128 = vector.broadcast %127 : vector<8x1xf32> to vector<8x32xf32>
    %129 = arith.subf %119, %128 : vector<8x32xf32>
    %130 = arith.mulf %129, %129 : vector<8x32xf32>
    %cst_69 = arith.constant dense<0.000000e+00> : vector<8xf32>
    %131 = vector.multi_reduction <add>, %130, %cst_69 [1] : vector<8x32xf32> to vector<8xf32>
    %132 = vector.shape_cast %131 : vector<8xf32> to vector<8x1xf32>
    %cst_70 = arith.constant 3.200000e+01 : f32
    %133 = vector.broadcast %cst_70 : f32 to vector<8x1xf32>
    %134 = arith.divf %132, %133 : vector<8x1xf32>
    %135 = vector.broadcast %127 : vector<8x1xf32> to vector<8x32xf32>
    %136 = arith.subf %119, %135 : vector<8x32xf32>
    %cst_71 = arith.constant 9.99999996E-13 : f32
    %137 = vector.broadcast %cst_71 : f32 to vector<8x1xf32>
    %138 = arith.addf %134, %137 : vector<8x1xf32>
    %139 = math.sqrt %138 : vector<8x1xf32>
    %140 = vector.broadcast %139 : vector<8x1xf32> to vector<8x32xf32>
    %141 = arith.divf %136, %140 : vector<8x32xf32>
    %142 = vector.shape_cast %121 : vector<32xf32> to vector<1x32xf32>
    %143 = vector.broadcast %142 : vector<1x32xf32> to vector<8x32xf32>
    %144 = arith.mulf %143, %141 : vector<8x32xf32>
    %145 = vector.shape_cast %123 : vector<32xf32> to vector<1x32xf32>
    %146 = vector.broadcast %145 : vector<1x32xf32> to vector<8x32xf32>
    %147 = arith.addf %144, %146 : vector<8x32xf32>
    %c0_72 = arith.constant 0 : index
    %c0_73 = arith.constant 0 : index
    %c0_74 = arith.constant 0 : index
    %148 = vector.load %arg19[%c0_72, %c0_73, %c0_74] : memref<1x8x32xf32, #tpu.memory_space<vmem>>, vector<1x8x32xf32>
    %149 = vector.shape_cast %148 : vector<1x8x32xf32> to vector<8x32xf32>
    %150 = vector.shape_cast %147 : vector<8x32xf32> to vector<1x8x32xf32>
    tpu.vector_store %arg19[%c0_72, %c0_73, %c0_74], %150 {strides = array<i32>} : memref<1x8x32xf32, #tpu.memory_space<vmem>>, vector<1x8x32xf32>,
    return
  }
  func.func @transform_0(%arg0: i32) -> (i32, i32, i32) {
    %c0_i32 = arith.constant 0 : i32
    %c0_i32_0 = arith.constant 0 : i32
    %c0_i32_1 = arith.constant 0 : i32
    return %arg0, %c0_i32, %c0_i32_0 : i32, i32, i32
  }
  func.func @transform_1(%arg0: i32) -> (i32, i32, i32) {
    %c0_i32 = arith.constant 0 : i32
    %c0_i32_0 = arith.constant 0 : i32
    %c0_i32_1 = arith.constant 0 : i32
    return %arg0, %c0_i32, %c0_i32_0 : i32, i32, i32
  }
  func.func @transform_2(%arg0: i32) -> (i32, i32) {
    %c0_i32 = arith.constant 0 : i32
    %c0_i32_0 = arith.constant 0 : i32
    %c0_i32_1 = arith.constant 0 : i32
    return %c0_i32, %c0_i32_0 : i32, i32
  }
  func.func @transform_3(%arg0: i32) -> (i32, i32) {
    %c0_i32 = arith.constant 0 : i32
    %c0_i32_0 = arith.constant 0 : i32
    %c0_i32_1 = arith.constant 0 : i32
    return %c0_i32, %c0_i32_0 : i32, i32
  }
  func.func @transform_4(%arg0: i32) -> (i32, i32) {
    %c0_i32 = arith.constant 0 : i32
    %c0_i32_0 = arith.constant 0 : i32
    %c0_i32_1 = arith.constant 0 : i32
    return %c0_i32, %c0_i32_0 : i32, i32
  }
  func.func @transform_5(%arg0: i32) -> (i32, i32) {
    %c0_i32 = arith.constant 0 : i32
    %c0_i32_0 = arith.constant 0 : i32
    %c0_i32_1 = arith.constant 0 : i32
    return %c0_i32, %c0_i32_0 : i32, i32
  }
  func.func @transform_6(%arg0: i32) -> (i32, i32) {
    %c0_i32 = arith.constant 0 : i32
    %c0_i32_0 = arith.constant 0 : i32
    %c0_i32_1 = arith.constant 0 : i32
    return %c0_i32, %c0_i32_0 : i32, i32
  }
  func.func @transform_7(%arg0: i32) -> (i32, i32) {
    %c0_i32 = arith.constant 0 : i32
    %c0_i32_0 = arith.constant 0 : i32
    %c0_i32_1 = arith.constant 0 : i32
    return %c0_i32, %c0_i32_0 : i32, i32
  }
  func.func @transform_8(%arg0: i32) -> (i32, i32, i32) {
    %c0_i32 = arith.constant 0 : i32
    %c0_i32_0 = arith.constant 0 : i32
    %c0_i32_1 = arith.constant 0 : i32
    %c0_i32_2 = arith.constant 0 : i32
    return %c0_i32, %c0_i32_0, %c0_i32_1 : i32, i32, i32
  }
  func.func @transform_9(%arg0: i32) -> (i32, i32) {
    %c0_i32 = arith.constant 0 : i32
    %c0_i32_0 = arith.constant 0 : i32
    %c0_i32_1 = arith.constant 0 : i32
    return %c0_i32, %c0_i32_0 : i32, i32
  }
  func.func @transform_10(%arg0: i32) -> (i32, i32) {
    %c0_i32 = arith.constant 0 : i32
    %c0_i32_0 = arith.constant 0 : i32
    %c0_i32_1 = arith.constant 0 : i32
    return %c0_i32, %c0_i32_0 : i32, i32
  }
  func.func @transform_11(%arg0: i32) -> (i32, i32) {
    %c0_i32 = arith.constant 0 : i32
    %c0_i32_0 = arith.constant 0 : i32
    %c0_i32_1 = arith.constant 0 : i32
    return %c0_i32, %c0_i32_0 : i32, i32
  }
  func.func @transform_12(%arg0: i32) -> (i32, i32) {
    %c0_i32 = arith.constant 0 : i32
    %c0_i32_0 = arith.constant 0 : i32
    %c0_i32_1 = arith.constant 0 : i32
    return %c0_i32, %c0_i32_0 : i32, i32
  }
  func.func @transform_13(%arg0: i32) -> (i32, i32) {
    %c0_i32 = arith.constant 0 : i32
    %c0_i32_0 = arith.constant 0 : i32
    %c0_i32_1 = arith.constant 0 : i32
    return %c0_i32, %c0_i32_0 : i32, i32
  }
  func.func @transform_14(%arg0: i32) -> (i32, i32) {
    %c0_i32 = arith.constant 0 : i32
    %c0_i32_0 = arith.constant 0 : i32
    %c0_i32_1 = arith.constant 0 : i32
    return %c0_i32, %c0_i32_0 : i32, i32
  }
  func.func @transform_15(%arg0: i32) -> (i32, i32) {
    %c0_i32 = arith.constant 0 : i32
    %c0_i32_0 = arith.constant 0 : i32
    %c0_i32_1 = arith.constant 0 : i32
    return %c0_i32, %c0_i32_0 : i32, i32
  }
  func.func @transform_16(%arg0: i32) -> (i32, i32) {
    %c0_i32 = arith.constant 0 : i32
    %c0_i32_0 = arith.constant 0 : i32
    %c0_i32_1 = arith.constant 0 : i32
    return %c0_i32, %c0_i32_0 : i32, i32
  }
  func.func @transform_17(%arg0: i32) -> (i32, i32) {
    %c0_i32 = arith.constant 0 : i32
    %c0_i32_0 = arith.constant 0 : i32
    %c0_i32_1 = arith.constant 0 : i32
    return %c0_i32, %c0_i32_0 : i32, i32
  }
  func.func @transform_18(%arg0: i32) -> (i32, i32, i32) {
    %c0_i32 = arith.constant 0 : i32
    %c0_i32_0 = arith.constant 0 : i32
    %c0_i32_1 = arith.constant 0 : i32
    return %arg0, %c0_i32, %c0_i32_0 : i32, i32, i32
  }
}

module attributes {stable_mosaic.version = 11 : i64} {
  func.func @bert_layer_kernel(%arg0: i32, %arg1: memref<1x8x32xf32, #tpu.memory_space<vmem>>, %arg2: memref<1x1x8xf32, #tpu.memory_space<vmem>>, %arg3: memref<32x32xbf16, #tpu.memory_space<vmem>>, %arg4: memref<1x32xf32, #tpu.memory_space<vmem>>, %arg5: memref<32x32xbf16, #tpu.memory_space<vmem>>, %arg6: memref<1x32xf32, #tpu.memory_space<vmem>>, %arg7: memref<32x32xbf16, #tpu.memory_space<vmem>>, %arg8: memref<1x32xf32, #tpu.memory_space<vmem>>, %arg9: memref<4x8x32xbf16, #tpu.memory_space<vmem>>, %arg10: memref<1x32xf32, #tpu.memory_space<vmem>>, %arg11: memref<1x32xf32, #tpu.memory_space<vmem>>, %arg12: memref<1x32xf32, #tpu.memory_space<vmem>>, %arg13: memref<32x64xbf16, #tpu.memory_space<vmem>>, %arg14: memref<1x64xf32, #tpu.memory_space<vmem>>, %arg15: memref<64x32xbf16, #tpu.memory_space<vmem>>, %arg16: memref<1x32xf32, #tpu.memory_space<vmem>>, %arg17: memref<1x32xf32, #tpu.memory_space<vmem>>, %arg18: memref<1x32xf32, #tpu.memory_space<vmem>>, %arg19: memref<1x8x32xf32, #tpu.memory_space<vmem>>, %arg20: memref<4x8x8xbf16, #tpu.memory_space<vmem>>, %arg21: memref<8x32xf32, #tpu.memory_space<vmem>>) attributes {dimension_semantics = [#tpu.dimension_semantics<parallel>], iteration_bounds = array<i64: 2>, scalar_prefetch = 0 : i64, scratch_operands = 2 : i64, tpu.core_type = #tpu.core_type<tc>, window_params = [{transform_indices = @transform_0, window_bounds = array<i64: 1, 8, 32>}, {transform_indices = @transform_1, window_bounds = array<i64: 1, 1, 8>}, {pipeline_mode = #tpu.pipeline_mode<synchronous>, transform_indices = @transform_2, window_bounds = array<i64: 32, 32>}, {pipeline_mode = #tpu.pipeline_mode<synchronous>, transform_indices = @transform_3, window_bounds = array<i64: 1, 32>}, {pipeline_mode = #tpu.pipeline_mode<synchronous>, transform_indices = @transform_4, window_bounds = array<i64: 32, 32>}, {pipeline_mode = #tpu.pipeline_mode<synchronous>, transform_indices = @transform_5, window_bounds = array<i64: 1, 32>}, {pipeline_mode = #tpu.pipeline_mode<synchronous>, transform_indices = @transform_6, window_bounds = array<i64: 32, 32>}, {pipeline_mode = #tpu.pipeline_mode<synchronous>, transform_indices = @transform_7, window_bounds = array<i64: 1, 32>}, {pipeline_mode = #tpu.pipeline_mode<synchronous>, transform_indices = @transform_8, window_bounds = array<i64: 4, 8, 32>}, {pipeline_mode = #tpu.pipeline_mode<synchronous>, transform_indices = @transform_9, window_bounds = array<i64: 1, 32>}, {pipeline_mode = #tpu.pipeline_mode<synchronous>, transform_indices = @transform_10, window_bounds = array<i64: 1, 32>}, {pipeline_mode = #tpu.pipeline_mode<synchronous>, transform_indices = @transform_11, window_bounds = array<i64: 1, 32>}, {pipeline_mode = #tpu.pipeline_mode<synchronous>, transform_indices = @transform_12, window_bounds = array<i64: 32, 64>}, {pipeline_mode = #tpu.pipeline_mode<synchronous>, transform_indices = @transform_13, window_bounds = array<i64: 1, 64>}, {pipeline_mode = #tpu.pipeline_mode<synchronous>, transform_indices = @transform_14, window_bounds = array<i64: 64, 32>}, {pipeline_mode = #tpu.pipeline_mode<synchronous>, transform_indices = @transform_15, window_bounds = array<i64: 1, 32>}, {pipeline_mode = #tpu.pipeline_mode<synchronous>, transform_indices = @transform_16, window_bounds = array<i64: 1, 32>}, {pipeline_mode = #tpu.pipeline_mode<synchronous>, transform_indices = @transform_17, window_bounds = array<i64: 1, 32>}, {transform_indices = @transform_18, window_bounds = array<i64: 1, 8, 32>}]} {
    %c0 = arith.constant 0 : index
    %c0_0 = arith.constant 0 : index
    %c0_1 = arith.constant 0 : index
    %0 = vector.load %arg1[%c0, %c0_0, %c0_1] : memref<1x8x32xf32, #tpu.memory_space<vmem>>, vector<1x8x32xf32>
    %1 = vector.shape_cast %0 : vector<1x8x32xf32> to vector<8x32xf32>
    %c0_2 = arith.constant 0 : index
    %c0_3 = arith.constant 0 : index
    %c0_4 = arith.constant 0 : index
    %2 = vector.load %arg2[%c0_2, %c0_3, %c0_4] : memref<1x1x8xf32, #tpu.memory_space<vmem>>, vector<1x1x8xf32>
    %3 = vector.shape_cast %2 : vector<1x1x8xf32> to vector<1x8xf32>
    %4 = arith.truncf %1 : vector<8x32xf32> to vector<8x32xbf16>
    %c0_5 = arith.constant 0 : index
    %c0_6 = arith.constant 0 : index
    %5 = vector.load %arg3[%c0_5, %c0_6] : memref<32x32xbf16, #tpu.memory_space<vmem>>, vector<32x32xbf16>
    %cst = arith.constant dense<0.000000e+00> : vector<8x32xf32>
    %6 = tpu.matmul %4, %5, %cst {dimension_numbers = #tpu.dot_dimension_numbers<[1], [0], [0], [1], [0, 0, 1, 1], [], []>} : vector<8x32xbf16>, vector<32x32xbf16>, vector<8x32xf32> -> vector<8x32xf32>
    %c0_7 = arith.constant 0 : index
    %c0_8 = arith.constant 0 : index
    %7 = vector.load %arg4[%c0_7, %c0_8] : memref<1x32xf32, #tpu.memory_space<vmem>>, vector<1x32xf32>
    %8 = vector.shape_cast %7 : vector<1x32xf32> to vector<32xf32>
    %9 = vector.shape_cast %8 : vector<32xf32> to vector<1x32xf32>
    %10 = vector.broadcast %9 : vector<1x32xf32> to vector<8x32xf32>
    %11 = arith.addf %6, %10 : vector<8x32xf32>
    %c0_9 = arith.constant 0 : index
    %c0_10 = arith.constant 0 : index
    %12 = vector.load %arg5[%c0_9, %c0_10] : memref<32x32xbf16, #tpu.memory_space<vmem>>, vector<32x32xbf16>
    %cst_11 = arith.constant dense<0.000000e+00> : vector<8x32xf32>
    %13 = tpu.matmul %4, %12, %cst_11 {dimension_numbers = #tpu.dot_dimension_numbers<[1], [0], [0], [1], [0, 0, 1, 1], [], []>} : vector<8x32xbf16>, vector<32x32xbf16>, vector<8x32xf32> -> vector<8x32xf32>
    %c0_12 = arith.constant 0 : index
    %c0_13 = arith.constant 0 : index
    %14 = vector.load %arg6[%c0_12, %c0_13] : memref<1x32xf32, #tpu.memory_space<vmem>>, vector<1x32xf32>
    %15 = vector.shape_cast %14 : vector<1x32xf32> to vector<32xf32>
    %16 = vector.shape_cast %15 : vector<32xf32> to vector<1x32xf32>
    %17 = vector.broadcast %16 : vector<1x32xf32> to vector<8x32xf32>
    %18 = arith.addf %13, %17 : vector<8x32xf32>
    %c0_14 = arith.constant 0 : index
    %c0_15 = arith.constant 0 : index
    %19 = vector.load %arg7[%c0_14, %c0_15] : memref<32x32xbf16, #tpu.memory_space<vmem>>, vector<32x32xbf16>
    %cst_16 = arith.constant dense<0.000000e+00> : vector<8x32xf32>
    %20 = tpu.matmul %4, %19, %cst_16 {dimension_numbers = #tpu.dot_dimension_numbers<[1], [0], [0], [1], [0, 0, 1, 1], [], []>} : vector<8x32xbf16>, vector<32x32xbf16>, vector<8x32xf32> -> vector<8x32xf32>
    %c0_17 = arith.constant 0 : index
    %c0_18 = arith.constant 0 : index
    %21 = vector.load %arg8[%c0_17, %c0_18] : memref<1x32xf32, #tpu.memory_space<vmem>>, vector<1x32xf32>
    %22 = vector.shape_cast %21 : vector<1x32xf32> to vector<32xf32>
    %23 = vector.shape_cast %22 : vector<32xf32> to vector<1x32xf32>
    %24 = vector.broadcast %23 : vector<1x32xf32> to vector<8x32xf32>
    %25 = arith.addf %20, %24 : vector<8x32xf32>
    %cst_19 = arith.constant 0.353553385 : f32
    %26 = vector.broadcast %cst_19 : f32 to vector<8x32xf32>
    %27 = arith.mulf %11, %26 : vector<8x32xf32>
    %28 = arith.truncf %27 : vector<8x32xf32> to vector<8x32xbf16>
    %29 = vector.shape_cast %28 : vector<8x32xbf16> to vector<8x4x8xbf16>
    %30 = tpu.transpose %29, [1, 0, 2] : vector<8x4x8xbf16> -> vector<4x8x8xbf16>
    %c0_20 = arith.constant 0 : index
    %c0_21 = arith.constant 0 : index
    %c0_22 = arith.constant 0 : index
    %31 = vector.load %arg20[%c0_20, %c0_21, %c0_22] : memref<4x8x8xbf16, #tpu.memory_space<vmem>>, vector<4x8x8xbf16>
    tpu.vector_store %arg20[%c0_20, %c0_21, %c0_22], %30 {strides = array<i32>} : memref<4x8x8xbf16, #tpu.memory_space<vmem>>, vector<4x8x8xbf16>,
    %32 = arith.truncf %18 : vector<8x32xf32> to vector<8x32xbf16>
    %33 = vector.shape_cast %32 : vector<8x32xbf16> to vector<8x4x8xbf16>
    %34 = tpu.transpose %33, [1, 0, 2] : vector<8x4x8xbf16> -> vector<4x8x8xbf16>
    %35 = arith.truncf %25 : vector<8x32xf32> to vector<8x32xbf16>
    %36 = vector.shape_cast %35 : vector<8x32xbf16> to vector<8x4x8xbf16>
    %37 = tpu.transpose %36, [1, 0, 2] : vector<8x4x8xbf16> -> vector<4x8x8xbf16>
    %c0_23 = arith.constant 0 : index
    %c0_24 = arith.constant 0 : index
    %c0_25 = arith.constant 0 : index
    %38 = vector.load %arg9[%c0_23, %c0_24, %c0_25] : memref<4x8x32xbf16, #tpu.memory_space<vmem>>, vector<4x8x32xbf16>
    %c0_26 = arith.constant 0 : index
    %c0_27 = arith.constant 0 : index
    %39 = vector.load %arg10[%c0_26, %c0_27] : memref<1x32xf32, #tpu.memory_space<vmem>>, vector<1x32xf32>
    %40 = vector.shape_cast %39 : vector<1x32xf32> to vector<32xf32>
    %c0_28 = arith.constant 0 : index
    %c0_29 = arith.constant 0 : index
    %c0_30 = arith.constant 0 : index
    %41 = vector.load %arg20[%c0_28, %c0_29, %c0_30] : memref<4x8x8xbf16, #tpu.memory_space<vmem>>, vector<4x8x8xbf16>
    "tpu.trace_start"() <{level = 10 : i32, message = "nqd,nkd->nqk"}> : () -> ()
    %cst_31 = arith.constant dense<0.000000e+00> : vector<4x8x8xf32>
    %42 = tpu.matmul %41, %34, %cst_31 {dimension_numbers = #tpu.dot_dimension_numbers<[2], [2], [1], [1], [0, 0, 0, 1, 1, 1], [0], [0]>} : vector<4x8x8xbf16>, vector<4x8x8xbf16>, vector<4x8x8xf32> -> vector<4x8x8xf32>
    "tpu.trace_stop"() : () -> ()
    %43 = vector.shape_cast %3 : vector<1x8xf32> to vector<1x1x8xf32>
    %44 = vector.broadcast %43 : vector<1x1x8xf32> to vector<4x8x8xf32>
    %45 = arith.addf %42, %44 : vector<4x8x8xf32>
    %cst_32 = arith.constant dense<0xFF800000> : vector<4x8xf32>
    %46 = vector.multi_reduction <maximumf>, %45, %cst_32 [2] : vector<4x8x8xf32> to vector<4x8xf32>
    %47 = vector.shape_cast %46 : vector<4x8xf32> to vector<4x8x1xf32>
    %48 = vector.broadcast %47 : vector<4x8x1xf32> to vector<4x8x8xf32>
    %49 = arith.subf %45, %48 : vector<4x8x8xf32>
    %50 = math.exp %49 : vector<4x8x8xf32>
    %cst_33 = arith.constant dense<0.000000e+00> : vector<4x8xf32>
    %51 = vector.multi_reduction <add>, %50, %cst_33 [2] : vector<4x8x8xf32> to vector<4x8xf32>
    %52 = vector.shape_cast %51 : vector<4x8xf32> to vector<4x8x1xf32>
    %53 = arith.truncf %50 : vector<4x8x8xf32> to vector<4x8x8xbf16>
    "tpu.trace_start"() <{level = 10 : i32, message = "nqk,nkd->nqd"}> : () -> ()
    %cst_34 = arith.constant dense<0.000000e+00> : vector<4x8x8xf32>
    %54 = tpu.matmul %53, %37, %cst_34 {dimension_numbers = #tpu.dot_dimension_numbers<[2], [1], [1], [2], [0, 0, 0, 1, 1, 2], [0], [0]>} : vector<4x8x8xbf16>, vector<4x8x8xbf16>, vector<4x8x8xf32> -> vector<4x8x8xf32>
    "tpu.trace_stop"() : () -> ()
    %55 = tpu.reciprocal %52 {approx = true} : vector<4x8x1xf32> -> vector<4x8x1xf32>
    %56 = vector.broadcast %55 : vector<4x8x1xf32> to vector<4x8x8xf32>
    %57 = arith.mulf %54, %56 : vector<4x8x8xf32>
    %58 = arith.truncf %57 : vector<4x8x8xf32> to vector<4x8x8xbf16>
    "tpu.trace_start"() <{level = 10 : i32, message = "nqd,ndh->nqh"}> : () -> ()
    %cst_35 = arith.constant dense<0.000000e+00> : vector<4x8x32xf32>
    %59 = tpu.matmul %58, %38, %cst_35 {dimension_numbers = #tpu.dot_dimension_numbers<[2], [1], [1], [2], [0, 0, 0, 1, 1, 2], [0], [0]>} : vector<4x8x8xbf16>, vector<4x8x32xbf16>, vector<4x8x32xf32> -> vector<4x8x32xf32>
    "tpu.trace_stop"() : () -> ()
    %cst_36 = arith.constant dense<0.000000e+00> : vector<8x32xf32>
    %60 = vector.multi_reduction <add>, %59, %cst_36 [0] : vector<4x8x32xf32> to vector<8x32xf32>
    %61 = vector.shape_cast %40 : vector<32xf32> to vector<1x32xf32>
    %62 = vector.broadcast %61 : vector<1x32xf32> to vector<8x32xf32>
    %63 = arith.addf %60, %62 : vector<8x32xf32>
    %c0_37 = arith.constant 0 : index
    %c0_38 = arith.constant 0 : index
    %64 = vector.load %arg21[%c0_37, %c0_38] : memref<8x32xf32, #tpu.memory_space<vmem>>, vector<8x32xf32>
    tpu.vector_store %arg21[%c0_37, %c0_38], %63 {strides = array<i32>} : memref<8x32xf32, #tpu.memory_space<vmem>>, vector<8x32xf32>,
    %c0_39 = arith.constant 0 : index
    %c0_40 = arith.constant 0 : index
    %65 = vector.load %arg21[%c0_39, %c0_40] : memref<8x32xf32, #tpu.memory_space<vmem>>, vector<8x32xf32>
    %66 = arith.addf %65, %1 : vector<8x32xf32>
    %c0_41 = arith.constant 0 : index
    %c0_42 = arith.constant 0 : index
    %67 = vector.load %arg11[%c0_41, %c0_42] : memref<1x32xf32, #tpu.memory_space<vmem>>, vector<1x32xf32>
    %68 = vector.shape_cast %67 : vector<1x32xf32> to vector<32xf32>
    %c0_43 = arith.constant 0 : index
    %c0_44 = arith.constant 0 : index
    %69 = vector.load %arg12[%c0_43, %c0_44] : memref<1x32xf32, #tpu.memory_space<vmem>>, vector<1x32xf32>
    %70 = vector.shape_cast %69 : vector<1x32xf32> to vector<32xf32>
    %cst_45 = arith.constant dense<0.000000e+00> : vector<8xf32>
    %71 = vector.multi_reduction <add>, %66, %cst_45 [1] : vector<8x32xf32> to vector<8xf32>
    %72 = vector.shape_cast %71 : vector<8xf32> to vector<8x1xf32>
    %cst_46 = arith.constant 3.200000e+01 : f32
    %73 = vector.broadcast %cst_46 : f32 to vector<8x1xf32>
    %74 = arith.divf %72, %73 : vector<8x1xf32>
    %75 = vector.broadcast %74 : vector<8x1xf32> to vector<8x32xf32>
    %76 = arith.subf %66, %75 : vector<8x32xf32>
    %77 = arith.mulf %76, %76 : vector<8x32xf32>
    %cst_47 = arith.constant dense<0.000000e+00> : vector<8xf32>
    %78 = vector.multi_reduction <add>, %77, %cst_47 [1] : vector<8x32xf32> to vector<8xf32>
    %79 = vector.shape_cast %78 : vector<8xf32> to vector<8x1xf32>
    %cst_48 = arith.constant 3.200000e+01 : f32
    %80 = vector.broadcast %cst_48 : f32 to vector<8x1xf32>
    %81 = arith.divf %79, %80 : vector<8x1xf32>
    %82 = vector.broadcast %74 : vector<8x1xf32> to vector<8x32xf32>
    %83 = arith.subf %66, %82 : vector<8x32xf32>
    %cst_49 = arith.constant 9.99999996E-13 : f32
    %84 = vector.broadcast %cst_49 : f32 to vector<8x1xf32>
    %85 = arith.addf %81, %84 : vector<8x1xf32>
    %86 = math.sqrt %85 : vector<8x1xf32>
    %87 = vector.broadcast %86 : vector<8x1xf32> to vector<8x32xf32>
    %88 = arith.divf %83, %87 : vector<8x32xf32>
    %89 = vector.shape_cast %68 : vector<32xf32> to vector<1x32xf32>
    %90 = vector.broadcast %89 : vector<1x32xf32> to vector<8x32xf32>
    %91 = arith.mulf %90, %88 : vector<8x32xf32>
    %92 = vector.shape_cast %70 : vector<32xf32> to vector<1x32xf32>
    %93 = vector.broadcast %92 : vector<1x32xf32> to vector<8x32xf32>
    %94 = arith.addf %91, %93 : vector<8x32xf32>
    %95 = arith.truncf %94 : vector<8x32xf32> to vector<8x32xbf16>
    %c0_50 = arith.constant 0 : index
    %c0_51 = arith.constant 0 : index
    %96 = vector.load %arg13[%c0_50, %c0_51] : memref<32x64xbf16, #tpu.memory_space<vmem>>, vector<32x64xbf16>
    %cst_52 = arith.constant dense<0.000000e+00> : vector<8x64xf32>
    %97 = tpu.matmul %95, %96, %cst_52 {dimension_numbers = #tpu.dot_dimension_numbers<[1], [0], [0], [1], [0, 0, 1, 1], [], []>} : vector<8x32xbf16>, vector<32x64xbf16>, vector<8x64xf32> -> vector<8x64xf32>
    %c0_53 = arith.constant 0 : index
    %c0_54 = arith.constant 0 : index
    %98 = vector.load %arg14[%c0_53, %c0_54] : memref<1x64xf32, #tpu.memory_space<vmem>>, vector<1x64xf32>
    %99 = vector.shape_cast %98 : vector<1x64xf32> to vector<64xf32>
    %100 = vector.shape_cast %99 : vector<64xf32> to vector<1x64xf32>
    %101 = vector.broadcast %100 : vector<1x64xf32> to vector<8x64xf32>
    %102 = arith.addf %97, %101 : vector<8x64xf32>
    %cst_55 = arith.constant 5.000000e-01 : f32
    %103 = vector.broadcast %cst_55 : f32 to vector<8x64xf32>
    %104 = arith.mulf %102, %103 : vector<8x64xf32>
    %cst_56 = arith.constant 1.41421354 : f32
    %105 = vector.broadcast %cst_56 : f32 to vector<8x64xf32>
    %106 = arith.divf %102, %105 : vector<8x64xf32>
    %107 = math.erf %106 : vector<8x64xf32>
    %cst_57 = arith.constant 1.000000e+00 : f32
    %108 = vector.broadcast %cst_57 : f32 to vector<8x64xf32>
    %109 = arith.addf %108, %107 : vector<8x64xf32>
    %110 = arith.mulf %104, %109 : vector<8x64xf32>
    %111 = arith.truncf %110 : vector<8x64xf32> to vector<8x64xbf16>
    %c0_58 = arith.constant 0 : index
    %c0_59 = arith.constant 0 : index
    %112 = vector.load %arg15[%c0_58, %c0_59] : memref<64x32xbf16, #tpu.memory_space<vmem>>, vector<64x32xbf16>
    %cst_60 = arith.constant dense<0.000000e+00> : vector<8x32xf32>
    %113 = tpu.matmul %111, %112, %cst_60 {dimension_numbers = #tpu.dot_dimension_numbers<[1], [0], [0], [1], [0, 0, 1, 1], [], []>} : vector<8x64xbf16>, vector<64x32xbf16>, vector<8x32xf32> -> vector<8x32xf32>
    %c0_61 = arith.constant 0 : index
    %c0_62 = arith.constant 0 : index
    %114 = vector.load %arg16[%c0_61, %c0_62] : memref<1x32xf32, #tpu.memory_space<vmem>>, vector<1x32xf32>
    %115 = vector.shape_cast %114 : vector<1x32xf32> to vector<32xf32>
    %116 = vector.shape_cast %115 : vector<32xf32> to vector<1x32xf32>
    %117 = vector.broadcast %116 : vector<1x32xf32> to vector<8x32xf32>
    %118 = arith.addf %113, %117 : vector<8x32xf32>
    %119 = arith.addf %118, %94 : vector<8x32xf32>
    %c0_63 = arith.constant 0 : index
    %c0_64 = arith.constant 0 : index
    %120 = vector.load %arg17[%c0_63, %c0_64] : memref<1x32xf32, #tpu.memory_space<vmem>>, vector<1x32xf32>
    %121 = vector.shape_cast %120 : vector<1x32xf32> to vector<32xf32>
    %c0_65 = arith.constant 0 : index
    %c0_66 = arith.constant 0 : index
    %122 = vector.load %arg18[%c0_65, %c0_66] : memref<1x32xf32, #tpu.memory_space<vmem>>, vector<1x32xf32>
    %123 = vector.shape_cast %122 : vector<1x32xf32> to vector<32xf32>
    %cst_67 = arith.constant dense<0.000000e+00> : vector<8xf32>
    %124 = vector.multi_reduction <add>, %119, %cst_67 [1] : vector<8x32xf32> to vector<8xf32>
    %125 = vector.shape_cast %124 : vector<8xf32> to vector<8x1xf32>
    %cst_68 = arith.constant 3.200000e+01 : f32
    %126 = vector.broadcast %cst_68 : f32 to vector<8x1xf32>
    %127 = arith.divf %125, %126 : vector<8x1xf32>
    %128 = vector.broadcast %127 : vector<8x1xf32> to vector<8x32xf32>
    %129 = arith.subf %119, %128 : vector<8x32xf32>
    %130 = arith.mulf %129, %129 : vector<8x32xf32>
    %cst_69 = arith.constant dense<0.000000e+00> : vector<8xf32>
    %131 = vector.multi_reduction <add>, %130, %cst_69 [1] : vector<8x32xf32> to vector<8xf32>
    %132 = vector.shape_cast %131 : vector<8xf32> to vector<8x1xf32>
    %cst_70 = arith.constant 3.200000e+01 : f32
    %133 = vector.broadcast %cst_70 : f32 to vector<8x1xf32>
    %134 = arith.divf %132, %133 : vector<8x1xf32>
    %135 = vector.broadcast %127 : vector<8x1xf32> to vector<8x32xf32>
    %136 = arith.subf %119, %135 : vector<8x32xf32>
    %cst_71 = arith.constant 9.99999996E-13 : f32
    %137 = vector.broadcast %cst_71 : f32 to vector<8x1xf32>
    %138 = arith.addf %134, %137 : vector<8x1xf32>
    %139 = math.sqrt %138 : vector<8x1xf32>
    %140 = vector.broadcast %139 : vector<8x1xf32> to vector<8x32xf32>
    %141 = arith.divf %136, %140 : vector<8x32xf32>
    %142 = vector.shape_cast %121 : vector<32xf32> to vector<1x32xf32>
    %143 = vector.broadcast %142 : vector<1x32xf32> to vector<8x32xf32>
    %144 = arith.mulf %143, %141 : vector<8x32xf32>
    %145 = vector.shape_cast %123 : vector<32xf32> to vector<1x32xf32>
    %146 = vector.broadcast %145 : vector<1x32xf32> to vector<8x32xf32>
    %147 = arith.addf %144, %146 : vector<8x32xf32>
    %c0_72 = arith.constant 0 : index
    %c0_73 = arith.constant 0 : index
    %c0_74 = arith.constant 0 : index
    %148 = vector.load %arg19[%c0_72, %c0_73, %c0_74] : memref<1x8x32xf32, #tpu.memory_space<vmem>>, vector<1x8x32xf32>
    %149 = vector.shape_cast %148 : vector<1x8x32xf32> to vector<8x32xf32>
    %150 = vector.shape_cast %147 : vector<8x32xf32> to vector<1x8x32xf32>
    tpu.vector_store %arg19[%c0_72, %c0_73, %c0_74], %150 {strides = array<i32>} : memref<1x8x32xf32, #tpu.memory_space<vmem>>, vector<1x8x32xf32>,
    return
  }
  func.func @transform_0(%arg0: i32) -> (i32, i32, i32) {
    %c0_i32 = arith.constant 0 : i32
    %c0_i32_0 = arith.constant 0 : i32
    %c0_i32_1 = arith.constant 0 : i32
    return %arg0, %c0_i32, %c0_i32_0 : i32, i32, i32
  }
  func.func @transform_1(%arg0: i32) -> (i32, i32, i32) {
    %c0_i32 = arith.constant 0 : i32
    %c0_i32_0 = arith.constant 0 : i32
    %c0_i32_1 = arith.constant 0 : i32
    return %arg0, %c0_i32, %c0_i32_0 : i32, i32, i32
  }
  func.func @transform_2(%arg0: i32) -> (i32, i32) {
    %c0_i32 = arith.constant 0 : i32
    %c0_i32_0 = arith.constant 0 : i32
    %c0_i32_1 = arith.constant 0 : i32
    return %c0_i32, %c0_i32_0 : i32, i32
  }
  func.func @transform_3(%arg0: i32) -> (i32, i32) {
    %c0_i32 = arith.constant 0 : i32
    %c0_i32_0 = arith.constant 0 : i32
    %c0_i32_1 = arith.constant 0 : i32
    return %c0_i32, %c0_i32_0 : i32, i32
  }
  func.func @transform_4(%arg0: i32) -> (i32, i32) {
    %c0_i32 = arith.constant 0 : i32
    %c0_i32_0 = arith.constant 0 : i32
    %c0_i32_1 = arith.constant 0 : i32
    return %c0_i32, %c0_i32_0 : i32, i32
  }
  func.func @transform_5(%arg0: i32) -> (i32, i32) {
    %c0_i32 = arith.constant 0 : i32
    %c0_i32_0 = arith.constant 0 : i32
    %c0_i32_1 = arith.constant 0 : i32
    return %c0_i32, %c0_i32_0 : i32, i32
  }
  func.func @transform_6(%arg0: i32) -> (i32, i32) {
    %c0_i32 = arith.constant 0 : i32
    %c0_i32_0 = arith.constant 0 : i32
    %c0_i32_1 = arith.constant 0 : i32
    return %c0_i32, %c0_i32_0 : i32, i32
  }
  func.func @transform_7(%arg0: i32) -> (i32, i32) {
    %c0_i32 = arith.constant 0 : i32
    %c0_i32_0 = arith.constant 0 : i32
    %c0_i32_1 = arith.constant 0 : i32
    return %c0_i32, %c0_i32_0 : i32, i32
  }
  func.func @transform_8(%arg0: i32) -> (i32, i32, i32) {
    %c0_i32 = arith.constant 0 : i32
    %c0_i32_0 = arith.constant 0 : i32
    %c0_i32_1 = arith.constant 0 : i32
    %c0_i32_2 = arith.constant 0 : i32
    return %c0_i32, %c0_i32_0, %c0_i32_1 : i32, i32, i32
  }
  func.func @transform_9(%arg0: i32) -> (i32, i32) {
    %c0_i32 = arith.constant 0 : i32
    %c0_i32_0 = arith.constant 0 : i32
    %c0_i32_1 = arith.constant 0 : i32
    return %c0_i32, %c0_i32_0 : i32, i32
  }
  func.func @transform_10(%arg0: i32) -> (i32, i32) {
    %c0_i32 = arith.constant 0 : i32
    %c0_i32_0 = arith.constant 0 : i32
    %c0_i32_1 = arith.constant 0 : i32
    return %c0_i32, %c0_i32_0 : i32, i32
  }
  func.func @transform_11(%arg0: i32) -> (i32, i32) {
    %c0_i32 = arith.constant 0 : i32
    %c0_i32_0 = arith.constant 0 : i32
    %c0_i32_1 = arith.constant 0 : i32
    return %c0_i32, %c0_i32_0 : i32, i32
  }
  func.func @transform_12(%arg0: i32) -> (i32, i32) {
    %c0_i32 = arith.constant 0 : i32
    %c0_i32_0 = arith.constant 0 : i32
    %c0_i32_1 = arith.constant 0 : i32
    return %c0_i32, %c0_i32_0 : i32, i32
  }
  func.func @transform_13(%arg0: i32) -> (i32, i32) {
    %c0_i32 = arith.constant 0 : i32
    %c0_i32_0 = arith.constant 0 : i32
    %c0_i32_1 = arith.constant 0 : i32
    return %c0_i32, %c0_i32_0 : i32, i32
  }
  func.func @transform_14(%arg0: i32) -> (i32, i32) {
    %c0_i32 = arith.constant 0 : i32
    %c0_i32_0 = arith.constant 0 : i32
    %c0_i32_1 = arith.constant 0 : i32
    return %c0_i32, %c0_i32_0 : i32, i32
  }
  func.func @transform_15(%arg0: i32) -> (i32, i32) {
    %c0_i32 = arith.constant 0 : i32
    %c0_i32_0 = arith.constant 0 : i32
    %c0_i32_1 = arith.constant 0 : i32
    return %c0_i32, %c0_i32_0 : i32, i32
  }
  func.func @transform_16(%arg0: i32) -> (i32, i32) {
    %c0_i32 = arith.constant 0 : i32
    %c0_i32_0 = arith.constant 0 : i32
    %c0_i32_1 = arith.constant 0 : i32
    return %c0_i32, %c0_i32_0 : i32, i32
  }
  func.func @transform_17(%arg0: i32) -> (i32, i32) {
    %c0_i32 = arith.constant 0 : i32
    %c0_i32_0 = arith.constant 0 : i32
    %c0_i32_1 = arith.constant 0 : i32
    return %c0_i32, %c0_i32_0 : i32, i32
  }
  func.func @transform_18(%arg0: i32) -> (i32, i32, i32) {
    %c0_i32 = arith.constant 0 : i32
    %c0_i32_0 = arith.constant 0 : i32
    %c0_i32_1 = arith.constant 0 : i32
    return %arg0, %c0_i32, %c0_i32_0 : i32, i32, i32
  }
}

</mosaic_0001>

<llo_original>
// kernel: tpu_custom_call.1
$region0: #{tpu_custom_call.1}
  #allocation0 [shape = 'u32[]', space=smem, size = 0x4, offset = 0x4, fixed_abs, tag = 'smem constant byte address 0x4 - core index']
  #allocation1 [shape = 'u32[72,128]{1,0:T(1,128)}', space=vmem, size = 0x9000, scoped, tag = 'internal scratch']
  #allocation2 [shape = 'bf16[4,8,8]{2,1,0:T(8,128)(2,1)}', space=vmem, size = 0x2000, scoped, tag = 'scratch operand']
  #allocation3 [shape = 'f32[8,32]{1,0:T(8,128)}', space=vmem, size = 0x1000, scoped, tag = 'scratch operand']
  %s0 = inlined_call_operand.vmem [shape: f32[2,8,32], index: 0, kind: input, shape index: {}]
  %s1 = inlined_call_operand.hbm [shape: f32[2,1,8], index: 1, kind: input, shape index: {}]
  %s2 = inlined_call_operand.vmem [shape: bf16[32,32], index: 2, kind: input, shape index: {}]
  %s3 = inlined_call_operand.vmem [shape: f32[1,32], index: 3, kind: input, shape index: {}]
  %s4 = inlined_call_operand.vmem [shape: bf16[32,32], index: 4, kind: input, shape index: {}]
  %s5 = inlined_call_operand.vmem [shape: f32[1,32], index: 5, kind: input, shape index: {}]
  %s6 = inlined_call_operand.hbm [shape: bf16[32,32], index: 6, kind: input, shape index: {}]
  %s7 = inlined_call_operand.vmem [shape: f32[1,32], index: 7, kind: input, shape index: {}]
  %s8 = inlined_call_operand.hbm [shape: bf16[4,8,32], index: 8, kind: input, shape index: {}]
  %s9 = inlined_call_operand.vmem [shape: f32[1,32], index: 9, kind: input, shape index: {}]
  %s10 = inlined_call_operand.vmem [shape: f32[1,32], index: 10, kind: input, shape index: {}]
  %s11 = inlined_call_operand.vmem [shape: f32[1,32], index: 11, kind: input, shape index: {}]
  %s12 = inlined_call_operand.hbm [shape: bf16[32,64], index: 12, kind: input, shape index: {}]
  %s13 = inlined_call_operand.vmem [shape: f32[1,64], index: 13, kind: input, shape index: {}]
  %s14 = inlined_call_operand.vmem [shape: bf16[64,32], index: 14, kind: input, shape index: {}]
  %s15 = inlined_call_operand.vmem [shape: f32[1,32], index: 15, kind: input, shape index: {}]
  %s16 = inlined_call_operand.vmem [shape: f32[1,32], index: 16, kind: input, shape index: {}]
  %s17 = inlined_call_operand.vmem [shape: f32[1,32], index: 17, kind: input, shape index: {}]
  %s18 = inlined_call_operand.hbm [shape: f32[2,8,32], index: 18, kind: output, shape index: {}]
  %s19 = sld [smem:[#allocation0]]
  $region121: #{tpu_custom_call.1} parent=0
    _
  %s21 = ssub.s32 1, %s19
  %s22 = scalar_select 0, %s21, %s19
  $region1: #{tpu_custom_call.1} parent=0
    #allocation4 [shape = 'u8[1024]{0}', space=vmem, size = 0x400, scoped, tag = 'input window, operand 1']
    #allocation5 [shape = 's32[2]{0}', space=sflag, size = 0x8, scoped, tag = 'scoped memory for tpu_custom_call.1']
    #allocation6 [shape = 's32[2]{0}', space=sflag, size = 0x8, scoped, tag = 'scoped memory for tpu_custom_call.1']
    #allocation7 [shape = 'u8[8192]{0}', space=vmem, size = 0x2000, scoped, tag = 'input window, operand 6, single buffered']
    #allocation8 [shape = 's32[1]{0}', space=sflag, size = 0x4, scoped, tag = 'scoped memory for tpu_custom_call.1']
    #allocation9 [shape = 'u8[8192]{0}', space=vmem, size = 0x2000, scoped, tag = 'input window, operand 8, single buffered']
    #allocation10 [shape = 'u8[8192]{0}', space=vmem, size = 0x2000, scoped, tag = 'input window, operand 12, single buffered']
    #allocation11 [shape = 's32[1]{0}', space=sflag, size = 0x4, scoped, tag = 'scoped memory for tpu_custom_call.1']
    #allocation12 [shape = 'u8[8192]{0}', space=vmem, size = 0x2000, scoped, tag = 'output window, operand 0']
    %23 = vsyncpa [#allocation5], 0
    %s24 = scalar_lea.sflag [#allocation5], 1
    %25 = vsyncpa %s24, 0
    %26 = vsyncpa [#allocation8], 0
    %27 = vsyncpa [#allocation11], 0
    %28 = vsyncpa [#allocation6], 0
    %s29 = scalar_lea.sflag [#allocation6], 1
    %30 = vsyncpa %s29, 0
    loop: start=0, step=1, limit=4
    $region2: #{tpu_custom_call.1} parent=1 // loop_pre_header
      _
    $region3: #{tpu_custom_call.1} parent=1 // loop_header
      %s32 = sphi 0, %s36
      %p33 = scmp.ge.s32.totalorder %s32, 4
      %s42 = sphi 0, %s44
      %s45 = sphi 0, %s42
      %s46 = sphi 0, %s45
      %s62 = sphi 0, %s46
      %s68 = sphi 0, %s70
      %s71 = sphi 0, %s68
      %s72 = sphi 0, %s71
      %s88 = sphi 0, %s72
      %s92 = sphi 0, %s92
      %s94 = sphi 0, %s92
      %s95 = sphi 0, %s94
      %s109 = sphi 0, %s95
      %s113 = sphi 0, %s113
      %s115 = sphi 0, %s113
      %s116 = sphi 0, %s115
      %s130 = sphi 0, %s116
      %s134 = sphi 0, %s134
      %s136 = sphi 0, %s134
      %s137 = sphi 0, %s136
      %s151 = sphi 0, %s137
      %s155 = sphi 0, %s155
      %s157 = sphi 0, %s155
      %s158 = sphi 0, %s157
      %s172 = sphi 0, %s158
      %s176 = sphi 0, %s176
      %s178 = sphi 0, %s176
      %s179 = sphi 0, %s178
      %s193 = sphi 0, %s179
      %s197 = sphi 0, %s197
      %s199 = sphi 0, %s197
      %s200 = sphi 0, %s199
      %s214 = sphi 0, %s200
      %s218 = sphi 0, %s218
      %s220 = sphi 0, %s218
      %s221 = sphi 0, %s220
      %s235 = sphi 0, %s221
      %s239 = sphi 0, %s239
      %s241 = sphi 0, %s239
      %s242 = sphi 0, %s241
      %s256 = sphi 0, %s242
      %s260 = sphi 0, %s260
      %s262 = sphi 0, %s260
      %s263 = sphi 0, %s262
      %s277 = sphi 0, %s263
      %s281 = sphi 0, %s281
      %s283 = sphi 0, %s281
      %s284 = sphi 0, %s283
      %s298 = sphi 0, %s284
      %s302 = sphi 0, %s302
      %s304 = sphi 0, %s302
      %s305 = sphi 0, %s304
      %s319 = sphi 0, %s305
      %s323 = sphi 0, %s323
      %s325 = sphi 0, %s323
      %s326 = sphi 0, %s325
      %s340 = sphi 0, %s326
      %s344 = sphi 0, %s344
      %s346 = sphi 0, %s344
      %s347 = sphi 0, %s346
      %s361 = sphi 0, %s347
      %s365 = sphi 0, %s365
      %s367 = sphi 0, %s365
      %s368 = sphi 0, %s367
      %s382 = sphi 0, %s368
      %s386 = sphi 0, %s386
      %s388 = sphi 0, %s386
      %s389 = sphi 0, %s388
      %s403 = sphi 0, %s389
      %s407 = sphi 0, %s407
      %s409 = sphi 0, %s407
      %s410 = sphi 0, %s409
      %s424 = sphi 0, %s410
      %s430 = sphi 0, %s432
      %s433 = sphi 0, %s430
      %s434 = sphi 0, %s433
      %s450 = sphi 0, %s434
    $region4: #{tpu_custom_call.1} parent=1 // loop_header_branch
      %35 = sbr.rel (%p33) target = $region8
    $region5: #{tpu_custom_call.1} parent=1 // loop_body
      %s37 = ssub.s32 %s32, 1
      %s38 = ssub.s32 %s32, 2
      %s39 = sadd.s32 %s32, 1
      %s40 = ssub.s32 %s32, %s39
      %p41 = scmp.eq.s32.totalorder %s40, 0
      %s43 = sadd.s32 %s42, 1
      %s44 = scalar_select %p41, %s42, %s43
      %p47 = pneg %p41
      %p48 = scmp.eq.s32.totalorder %s32, 1
      %p49 = por %p47, %p48
      %p50 = scmp.ne.s32.totalorder %s42, %s45
      %p51 = scmp.eq.s32.totalorder %s32, 0
      %p52 = por %p50, %p51
      %p53 = scmp.ne.s32.totalorder %s42, %s45
      %p54 = scmp.eq.s32.totalorder %s37, 1
      %p55 = por %p53, %p54
      %p56 = scmp.ne.s32.totalorder %s45, %s46
      %p57 = scmp.eq.s32.totalorder %s37, 0
      %p58 = por %p56, %p57
      %p59 = scmp.ne.s32.totalorder %s45, %s46
      %p60 = scmp.eq.s32.totalorder %s38, 1
      %p61 = por %p59, %p60
      %p63 = scmp.ne.s32.totalorder %s46, %s62
      %p64 = scmp.eq.s32.totalorder %s38, 0
      %p65 = por %p63, %p64
      %s66 = ssub.s32 %s32, %s39
      %p67 = scmp.eq.s32.totalorder %s66, 0
      %s69 = sadd.s32 %s68, 1
      %s70 = scalar_select %p67, %s68, %s69
      %p73 = pneg %p67
      %p74 = scmp.eq.s32.totalorder %s32, 1
      %p75 = por %p73, %p74
      %p76 = scmp.ne.s32.totalorder %s68, %s71
      %p77 = scmp.eq.s32.totalorder %s32, 0
      %p78 = por %p76, %p77
      %p79 = scmp.ne.s32.totalorder %s68, %s71
      %p80 = scmp.eq.s32.totalorder %s37, 1
      %p81 = por %p79, %p80
      %p82 = scmp.ne.s32.totalorder %s71, %s72
      %p83 = scmp.eq.s32.totalorder %s37, 0
      %p84 = por %p82, %p83
      %p85 = scmp.ne.s32.totalorder %s71, %s72
      %p86 = scmp.eq.s32.totalorder %s38, 1
      %p87 = por %p85, %p86
      %p89 = scmp.ne.s32.totalorder %s72, %s88
      %p90 = scmp.eq.s32.totalorder %s38, 0
      %p91 = por %p89, %p90
      %s93 = sadd.s32 %s92, 1
      %p96 = scmp.eq.s32.totalorder %s32, 1
      %p97 = scmp.ne.s32.totalorder %s92, %s94
      %p98 = scmp.eq.s32.totalorder %s32, 0
      %p99 = por %p97, %p98
      %p100 = scmp.ne.s32.totalorder %s92, %s94
      %p101 = scmp.eq.s32.totalorder %s37, 1
      %p102 = por %p100, %p101
      %p103 = scmp.ne.s32.totalorder %s94, %s95
      %p104 = scmp.eq.s32.totalorder %s37, 0
      %p105 = por %p103, %p104
      %p106 = scmp.ne.s32.totalorder %s94, %s95
      %p107 = scmp.eq.s32.totalorder %s38, 1
      %p108 = por %p106, %p107
      %p110 = scmp.ne.s32.totalorder %s95, %s109
      %p111 = scmp.eq.s32.totalorder %s38, 0
      %p112 = por %p110, %p111
      %s114 = sadd.s32 %s113, 1
      %p117 = scmp.eq.s32.totalorder %s32, 1
      %p118 = scmp.ne.s32.totalorder %s113, %s115
      %p119 = scmp.eq.s32.totalorder %s32, 0
      %p120 = por %p118, %p119
      %p121 = scmp.ne.s32.totalorder %s113, %s115
      %p122 = scmp.eq.s32.totalorder %s37, 1
      %p123 = por %p121, %p122
      %p124 = scmp.ne.s32.totalorder %s115, %s116
      %p125 = scmp.eq.s32.totalorder %s37, 0
      %p126 = por %p124, %p125
      %p127 = scmp.ne.s32.totalorder %s115, %s116
      %p128 = scmp.eq.s32.totalorder %s38, 1
      %p129 = por %p127, %p128
      %p131 = scmp.ne.s32.totalorder %s116, %s130
      %p132 = scmp.eq.s32.totalorder %s38, 0
      %p133 = por %p131, %p132
      %s135 = sadd.s32 %s134, 1
      %p138 = scmp.eq.s32.totalorder %s32, 1
      %p139 = scmp.ne.s32.totalorder %s134, %s136
      %p140 = scmp.eq.s32.totalorder %s32, 0
      %p141 = por %p139, %p140
      %p142 = scmp.ne.s32.totalorder %s134, %s136
      %p143 = scmp.eq.s32.totalorder %s37, 1
      %p144 = por %p142, %p143
      %p145 = scmp.ne.s32.totalorder %s136, %s137
      %p146 = scmp.eq.s32.totalorder %s37, 0
      %p147 = por %p145, %p146
      %p148 = scmp.ne.s32.totalorder %s136, %s137
      %p149 = scmp.eq.s32.totalorder %s38, 1
      %p150 = por %p148, %p149
      %p152 = scmp.ne.s32.totalorder %s137, %s151
      %p153 = scmp.eq.s32.totalorder %s38, 0
      %p154 = por %p152, %p153
      %s156 = sadd.s32 %s155, 1
      %p159 = scmp.eq.s32.totalorder %s32, 1
      %p160 = scmp.ne.s32.totalorder %s155, %s157
      %p161 = scmp.eq.s32.totalorder %s32, 0
      %p162 = por %p160, %p161
      %p163 = scmp.ne.s32.totalorder %s155, %s157
      %p164 = scmp.eq.s32.totalorder %s37, 1
      %p165 = por %p163, %p164
      %p166 = scmp.ne.s32.totalorder %s157, %s158
      %p167 = scmp.eq.s32.totalorder %s37, 0
      %p168 = por %p166, %p167
      %p169 = scmp.ne.s32.totalorder %s157, %s158
      %p170 = scmp.eq.s32.totalorder %s38, 1
      %p171 = por %p169, %p170
      %p173 = scmp.ne.s32.totalorder %s158, %s172
      %p174 = scmp.eq.s32.totalorder %s38, 0
      %p175 = por %p173, %p174
      %s177 = sadd.s32 %s176, 1
      %p180 = scmp.eq.s32.totalorder %s32, 1
      %p181 = scmp.ne.s32.totalorder %s176, %s178
      %p182 = scmp.eq.s32.totalorder %s32, 0
      %p183 = por %p181, %p182
      %p184 = scmp.ne.s32.totalorder %s176, %s178
      %p185 = scmp.eq.s32.totalorder %s37, 1
      %p186 = por %p184, %p185
      %p187 = scmp.ne.s32.totalorder %s178, %s179
      %p188 = scmp.eq.s32.totalorder %s37, 0
      %p189 = por %p187, %p188
      %p190 = scmp.ne.s32.totalorder %s178, %s179
      %p191 = scmp.eq.s32.totalorder %s38, 1
      %p192 = por %p190, %p191
      %p194 = scmp.ne.s32.totalorder %s179, %s193
      %p195 = scmp.eq.s32.totalorder %s38, 0
      %p196 = por %p194, %p195
      %s198 = sadd.s32 %s197, 1
      %p201 = scmp.eq.s32.totalorder %s32, 1
      %p202 = scmp.ne.s32.totalorder %s197, %s199
      %p203 = scmp.eq.s32.totalorder %s32, 0
      %p204 = por %p202, %p203
      %p205 = scmp.ne.s32.totalorder %s197, %s199
      %p206 = scmp.eq.s32.totalorder %s37, 1
      %p207 = por %p205, %p206
      %p208 = scmp.ne.s32.totalorder %s199, %s200
      %p209 = scmp.eq.s32.totalorder %s37, 0
      %p210 = por %p208, %p209
      %p211 = scmp.ne.s32.totalorder %s199, %s200
      %p212 = scmp.eq.s32.totalorder %s38, 1
      %p213 = por %p211, %p212
      %p215 = scmp.ne.s32.totalorder %s200, %s214
      %p216 = scmp.eq.s32.totalorder %s38, 0
      %p217 = por %p215, %p216
      %s219 = sadd.s32 %s218, 1
      %p222 = scmp.eq.s32.totalorder %s32, 1
      %p223 = scmp.ne.s32.totalorder %s218, %s220
      %p224 = scmp.eq.s32.totalorder %s32, 0
      %p225 = por %p223, %p224
      %p226 = scmp.ne.s32.totalorder %s218, %s220
      %p227 = scmp.eq.s32.totalorder %s37, 1
      %p228 = por %p226, %p227
      %p229 = scmp.ne.s32.totalorder %s220, %s221
      %p230 = scmp.eq.s32.totalorder %s37, 0
      %p231 = por %p229, %p230
      %p232 = scmp.ne.s32.totalorder %s220, %s221
      %p233 = scmp.eq.s32.totalorder %s38, 1
      %p234 = por %p232, %p233
      %p236 = scmp.ne.s32.totalorder %s221, %s235
      %p237 = scmp.eq.s32.totalorder %s38, 0
      %p238 = por %p236, %p237
      %s240 = sadd.s32 %s239, 1
      %p243 = scmp.eq.s32.totalorder %s32, 1
      %p244 = scmp.ne.s32.totalorder %s239, %s241
      %p245 = scmp.eq.s32.totalorder %s32, 0
      %p246 = por %p244, %p245
      %p247 = scmp.ne.s32.totalorder %s239, %s241
      %p248 = scmp.eq.s32.totalorder %s37, 1
      %p249 = por %p247, %p248
      %p250 = scmp.ne.s32.totalorder %s241, %s242
      %p251 = scmp.eq.s32.totalorder %s37, 0
      %p252 = por %p250, %p251
      %p253 = scmp.ne.s32.totalorder %s241, %s242
      %p254 = scmp.eq.s32.totalorder %s38, 1
      %p255 = por %p253, %p254
      %p257 = scmp.ne.s32.totalorder %s242, %s256
      %p258 = scmp.eq.s32.totalorder %s38, 0
      %p259 = por %p257, %p258
      %s261 = sadd.s32 %s260, 1
      %p264 = scmp.eq.s32.totalorder %s32, 1
      %p265 = scmp.ne.s32.totalorder %s260, %s262
      %p266 = scmp.eq.s32.totalorder %s32, 0
      %p267 = por %p265, %p266
      %p268 = scmp.ne.s32.totalorder %s260, %s262
      %p269 = scmp.eq.s32.totalorder %s37, 1
      %p270 = por %p268, %p269
      %p271 = scmp.ne.s32.totalorder %s262, %s263
      %p272 = scmp.eq.s32.totalorder %s37, 0
      %p273 = por %p271, %p272
      %p274 = scmp.ne.s32.totalorder %s262, %s263
      %p275 = scmp.eq.s32.totalorder %s38, 1
      %p276 = por %p274, %p275
      %p278 = scmp.ne.s32.totalorder %s263, %s277
      %p279 = scmp.eq.s32.totalorder %s38, 0
      %p280 = por %p278, %p279
      %s282 = sadd.s32 %s281, 1
      %p285 = scmp.eq.s32.totalorder %s32, 1
      %p286 = scmp.ne.s32.totalorder %s281, %s283
      %p287 = scmp.eq.s32.totalorder %s32, 0
      %p288 = por %p286, %p287
      %p289 = scmp.ne.s32.totalorder %s281, %s283
      %p290 = scmp.eq.s32.totalorder %s37, 1
      %p291 = por %p289, %p290
      %p292 = scmp.ne.s32.totalorder %s283, %s284
      %p293 = scmp.eq.s32.totalorder %s37, 0
      %p294 = por %p292, %p293
      %p295 = scmp.ne.s32.totalorder %s283, %s284
      %p296 = scmp.eq.s32.totalorder %s38, 1
      %p297 = por %p295, %p296
      %p299 = scmp.ne.s32.totalorder %s284, %s298
      %p300 = scmp.eq.s32.totalorder %s38, 0
      %p301 = por %p299, %p300
      %s303 = sadd.s32 %s302, 1
      %p306 = scmp.eq.s32.totalorder %s32, 1
      %p307 = scmp.ne.s32.totalorder %s302, %s304
      %p308 = scmp.eq.s32.totalorder %s32, 0
      %p309 = por %p307, %p308
      %p310 = scmp.ne.s32.totalorder %s302, %s304
      %p311 = scmp.eq.s32.totalorder %s37, 1
      %p312 = por %p310, %p311
      %p313 = scmp.ne.s32.totalorder %s304, %s305
      %p314 = scmp.eq.s32.totalorder %s37, 0
      %p315 = por %p313, %p314
      %p316 = scmp.ne.s32.totalorder %s304, %s305
      %p317 = scmp.eq.s32.totalorder %s38, 1
      %p318 = por %p316, %p317
      %p320 = scmp.ne.s32.totalorder %s305, %s319
      %p321 = scmp.eq.s32.totalorder %s38, 0
      %p322 = por %p320, %p321
      %s324 = sadd.s32 %s323, 1
      %p327 = scmp.eq.s32.totalorder %s32, 1
      %p328 = scmp.ne.s32.totalorder %s323, %s325
      %p329 = scmp.eq.s32.totalorder %s32, 0
      %p330 = por %p328, %p329
      %p331 = scmp.ne.s32.totalorder %s323, %s325
      %p332 = scmp.eq.s32.totalorder %s37, 1
      %p333 = por %p331, %p332
      %p334 = scmp.ne.s32.totalorder %s325, %s326
      %p335 = scmp.eq.s32.totalorder %s37, 0
      %p336 = por %p334, %p335
      %p337 = scmp.ne.s32.totalorder %s325, %s326
      %p338 = scmp.eq.s32.totalorder %s38, 1
      %p339 = por %p337, %p338
      %p341 = scmp.ne.s32.totalorder %s326, %s340
      %p342 = scmp.eq.s32.totalorder %s38, 0
      %p343 = por %p341, %p342
      %s345 = sadd.s32 %s344, 1
      %p348 = scmp.eq.s32.totalorder %s32, 1
      %p349 = scmp.ne.s32.totalorder %s344, %s346
      %p350 = scmp.eq.s32.totalorder %s32, 0
      %p351 = por %p349, %p350
      %p352 = scmp.ne.s32.totalorder %s344, %s346
      %p353 = scmp.eq.s32.totalorder %s37, 1
      %p354 = por %p352, %p353
      %p355 = scmp.ne.s32.totalorder %s346, %s347
      %p356 = scmp.eq.s32.totalorder %s37, 0
      %p357 = por %p355, %p356
      %p358 = scmp.ne.s32.totalorder %s346, %s347
      %p359 = scmp.eq.s32.totalorder %s38, 1
      %p360 = por %p358, %p359
      %p362 = scmp.ne.s32.totalorder %s347, %s361
      %p363 = scmp.eq.s32.totalorder %s38, 0
      %p364 = por %p362, %p363
      %s366 = sadd.s32 %s365, 1
      %p369 = scmp.eq.s32.totalorder %s32, 1
      %p370 = scmp.ne.s32.totalorder %s365, %s367
      %p371 = scmp.eq.s32.totalorder %s32, 0
      %p372 = por %p370, %p371
      %p373 = scmp.ne.s32.totalorder %s365, %s367
      %p374 = scmp.eq.s32.totalorder %s37, 1
      %p375 = por %p373, %p374
      %p376 = scmp.ne.s32.totalorder %s367, %s368
      %p377 = scmp.eq.s32.totalorder %s37, 0
      %p378 = por %p376, %p377
      %p379 = scmp.ne.s32.totalorder %s367, %s368
      %p380 = scmp.eq.s32.totalorder %s38, 1
      %p381 = por %p379, %p380
      %p383 = scmp.ne.s32.totalorder %s368, %s382
      %p384 = scmp.eq.s32.totalorder %s38, 0
      %p385 = por %p383, %p384
      %s387 = sadd.s32 %s386, 1
      %p390 = scmp.eq.s32.totalorder %s32, 1
      %p391 = scmp.ne.s32.totalorder %s386, %s388
      %p392 = scmp.eq.s32.totalorder %s32, 0
      %p393 = por %p391, %p392
      %p394 = scmp.ne.s32.totalorder %s386, %s388
      %p395 = scmp.eq.s32.totalorder %s37, 1
      %p396 = por %p394, %p395
      %p397 = scmp.ne.s32.totalorder %s388, %s389
      %p398 = scmp.eq.s32.totalorder %s37, 0
      %p399 = por %p397, %p398
      %p400 = scmp.ne.s32.totalorder %s388, %s389
      %p401 = scmp.eq.s32.totalorder %s38, 1
      %p402 = por %p400, %p401
      %p404 = scmp.ne.s32.totalorder %s389, %s403
      %p405 = scmp.eq.s32.totalorder %s38, 0
      %p406 = por %p404, %p405
      %s408 = sadd.s32 %s407, 1
      %p411 = scmp.eq.s32.totalorder %s32, 1
      %p412 = scmp.ne.s32.totalorder %s407, %s409
      %p413 = scmp.eq.s32.totalorder %s32, 0
      %p414 = por %p412, %p413
      %p415 = scmp.ne.s32.totalorder %s407, %s409
      %p416 = scmp.eq.s32.totalorder %s37, 1
      %p417 = por %p415, %p416
      %p418 = scmp.ne.s32.totalorder %s409, %s410
      %p419 = scmp.eq.s32.totalorder %s37, 0
      %p420 = por %p418, %p419
      %p421 = scmp.ne.s32.totalorder %s409, %s410
      %p422 = scmp.eq.s32.totalorder %s38, 1
      %p423 = por %p421, %p422
      %p425 = scmp.ne.s32.totalorder %s410, %s424
      %p426 = scmp.eq.s32.totalorder %s38, 0
      %p427 = por %p425, %p426
      %s428 = ssub.s32 %s32, %s39
      %p429 = scmp.eq.s32.totalorder %s428, 0
      %s431 = sadd.s32 %s430, 1
      %s432 = scalar_select %p429, %s430, %s431
      %p435 = pneg %p429
      %p436 = scmp.eq.s32.totalorder %s32, 1
      %p437 = por %p435, %p436
      %p438 = scmp.ne.s32.totalorder %s430, %s433
      %p439 = scmp.eq.s32.totalorder %s32, 0
      %p440 = por %p438, %p439
      %p441 = scmp.ne.s32.totalorder %s430, %s433
      %p442 = scmp.eq.s32.totalorder %s37, 1
      %p443 = por %p441, %p442
      %p444 = scmp.ne.s32.totalorder %s433, %s434
      %p445 = scmp.eq.s32.totalorder %s37, 0
      %p446 = por %p444, %p445
      %p447 = scmp.ne.s32.totalorder %s433, %s434
      %p448 = scmp.eq.s32.totalorder %s38, 1
      %p449 = por %p447, %p448
      %p451 = scmp.ne.s32.totalorder %s434, %s450
      %p452 = scmp.eq.s32.totalorder %s38, 0
      %p453 = por %p451, %p452
      %p454 = scmp.le.s32.totalorder 1, %s32
      %p455 = scmp.lt.s32.totalorder %s32, 3
      %p456 = pnand %p454, %p455
      %p457 = pneg %p456
      // Predicated region
      $region9: #{tpu_custom_call.1} parent=5 // pred_check
        _
      $region10: #{tpu_custom_call.1} parent=5 // pred_check_branch
        %459 = sbr.rel (%p456) target = $region12
      $region11: #{tpu_custom_call.1} parent=5 // pred_region
        %s460 = ssub.s32 %s32, 1
        // Predicated region
        $region13: #{tpu_custom_call.1} parent=11 // pred_check
          %p461 = pneg %p105
        $region14: #{tpu_custom_call.1} parent=11 // pred_check_branch
          %463 = sbr.rel (%p461) target = $region16
        $region15: #{tpu_custom_call.1} parent=11 // pred_region
          _
        $region16: #{tpu_custom_call.1} parent=11 // pred_fallthru
          _
        // Predicated region
        $region17: #{tpu_custom_call.1} parent=11 // pred_check
          %p464 = pneg %p126
        $region18: #{tpu_custom_call.1} parent=11 // pred_check_branch
          %466 = sbr.rel (%p464) target = $region20
        $region19: #{tpu_custom_call.1} parent=11 // pred_region
          _
        $region20: #{tpu_custom_call.1} parent=11 // pred_fallthru
          _
        // Predicated region
        $region21: #{tpu_custom_call.1} parent=11 // pred_check
          %p467 = pneg %p147
        $region22: #{tpu_custom_call.1} parent=11 // pred_check_branch
          %469 = sbr.rel (%p467) target = $region24
        $region23: #{tpu_custom_call.1} parent=11 // pred_region
          _
        $region24: #{tpu_custom_call.1} parent=11 // pred_fallthru
          _
        // Predicated region
        $region25: #{tpu_custom_call.1} parent=11 // pred_check
          %p470 = pneg %p168
        $region26: #{tpu_custom_call.1} parent=11 // pred_check_branch
          %472 = sbr.rel (%p470) target = $region28
        $region27: #{tpu_custom_call.1} parent=11 // pred_region
          _
        $region28: #{tpu_custom_call.1} parent=11 // pred_fallthru
          _
        // Predicated region
        $region29: #{tpu_custom_call.1} parent=11 // pred_check
          %p473 = pneg %p189
        $region30: #{tpu_custom_call.1} parent=11 // pred_check_branch
          %475 = sbr.rel (%p473) target = $region32
        $region31: #{tpu_custom_call.1} parent=11 // pred_region
          %477 = vsyncadd [#allocation8], 0
          %s478 = sshll.u32 %s6, 4
          %s479 = int_to_ptr.hbm [resolvable:$true] %s478
          %s480 = sshll.u32 [#allocation7], 4
          %s481 = int_to_ptr.vmem [resolvable:$true] %s480
          %486 = dma.hbm_to_vmem [thread:$0]  %s479, 256, %s481, [#allocation8], 64, 64, 4
        $region32: #{tpu_custom_call.1} parent=11 // pred_fallthru
          _
        // Predicated region
        $region33: #{tpu_custom_call.1} parent=11 // pred_check
          %p487 = pneg %p210
        $region34: #{tpu_custom_call.1} parent=11 // pred_check_branch
          %489 = sbr.rel (%p487) target = $region36
        $region35: #{tpu_custom_call.1} parent=11 // pred_region
          _
        $region36: #{tpu_custom_call.1} parent=11 // pred_fallthru
          _
        // Predicated region
        $region37: #{tpu_custom_call.1} parent=11 // pred_check
          %p490 = pneg %p231
        $region38: #{tpu_custom_call.1} parent=11 // pred_check_branch
          %492 = sbr.rel (%p490) target = $region40
        $region39: #{tpu_custom_call.1} parent=11 // pred_region
          %494 = vsyncadd [#allocation8], 0
          %s495 = sshll.u32 %s8, 4
          %s496 = int_to_ptr.hbm [resolvable:$true] %s495
          %s497 = sshll.u32 [#allocation9], 4
          %s498 = int_to_ptr.vmem [resolvable:$true] %s497
          %503 = dma.hbm_to_vmem [thread:$0]  %s496, 256, %s498, [#allocation8], 64, 64, 4
        $region40: #{tpu_custom_call.1} parent=11 // pred_fallthru
          _
        // Predicated region
        $region41: #{tpu_custom_call.1} parent=11 // pred_check
          %p504 = pneg %p252
        $region42: #{tpu_custom_call.1} parent=11 // pred_check_branch
          %506 = sbr.rel (%p504) target = $region44
        $region43: #{tpu_custom_call.1} parent=11 // pred_region
          _
        $region44: #{tpu_custom_call.1} parent=11 // pred_fallthru
          _
        // Predicated region
        $region45: #{tpu_custom_call.1} parent=11 // pred_check
          %p507 = pneg %p273
        $region46: #{tpu_custom_call.1} parent=11 // pred_check_branch
          %509 = sbr.rel (%p507) target = $region48
        $region47: #{tpu_custom_call.1} parent=11 // pred_region
          _
        $region48: #{tpu_custom_call.1} parent=11 // pred_fallthru
          _
        // Predicated region
        $region49: #{tpu_custom_call.1} parent=11 // pred_check
          %p510 = pneg %p294
        $region50: #{tpu_custom_call.1} parent=11 // pred_check_branch
          %512 = sbr.rel (%p510) target = $region52
        $region51: #{tpu_custom_call.1} parent=11 // pred_region
          _
        $region52: #{tpu_custom_call.1} parent=11 // pred_fallthru
          _
        // Predicated region
        $region53: #{tpu_custom_call.1} parent=11 // pred_check
          %p513 = pneg %p315
        $region54: #{tpu_custom_call.1} parent=11 // pred_check_branch
          %515 = sbr.rel (%p513) target = $region56
        $region55: #{tpu_custom_call.1} parent=11 // pred_region
          %517 = vsyncadd [#allocation11], 0
          %s518 = sshll.u32 %s12, 4
          %s519 = int_to_ptr.hbm [resolvable:$true] %s518
          %s520 = sshll.u32 [#allocation10], 4
          %s521 = int_to_ptr.vmem [resolvable:$true] %s520
          %526 = dma.hbm_to_vmem [thread:$0]  %s519, 256, %s521, [#allocation11], 64, 64, 4
        $region56: #{tpu_custom_call.1} parent=11 // pred_fallthru
          _
        // Predicated region
        $region57: #{tpu_custom_call.1} parent=11 // pred_check
          %p527 = pneg %p336
        $region58: #{tpu_custom_call.1} parent=11 // pred_check_branch
          %529 = sbr.rel (%p527) target = $region60
        $region59: #{tpu_custom_call.1} parent=11 // pred_region
          _
        $region60: #{tpu_custom_call.1} parent=11 // pred_fallthru
          _
        // Predicated region
        $region61: #{tpu_custom_call.1} parent=11 // pred_check
          %p530 = pneg %p357
        $region62: #{tpu_custom_call.1} parent=11 // pred_check_branch
          %532 = sbr.rel (%p530) target = $region64
        $region63: #{tpu_custom_call.1} parent=11 // pred_region
          _
        $region64: #{tpu_custom_call.1} parent=11 // pred_fallthru
          _
        // Predicated region
        $region65: #{tpu_custom_call.1} parent=11 // pred_check
          %p533 = pneg %p378
        $region66: #{tpu_custom_call.1} parent=11 // pred_check_branch
          %535 = sbr.rel (%p533) target = $region68
        $region67: #{tpu_custom_call.1} parent=11 // pred_region
          _
        $region68: #{tpu_custom_call.1} parent=11 // pred_fallthru
          _
        // Predicated region
        $region69: #{tpu_custom_call.1} parent=11 // pred_check
          %p536 = pneg %p399
        $region70: #{tpu_custom_call.1} parent=11 // pred_check_branch
          %538 = sbr.rel (%p536) target = $region72
        $region71: #{tpu_custom_call.1} parent=11 // pred_region
          _
        $region72: #{tpu_custom_call.1} parent=11 // pred_fallthru
          _
        // Predicated region
        $region73: #{tpu_custom_call.1} parent=11 // pred_check
          %p539 = pneg %p420
        $region74: #{tpu_custom_call.1} parent=11 // pred_check_branch
          %541 = sbr.rel (%p539) target = $region76
        $region75: #{tpu_custom_call.1} parent=11 // pred_region
          _
        $region76: #{tpu_custom_call.1} parent=11 // pred_fallthru
          _
      $region12: #{tpu_custom_call.1} parent=5 // pred_fallthru
        _
      %p542 = scmp.lt.s32.totalorder %s32, 2
      // Predicated region
      $region77: #{tpu_custom_call.1} parent=5 // pred_check
        %p543 = pneg %p542
      $region78: #{tpu_custom_call.1} parent=5 // pred_check_branch
        %545 = sbr.rel (%p543) target = $region80
      $region79: #{tpu_custom_call.1} parent=5 // pred_region
        // Predicated region
        $region81: #{tpu_custom_call.1} parent=79 // pred_check
          %p546 = pneg %p52
        $region82: #{tpu_custom_call.1} parent=79 // pred_check_branch
          %548 = sbr.rel (%p546) target = $region84
        $region83: #{tpu_custom_call.1} parent=79 // pred_region
          %p549 = scmp.lt.s32.totalorder %s32, 1
          %s550 = scalar_select %p549, %s32, 1
          %s551 = smul.addr %s550, 8
          %s552 = scalar_lea.vmem %s0, %s551
        $region84: #{tpu_custom_call.1} parent=79 // pred_fallthru
          _
        // Predicated region
        $region85: #{tpu_custom_call.1} parent=79 // pred_check
          %p553 = pneg %p78
        $region86: #{tpu_custom_call.1} parent=79 // pred_check_branch
          %555 = sbr.rel (%p553) target = $region88
        $region87: #{tpu_custom_call.1} parent=79 // pred_region
          %s556 = sand.u32 %s68, 1
          %s557 = scalar_lea.sflag [#allocation5], %s556
          %s558 = sand.u32 %s68, 1
          %s559 = scalar_lea.vmem [#allocation4], %s558
          %561 = vsyncadd %s557, 0
          %s562 = scalar_lea.hbm %s1, %s32
          %s564 = sshll.u32 %s562, 4
          %s565 = int_to_ptr.hbm [resolvable:$true] %s564
          %s566 = sshll.u32 %s559, 4
          %s567 = int_to_ptr.vmem [resolvable:$true] %s566
          %569 = dma.hbm_to_vmem [thread:$0]  %s565, 16, %s567, %s557
        $region88: #{tpu_custom_call.1} parent=79 // pred_fallthru
          _
      $region80: #{tpu_custom_call.1} parent=5 // pred_fallthru
        _
      %p570 = scmp.le.s32.totalorder 1, %s32
      %p571 = scmp.lt.s32.totalorder %s32, 3
      %p572 = pnand %p570, %p571
      %p573 = pneg %p572
      // Predicated region
      $region89: #{tpu_custom_call.1} parent=5 // pred_check
        _
      $region90: #{tpu_custom_call.1} parent=5 // pred_check_branch
        %575 = sbr.rel (%p572) target = $region92
      $region91: #{tpu_custom_call.1} parent=5 // pred_region
        %s576 = ssub.s32 %s32, 1
        %s577 = sand.u32 %s71, 1
        %s578 = scalar_lea.sflag [#allocation5], %s577
        %s579 = sand.u32 %s71, 1
        %s580 = scalar_lea.vmem [#allocation4], %s579
        // Predicated region
        $region93: #{tpu_custom_call.1} parent=91 // pred_check
          %p581 = pneg %p84
        $region94: #{tpu_custom_call.1} parent=91 // pred_check_branch
          %583 = sbr.rel (%p581) target = $region96
        $region95: #{tpu_custom_call.1} parent=91 // pred_region
          %585 = dma.done %s578, 16
        $region96: #{tpu_custom_call.1} parent=91 // pred_fallthru
          _
        // Predicated region
        $region97: #{tpu_custom_call.1} parent=91 // pred_check
          %p586 = pneg %p189
        $region98: #{tpu_custom_call.1} parent=91 // pred_check_branch
          %588 = sbr.rel (%p586) target = $region100
        $region99: #{tpu_custom_call.1} parent=91 // pred_region
          %590 = dma.done [#allocation8], 256
        $region100: #{tpu_custom_call.1} parent=91 // pred_fallthru
          _
        // Predicated region
        $region101: #{tpu_custom_call.1} parent=91 // pred_check
          %p591 = pneg %p231
        $region102: #{tpu_custom_call.1} parent=91 // pred_check_branch
          %593 = sbr.rel (%p591) target = $region104
        $region103: #{tpu_custom_call.1} parent=91 // pred_region
          %595 = dma.done [#allocation8], 256
        $region104: #{tpu_custom_call.1} parent=91 // pred_fallthru
          _
        // Predicated region
        $region105: #{tpu_custom_call.1} parent=91 // pred_check
          %p596 = pneg %p315
        $region106: #{tpu_custom_call.1} parent=91 // pred_check_branch
          %598 = sbr.rel (%p596) target = $region108
        $region107: #{tpu_custom_call.1} parent=91 // pred_region
          %600 = dma.done [#allocation11], 256
        $region108: #{tpu_custom_call.1} parent=91 // pred_fallthru
          _
        %p601 = scmp.lt.s32.totalorder %s37, 1
        %s602 = scalar_select %p601, %s37, 1
        %s603 = smul.addr %s602, 8
        %s604 = scalar_lea.vmem %s0, %s603
        %p605 = pneg %p58
        %p606 = pneg %p55
        %s607 = sand.u32 %s71, 1
        %s608 = scalar_lea.sflag [#allocation5], %s607
        %s609 = sand.u32 %s71, 1
        %s610 = scalar_lea.vmem [#allocation4], %s609
        %p611 = pneg %p84
        %p612 = pneg %p81
        %p613 = pneg %p105
        %p614 = pneg %p102
        %p615 = pneg %p126
        %p616 = pneg %p123
        %p617 = pneg %p147
        %p618 = pneg %p144
        %p619 = pneg %p168
        %p620 = pneg %p165
        %p621 = pneg %p189
        %p622 = pneg %p186
        %p623 = pneg %p210
        %p624 = pneg %p207
        %p625 = pneg %p231
        %p626 = pneg %p228
        %p627 = pneg %p252
        %p628 = pneg %p249
        %p629 = pneg %p273
        %p630 = pneg %p270
        %p631 = pneg %p294
        %p632 = pneg %p291
        %p633 = pneg %p315
        %p634 = pneg %p312
        %p635 = pneg %p336
        %p636 = pneg %p333
        %p637 = pneg %p357
        %p638 = pneg %p354
        %p639 = pneg %p378
        %p640 = pneg %p375
        %p641 = pneg %p399
        %p642 = pneg %p396
        %p643 = pneg %p420
        %p644 = pneg %p417
        %p645 = pneg %p446
        %p646 = pneg %p443
        %s647 = sand.u32 %s433, 1
        %s648 = scalar_lea.sflag [#allocation6], %s647
        %s649 = sand.u32 %s433, 1
        %s650 = smul.addr %s649, 8
        %s651 = scalar_lea.vmem [#allocation12], %s650
        %p652 = scmp.lt.s32.totalorder %s37, 1
        %s653 = scalar_select %p652, %s37, 1
        %s654 = smul.addr %s653, 8
        %s655 = scalar_lea.vmem %s0, %s654
        %v657 = vld [vmem:[%s655] sm:$0xff]
        %v658 = vld [vmem:[%s580] sm:$0x1]
        %v659 = vpack.c.bf16 %v657, %v657
        %v660 = vld [vmem:[%s2] sm:$0xf]
        %v661 = vld [vmem:[%s2 + $0x4] sm:$0xf]
        %v662 = vld [vmem:[%s2 + $0x8] sm:$0xf]
        %v663 = vld [vmem:[%s2 + $0xc] sm:$0xf]
        %v664 = vld [vmem:[%s3] sm:$0x1]
        %v666 = vperm.slane %v664, 0
        %v672 = vunpack.c.l.b16 %v660
        %v673 = vunpack.c.l.b16 %v661
        %v674 = vunpack.c.l.b16 %v662
        %v675 = vunpack.c.l.b16 %v663
        %v676 = vpack.c.b16 %v673, %v672
        %v677 = vpack.c.b16 %v675, %v674
        %vm680 = vcmask 261120
        %v682 = vsel %vm680, %v659, 0
        %684 = vmatpush.bf16.msra.mxu0 0
        %685 = vmatpush.bf16.msra.mxu0 0
        %686 = vmatpush.bf16.msra.mxu0 0
        %687 = vmatpush.bf16.msra.mxu0 0
        %688 = vmatpush.bf16.msra.mxu0 0
        %689 = vmatpush.bf16.msra.mxu0 0
        %690 = vmatpush.bf16.msra.mxu0 %v677
        %691 = vmatpush.bf16.msra.mxu0 %v676
        %692 = vmatmul.bf16.gmra.mxu0 %v682
        %v693 = vpop.f32.mrf.mxu0
        %v694 = vadd.f32 %v666, %v693
        %v695 = vpop.f32.mrf.mxu0
        %696 = vdwg.mxu0
        %v697 = vld [vmem:[%s4] sm:$0xf]
        %v698 = vld [vmem:[%s4 + $0x4] sm:$0xf]
        %v699 = vld [vmem:[%s4 + $0x8] sm:$0xf]
        %v700 = vld [vmem:[%s4 + $0xc] sm:$0xf]
        %v701 = vld [vmem:[%s5] sm:$0x1]
        %v703 = vperm.slane %v701, 0
        %v709 = vunpack.c.l.b16 %v697
        %v710 = vunpack.c.l.b16 %v698
        %v711 = vunpack.c.l.b16 %v699
        %v712 = vunpack.c.l.b16 %v700
        %v713 = vpack.c.b16 %v710, %v709
        %v714 = vpack.c.b16 %v712, %v711
        %717 = vmatpush.bf16.msra.mxu0 0
        %718 = vmatpush.bf16.msra.mxu0 0
        %719 = vmatpush.bf16.msra.mxu0 0
        %720 = vmatpush.bf16.msra.mxu0 0
        %721 = vmatpush.bf16.msra.mxu0 0
        %722 = vmatpush.bf16.msra.mxu0 0
        %723 = vmatpush.bf16.msra.mxu0 %v714
        %724 = vmatpush.bf16.msra.mxu0 %v713
        %725 = vmatmul.bf16.gmra.mxu0 %v682
        %v726 = vpop.f32.mrf.mxu0
        %v727 = vadd.f32 %v703, %v726
        %v728 = vpop.f32.mrf.mxu0
        %729 = vdwg.mxu0
        %v730 = vld [vmem:[#allocation7] sm:$0xf]
        %v731 = vld [vmem:[#allocation7 + $0x4] sm:$0xf]
        %v732 = vld [vmem:[#allocation7 + $0x8] sm:$0xf]
        %v733 = vld [vmem:[#allocation7 + $0xc] sm:$0xf]
        %v734 = vld [vmem:[%s7] sm:$0x1]
        %v736 = vperm.slane %v734, 0
        %v742 = vunpack.c.l.b16 %v730
        %v743 = vunpack.c.l.b16 %v731
        %v744 = vunpack.c.l.b16 %v732
        %v745 = vunpack.c.l.b16 %v733
        %v746 = vpack.c.b16 %v743, %v742
        %v747 = vpack.c.b16 %v745, %v744
        %750 = vmatpush.bf16.msra.mxu0 0
        %751 = vmatpush.bf16.msra.mxu0 0
        %752 = vmatpush.bf16.msra.mxu0 0
        %753 = vmatpush.bf16.msra.mxu0 0
        %754 = vmatpush.bf16.msra.mxu0 0
        %755 = vmatpush.bf16.msra.mxu0 0
        %756 = vmatpush.bf16.msra.mxu0 %v747
        %757 = vmatpush.bf16.msra.mxu0 %v746
        %758 = vmatmul.bf16.gmra.mxu0 %v682
        %v759 = vpop.f32.mrf.mxu0
        %v760 = vadd.f32 %v736, %v759
        %v761 = vpop.f32.mrf.mxu0
        %762 = vdwg.mxu0
        %v763 = vmul.f32 %v694, 0.35355338
        %v764 = vpack.c.bf16 %v763, %v763
        %766 = vrot.lane.b32.xlu0 %v764, 120
        %v767 = vpop.permute.xlu0 %766
        %768 = vrot.lane.b32.xlu0 %v764, 112
        %v769 = vpop.permute.xlu0 %768
        %770 = vrot.lane.b32.xlu0 %v764, 104
        %v771 = vpop.permute.xlu0 %770
        %v774 = vpack.i.b16 %v767, %v764
        %v775 = vshrl.u32 %v764, 16
        %v776 = vshrl.u32 %v767, 16
        %v777 = vpack.i.b16 %v776, %v775
        %v780 = vpack.i.b16 %v771, %v769
        %v781 = vshrl.u32 %v769, 16
        %v782 = vshrl.u32 %v771, 16
        %v783 = vpack.i.b16 %v782, %v781
        %v786 = vunpack.c.l.s4 1983009808
        %v787 = vunpack.c.0.s8 %v786
        %v788 = vperm.slane %v774, %v787
        %v791 = vunpack.c.l.s4 1983009808
        %v792 = vunpack.c.0.s8 %v791
        %v793 = vperm.slane %v780, %v792
        %v794 = vrot.slane %v793, 4
        %vm795 = vcmask 1047556
        %v796 = vsel %vm795, %v794, %v788
        %v797 = vrot.slane %v788, 4
        %v798 = vsel %vm795, %v793, %v797
        %v800 = vunpack.c.l.s4 1934713408
        %v801 = vunpack.c.0.s8 %v800
        %v802 = vperm.slane %v796, %v801
        %v804 = vunpack.c.l.s4 1934713408
        %v805 = vunpack.c.0.s8 %v804
        %v806 = vperm.slane %v798, %v805
        %v807 = vrot.slane %v802, 4
        %v808 = vsel %vm795, 0, %v807
        %v809 = vrot.slane %v806, 4
        %v810 = vsel %vm795, 0, %v809
        %v813 = vunpack.c.l.s4 1983009808
        %v814 = vunpack.c.0.s8 %v813
        %v815 = vperm.slane %v777, %v814
        %v818 = vunpack.c.l.s4 1983009808
        %v819 = vunpack.c.0.s8 %v818
        %v820 = vperm.slane %v783, %v819
        %v821 = vrot.slane %v820, 4
        %v822 = vsel %vm795, %v821, %v815
        %v823 = vrot.slane %v815, 4
        %v824 = vsel %vm795, %v820, %v823
        %v826 = vunpack.c.l.s4 1934713408
        %v827 = vunpack.c.0.s8 %v826
        %v828 = vperm.slane %v822, %v827
        %v830 = vunpack.c.l.s4 1934713408
        %v831 = vunpack.c.0.s8 %v830
        %v832 = vperm.slane %v824, %v831
        %v833 = vrot.slane %v828, 4
        %v834 = vsel %vm795, 0, %v833
        %v835 = vrot.slane %v832, 4
        %v836 = vsel %vm795, 0, %v835
        %v837 = vsel %vm795, %v809, %v802
        %v839 = vunpack.c.l.s4 1983009808
        %v840 = vunpack.c.0.s8 %v839
        %v841 = vperm.slane %v837, %v840
        %v842 = vrot.slane %v810, 4
        %v843 = vsel %vm795, %v842, %v808
        %v845 = vunpack.c.l.s4 1983009808
        %v846 = vunpack.c.0.s8 %v845
        %v847 = vperm.slane %v843, %v846
        %v848 = vrot.slane %v847, 4
        %v849 = vsel %vm795, %v848, %v841
        %v851 = vunpack.c.l.s4 1934713408
        %v852 = vunpack.c.0.s8 %v851
        %v853 = vperm.slane %v849, %v852
        %v854 = vrot.slane %v853, 4
        %v855 = vsel %vm795, 0, %v854
        %v856 = vsel %vm795, %v835, %v828
        %v858 = vunpack.c.l.s4 1983009808
        %v859 = vunpack.c.0.s8 %v858
        %v860 = vperm.slane %v856, %v859
        %v861 = vrot.slane %v836, 4
        %v862 = vsel %vm795, %v861, %v834
        %v864 = vunpack.c.l.s4 1983009808
        %v865 = vunpack.c.0.s8 %v864
        %v866 = vperm.slane %v862, %v865
        %v867 = vrot.slane %v866, 4
        %v868 = vsel %vm795, %v867, %v860
        %v870 = vunpack.c.l.s4 1934713408
        %v871 = vunpack.c.0.s8 %v870
        %v872 = vperm.slane %v868, %v871
        %v873 = vrot.slane %v872, 4
        %v874 = vsel %vm795, 0, %v873
        %v877 = vpack.i.b16 %v872, %v853
        %v879 = vshrl.u32 %v853, 16
        %v880 = vshrl.u32 %v872, 16
        %v881 = vpack.i.b16 %v880, %v879
        %v885 = vpack.i.b16 %v874, %v855
        %v887 = vshrl.u32 %v855, 16
        %v888 = vshrl.u32 %v874, 16
        %v889 = vpack.i.b16 %v888, %v887
        %vm891 = vcmask 60416
        %892 = vst.msk [vmem:[#allocation2] sm:$0xf] %vm891, %v877
        %893 = vst.msk [vmem:[#allocation2 + $0x4] sm:$0xf] %vm891, %v881
        %894 = vst.msk [vmem:[#allocation2 + $0x8] sm:$0xf] %vm891, %v885
        %895 = vst.msk [vmem:[#allocation2 + $0xc] sm:$0xf] %vm891, %v889
        %v896 = vpack.c.bf16 %v727, %v727
        %898 = vrot.lane.b32.xlu0 %v896, 120
        %v899 = vpop.permute.xlu0 %898
        %900 = vrot.lane.b32.xlu0 %v896, 112
        %v901 = vpop.permute.xlu0 %900
        %902 = vrot.lane.b32.xlu0 %v896, 104
        %v903 = vpop.permute.xlu0 %902
        %v906 = vpack.i.b16 %v899, %v896
        %v907 = vshrl.u32 %v896, 16
        %v908 = vshrl.u32 %v899, 16
        %v909 = vpack.i.b16 %v908, %v907
        %v912 = vpack.i.b16 %v903, %v901
        %v913 = vshrl.u32 %v901, 16
        %v914 = vshrl.u32 %v903, 16
        %v915 = vpack.i.b16 %v914, %v913
        %v918 = vunpack.c.l.s4 1983009808
        %v919 = vunpack.c.0.s8 %v918
        %v920 = vperm.slane %v906, %v919
        %v923 = vunpack.c.l.s4 1983009808
        %v924 = vunpack.c.0.s8 %v923
        %v925 = vperm.slane %v912, %v924
        %v926 = vrot.slane %v925, 4
        %v927 = vsel %vm795, %v926, %v920
        %v928 = vrot.slane %v920, 4
        %v929 = vsel %vm795, %v925, %v928
        %v931 = vunpack.c.l.s4 1934713408
        %v932 = vunpack.c.0.s8 %v931
        %v933 = vperm.slane %v927, %v932
        %v935 = vunpack.c.l.s4 1934713408
        %v936 = vunpack.c.0.s8 %v935
        %v937 = vperm.slane %v929, %v936
        %v938 = vrot.slane %v933, 4
        %v939 = vsel %vm795, 0, %v938
        %v940 = vrot.slane %v937, 4
        %v941 = vsel %vm795, 0, %v940
        %v944 = vunpack.c.l.s4 1983009808
        %v945 = vunpack.c.0.s8 %v944
        %v946 = vperm.slane %v909, %v945
        %v949 = vunpack.c.l.s4 1983009808
        %v950 = vunpack.c.0.s8 %v949
        %v951 = vperm.slane %v915, %v950
        %v952 = vrot.slane %v951, 4
        %v953 = vsel %vm795, %v952, %v946
        %v954 = vrot.slane %v946, 4
        %v955 = vsel %vm795, %v951, %v954
        %v957 = vunpack.c.l.s4 1934713408
        %v958 = vunpack.c.0.s8 %v957
        %v959 = vperm.slane %v953, %v958
        %v961 = vunpack.c.l.s4 1934713408
        %v962 = vunpack.c.0.s8 %v961
        %v963 = vperm.slane %v955, %v962
        %v964 = vrot.slane %v959, 4
        %v965 = vsel %vm795, 0, %v964
        %v966 = vrot.slane %v963, 4
        %v967 = vsel %vm795, 0, %v966
        %v968 = vsel %vm795, %v940, %v933
        %v970 = vunpack.c.l.s4 1983009808
        %v971 = vunpack.c.0.s8 %v970
        %v972 = vperm.slane %v968, %v971
        %v973 = vrot.slane %v941, 4
        %v974 = vsel %vm795, %v973, %v939
        %v976 = vunpack.c.l.s4 1983009808
        %v977 = vunpack.c.0.s8 %v976
        %v978 = vperm.slane %v974, %v977
        %v979 = vrot.slane %v978, 4
        %v980 = vsel %vm795, %v979, %v972
        %v982 = vunpack.c.l.s4 1934713408
        %v983 = vunpack.c.0.s8 %v982
        %v984 = vperm.slane %v980, %v983
        %v985 = vrot.slane %v984, 4
        %v986 = vsel %vm795, 0, %v985
        %v987 = vsel %vm795, %v966, %v959
        %v989 = vunpack.c.l.s4 1983009808
        %v990 = vunpack.c.0.s8 %v989
        %v991 = vperm.slane %v987, %v990
        %v992 = vrot.slane %v967, 4
        %v993 = vsel %vm795, %v992, %v965
        %v995 = vunpack.c.l.s4 1983009808
        %v996 = vunpack.c.0.s8 %v995
        %v997 = vperm.slane %v993, %v996
        %v998 = vrot.slane %v997, 4
        %v999 = vsel %vm795, %v998, %v991
        %v1001 = vunpack.c.l.s4 1934713408
        %v1002 = vunpack.c.0.s8 %v1001
        %v1003 = vperm.slane %v999, %v1002
        %v1004 = vrot.slane %v1003, 4
        %v1005 = vsel %vm795, 0, %v1004
        %v1008 = vpack.i.b16 %v1003, %v984
        %v1009 = vshrl.u32 %v984, 16
        %v1010 = vshrl.u32 %v1003, 16
        %v1011 = vpack.i.b16 %v1010, %v1009
        %v1014 = vpack.i.b16 %v1005, %v986
        %v1015 = vshrl.u32 %v986, 16
        %v1016 = vshrl.u32 %v1005, 16
        %v1017 = vpack.i.b16 %v1016, %v1015
        %v1018 = vpack.c.bf16 %v760, %v760
        %1020 = vrot.lane.b32.xlu0 %v1018, 120
        %v1021 = vpop.permute.xlu0 %1020
        %1022 = vrot.lane.b32.xlu0 %v1018, 112
        %v1023 = vpop.permute.xlu0 %1022
        %1024 = vrot.lane.b32.xlu0 %v1018, 104
        %v1025 = vpop.permute.xlu0 %1024
        %v1028 = vpack.i.b16 %v1021, %v1018
        %v1029 = vshrl.u32 %v1018, 16
        %v1030 = vshrl.u32 %v1021, 16
        %v1031 = vpack.i.b16 %v1030, %v1029
        %v1034 = vpack.i.b16 %v1025, %v1023
        %v1035 = vshrl.u32 %v1023, 16
        %v1036 = vshrl.u32 %v1025, 16
        %v1037 = vpack.i.b16 %v1036, %v1035
        %v1040 = vunpack.c.l.s4 1983009808
        %v1041 = vunpack.c.0.s8 %v1040
        %v1042 = vperm.slane %v1028, %v1041
        %v1045 = vunpack.c.l.s4 1983009808
        %v1046 = vunpack.c.0.s8 %v1045
        %v1047 = vperm.slane %v1034, %v1046
        %v1048 = vrot.slane %v1047, 4
        %v1049 = vsel %vm795, %v1048, %v1042
        %v1050 = vrot.slane %v1042, 4
        %v1051 = vsel %vm795, %v1047, %v1050
        %v1053 = vunpack.c.l.s4 1934713408
        %v1054 = vunpack.c.0.s8 %v1053
        %v1055 = vperm.slane %v1049, %v1054
        %v1057 = vunpack.c.l.s4 1934713408
        %v1058 = vunpack.c.0.s8 %v1057
        %v1059 = vperm.slane %v1051, %v1058
        %v1060 = vrot.slane %v1055, 4
        %v1061 = vsel %vm795, 0, %v1060
        %v1062 = vrot.slane %v1059, 4
        %v1063 = vsel %vm795, 0, %v1062
        %v1066 = vunpack.c.l.s4 1983009808
        %v1067 = vunpack.c.0.s8 %v1066
        %v1068 = vperm.slane %v1031, %v1067
        %v1071 = vunpack.c.l.s4 1983009808
        %v1072 = vunpack.c.0.s8 %v1071
        %v1073 = vperm.slane %v1037, %v1072
        %v1074 = vrot.slane %v1073, 4
        %v1075 = vsel %vm795, %v1074, %v1068
        %v1076 = vrot.slane %v1068, 4
        %v1077 = vsel %vm795, %v1073, %v1076
        %v1079 = vunpack.c.l.s4 1934713408
        %v1080 = vunpack.c.0.s8 %v1079
        %v1081 = vperm.slane %v1075, %v1080
        %v1083 = vunpack.c.l.s4 1934713408
        %v1084 = vunpack.c.0.s8 %v1083
        %v1085 = vperm.slane %v1077, %v1084
        %v1086 = vrot.slane %v1081, 4
        %v1087 = vsel %vm795, 0, %v1086
        %v1088 = vrot.slane %v1085, 4
        %v1089 = vsel %vm795, 0, %v1088
        %v1090 = vsel %vm795, %v1062, %v1055
        %v1092 = vunpack.c.l.s4 1983009808
        %v1093 = vunpack.c.0.s8 %v1092
        %v1094 = vperm.slane %v1090, %v1093
        %v1095 = vrot.slane %v1063, 4
        %v1096 = vsel %vm795, %v1095, %v1061
        %v1098 = vunpack.c.l.s4 1983009808
        %v1099 = vunpack.c.0.s8 %v1098
        %v1100 = vperm.slane %v1096, %v1099
        %v1101 = vrot.slane %v1100, 4
        %v1102 = vsel %vm795, %v1101, %v1094
        %v1104 = vunpack.c.l.s4 1934713408
        %v1105 = vunpack.c.0.s8 %v1104
        %v1106 = vperm.slane %v1102, %v1105
        %v1107 = vrot.slane %v1106, 4
        %v1108 = vsel %vm795, 0, %v1107
        %v1109 = vsel %vm795, %v1088, %v1081
        %v1111 = vunpack.c.l.s4 1983009808
        %v1112 = vunpack.c.0.s8 %v1111
        %v1113 = vperm.slane %v1109, %v1112
        %v1114 = vrot.slane %v1089, 4
        %v1115 = vsel %vm795, %v1114, %v1087
        %v1117 = vunpack.c.l.s4 1983009808
        %v1118 = vunpack.c.0.s8 %v1117
        %v1119 = vperm.slane %v1115, %v1118
        %v1120 = vrot.slane %v1119, 4
        %v1121 = vsel %vm795, %v1120, %v1113
        %v1123 = vunpack.c.l.s4 1934713408
        %v1124 = vunpack.c.0.s8 %v1123
        %v1125 = vperm.slane %v1121, %v1124
        %v1126 = vrot.slane %v1125, 4
        %v1127 = vsel %vm795, 0, %v1126
        %v1130 = vpack.i.b16 %v1125, %v1106
        %v1131 = vshrl.u32 %v1106, 16
        %v1132 = vshrl.u32 %v1125, 16
        %v1133 = vpack.i.b16 %v1132, %v1131
        %v1136 = vpack.i.b16 %v1127, %v1108
        %v1137 = vshrl.u32 %v1108, 16
        %v1138 = vshrl.u32 %v1127, 16
        %v1139 = vpack.i.b16 %v1138, %v1137
        %v1140 = vld [vmem:[#allocation9] sm:$0xf]
        %v1141 = vld [vmem:[#allocation9 + $0x4] sm:$0xf]
        %v1142 = vld [vmem:[#allocation9 + $0x8] sm:$0xf]
        %v1143 = vld [vmem:[#allocation9 + $0xc] sm:$0xf]
        %v1144 = vld [vmem:[%s9] sm:$0x1]
        %v1145 = vld [vmem:[#allocation2] sm:$0xf]
        %v1146 = vld [vmem:[#allocation2 + $0x4] sm:$0xf]
        %v1147 = vld [vmem:[#allocation2 + $0x8] sm:$0xf]
        %v1148 = vld [vmem:[#allocation2 + $0xc] sm:$0xf]
        %v1150 = vperm.slane %v658, 0
        %vm1152 = vcmask 64512
        %v1154 = vsel %vm1152, %v1145, 0
        %v1157 = vsel %vm1152, %v1008, 0
        %1159 = vmatpush.bf16.xpose.msra.mxu0 0
        %1160 = vmatpush.bf16.xpose.msra.mxu0 0
        %1161 = vmatpush.bf16.xpose.msra.mxu0 0
        %1162 = vmatpush.bf16.xpose.msra.mxu0 0
        %1163 = vmatpush.bf16.xpose.msra.mxu0 0
        %1164 = vmatpush.bf16.xpose.msra.mxu0 0
        %1165 = vmatpush.bf16.xpose.msra.mxu0 0
        %1166 = vmatpush.bf16.xpose.msra.mxu0 %v1157
        %1167 = vmatmul.bf16.gmra.mxu0 %v1154
        %v1168 = vpop.f32.mrf.mxu0
        %v1169 = vadd.f32 %v1150, %v1168
        %v1170 = vpop.f32.mrf.mxu0
        %1171 = vdwg.mxu0
        %v1173 = vsel %vm1152, %v1146, 0
        %v1176 = vsel %vm1152, %v1011, 0
        %1178 = vmatpush.bf16.xpose.msra.mxu0 0
        %1179 = vmatpush.bf16.xpose.msra.mxu0 0
        %1180 = vmatpush.bf16.xpose.msra.mxu0 0
        %1181 = vmatpush.bf16.xpose.msra.mxu0 0
        %1182 = vmatpush.bf16.xpose.msra.mxu0 0
        %1183 = vmatpush.bf16.xpose.msra.mxu0 0
        %1184 = vmatpush.bf16.xpose.msra.mxu0 0
        %1185 = vmatpush.bf16.xpose.msra.mxu0 %v1176
        %1186 = vmatmul.bf16.gmra.mxu0 %v1173
        %v1187 = vpop.f32.mrf.mxu0
        %v1188 = vadd.f32 %v1150, %v1187
        %v1189 = vpop.f32.mrf.mxu0
        %1190 = vdwg.mxu0
        %v1192 = vsel %vm1152, %v1147, 0
        %v1195 = vsel %vm1152, %v1014, 0
        %1197 = vmatpush.bf16.xpose.msra.mxu0 0
        %1198 = vmatpush.bf16.xpose.msra.mxu0 0
        %1199 = vmatpush.bf16.xpose.msra.mxu0 0
        %1200 = vmatpush.bf16.xpose.msra.mxu0 0
        %1201 = vmatpush.bf16.xpose.msra.mxu0 0
        %1202 = vmatpush.bf16.xpose.msra.mxu0 0
        %1203 = vmatpush.bf16.xpose.msra.mxu0 0
        %1204 = vmatpush.bf16.xpose.msra.mxu0 %v1195
        %1205 = vmatmul.bf16.gmra.mxu0 %v1192
        %v1206 = vpop.f32.mrf.mxu0
        %v1207 = vadd.f32 %v1150, %v1206
        %v1208 = vpop.f32.mrf.mxu0
        %1209 = vdwg.mxu0
        %v1211 = vsel %vm1152, %v1148, 0
        %v1214 = vsel %vm1152, %v1017, 0
        %1216 = vmatpush.bf16.xpose.msra.mxu0 0
        %1217 = vmatpush.bf16.xpose.msra.mxu0 0
        %1218 = vmatpush.bf16.xpose.msra.mxu0 0
        %1219 = vmatpush.bf16.xpose.msra.mxu0 0
        %1220 = vmatpush.bf16.xpose.msra.mxu0 0
        %1221 = vmatpush.bf16.xpose.msra.mxu0 0
        %1222 = vmatpush.bf16.xpose.msra.mxu0 0
        %1223 = vmatpush.bf16.xpose.msra.mxu0 %v1214
        %1224 = vmatmul.bf16.gmra.mxu0 %v1211
        %v1225 = vpop.f32.mrf.mxu0
        %v1226 = vadd.f32 %v1150, %v1225
        %v1227 = vpop.f32.mrf.mxu0
        %1228 = vdwg.mxu0
        %v1229 = vsel %vm1152, %v1169, -inf
        %1230 = vmax.xlane.f32.xlu0 %v1229
        %v1231 = vpop.xlane.xlu0 %1230
        %v1232 = vsel %vm1152, %v1188, -inf
        %1233 = vmax.xlane.f32.xlu0 %v1232
        %v1234 = vpop.xlane.xlu0 %1233
        %v1235 = vsel %vm1152, %v1207, -inf
        %1236 = vmax.xlane.f32.xlu0 %v1235
        %v1237 = vpop.xlane.xlu0 %1236
        %v1238 = vsel %vm1152, %v1226, -inf
        %1239 = vmax.xlane.f32.xlu0 %v1238
        %v1240 = vpop.xlane.xlu0 %1239
        %v1241 = vsub.f32 %v1169, %v1231
        %v1242 = vsub.f32 %v1188, %v1234
        %v1243 = vsub.f32 %v1207, %v1237
        %v1244 = vsub.f32 %v1226, %v1240
        %v1245 = vmul.f32 %v1241, 1.442695
        %v1246 = vpow.pop %v1245
        %v1247 = vmul.f32 %v1242, 1.442695
        %v1248 = vpow.pop %v1247
        %v1249 = vmul.f32 %v1243, 1.442695
        %v1250 = vpow.pop %v1249
        %v1251 = vmul.f32 %v1244, 1.442695
        %v1252 = vpow.pop %v1251
        %v1253 = vsel %vm1152, %v1246, 0.0
        %1254 = vadd.xlane.f32.xlu0 %v1253
        %v1255 = vpop.xlane.xlu0 %1254
        %v1256 = vsel %vm1152, %v1248, 0.0
        %1257 = vadd.xlane.f32.xlu0 %v1256
        %v1258 = vpop.xlane.xlu0 %1257
        %v1259 = vsel %vm1152, %v1250, 0.0
        %1260 = vadd.xlane.f32.xlu0 %v1259
        %v1261 = vpop.xlane.xlu0 %1260
        %v1262 = vsel %vm1152, %v1252, 0.0
        %1263 = vadd.xlane.f32.xlu0 %v1262
        %v1264 = vpop.xlane.xlu0 %1263
        %v1265 = vpack.c.bf16 %v1246, %v1246
        %v1266 = vpack.c.bf16 %v1248, %v1248
        %v1267 = vpack.c.bf16 %v1250, %v1250
        %v1268 = vpack.c.bf16 %v1252, %v1252
        %v1270 = vsel %vm1152, %v1265, 0
        %vm1272 = vcmask 1043456
        %v1274 = vsel %vm1272, %v1130, 0
        %1276 = vmatpush.bf16.msra.mxu0 0
        %1277 = vmatpush.bf16.msra.mxu0 0
        %1278 = vmatpush.bf16.msra.mxu0 0
        %1279 = vmatpush.bf16.msra.mxu0 0
        %1280 = vmatpush.bf16.msra.mxu0 0
        %1281 = vmatpush.bf16.msra.mxu0 0
        %1282 = vmatpush.bf16.msra.mxu0 0
        %1283 = vmatpush.bf16.msra.mxu0 %v1274
        %1284 = vmatmul.bf16.gmra.mxu0 %v1270
        %v1285 = vpop.f32.mrf.mxu0
        %v1286 = vadd.f32 0.0, %v1285
        %v1287 = vpop.f32.mrf.mxu0
        %1288 = vdwg.mxu0
        %v1290 = vsel %vm1152, %v1266, 0
        %v1293 = vsel %vm1272, %v1133, 0
        %1295 = vmatpush.bf16.msra.mxu0 0
        %1296 = vmatpush.bf16.msra.mxu0 0
        %1297 = vmatpush.bf16.msra.mxu0 0
        %1298 = vmatpush.bf16.msra.mxu0 0
        %1299 = vmatpush.bf16.msra.mxu0 0
        %1300 = vmatpush.bf16.msra.mxu0 0
        %1301 = vmatpush.bf16.msra.mxu0 0
        %1302 = vmatpush.bf16.msra.mxu0 %v1293
        %1303 = vmatmul.bf16.gmra.mxu0 %v1290
        %v1304 = vpop.f32.mrf.mxu0
        %v1305 = vadd.f32 0.0, %v1304
        %v1306 = vpop.f32.mrf.mxu0
        %1307 = vdwg.mxu0
        %v1309 = vsel %vm1152, %v1267, 0
        %v1312 = vsel %vm1272, %v1136, 0
        %1314 = vmatpush.bf16.msra.mxu0 0
        %1315 = vmatpush.bf16.msra.mxu0 0
        %1316 = vmatpush.bf16.msra.mxu0 0
        %1317 = vmatpush.bf16.msra.mxu0 0
        %1318 = vmatpush.bf16.msra.mxu0 0
        %1319 = vmatpush.bf16.msra.mxu0 0
        %1320 = vmatpush.bf16.msra.mxu0 0
        %1321 = vmatpush.bf16.msra.mxu0 %v1312
        %1322 = vmatmul.bf16.gmra.mxu0 %v1309
        %v1323 = vpop.f32.mrf.mxu0
        %v1324 = vadd.f32 0.0, %v1323
        %v1325 = vpop.f32.mrf.mxu0
        %1326 = vdwg.mxu0
        %v1328 = vsel %vm1152, %v1268, 0
        %v1331 = vsel %vm1272, %v1139, 0
        %1333 = vmatpush.bf16.msra.mxu0 0
        %1334 = vmatpush.bf16.msra.mxu0 0
        %1335 = vmatpush.bf16.msra.mxu0 0
        %1336 = vmatpush.bf16.msra.mxu0 0
        %1337 = vmatpush.bf16.msra.mxu0 0
        %1338 = vmatpush.bf16.msra.mxu0 0
        %1339 = vmatpush.bf16.msra.mxu0 0
        %1340 = vmatpush.bf16.msra.mxu0 %v1331
        %1341 = vmatmul.bf16.gmra.mxu0 %v1328
        %v1342 = vpop.f32.mrf.mxu0
        %v1343 = vadd.f32 0.0, %v1342
        %v1344 = vpop.f32.mrf.mxu0
        %1345 = vdwg.mxu0
        %v1346 = vrcp.pop %v1255
        %v1347 = vrcp.pop %v1258
        %v1348 = vrcp.pop %v1261
        %v1349 = vrcp.pop %v1264
        %v1350 = vmul.f32 %v1286, %v1346
        %v1351 = vmul.f32 %v1305, %v1347
        %v1352 = vmul.f32 %v1324, %v1348
        %v1353 = vmul.f32 %v1343, %v1349
        %v1354 = vpack.c.bf16 %v1350, %v1350
        %v1355 = vpack.c.bf16 %v1351, %v1351
        %v1356 = vpack.c.bf16 %v1352, %v1352
        %v1357 = vpack.c.bf16 %v1353, %v1353
        %v1359 = vsel %vm1152, %v1354, 0
        %v1362 = vsel %vm1272, %v1140, 0
        %1364 = vmatpush.bf16.msra.mxu0 0
        %1365 = vmatpush.bf16.msra.mxu0 0
        %1366 = vmatpush.bf16.msra.mxu0 0
        %1367 = vmatpush.bf16.msra.mxu0 0
        %1368 = vmatpush.bf16.msra.mxu0 0
        %1369 = vmatpush.bf16.msra.mxu0 0
        %1370 = vmatpush.bf16.msra.mxu0 0
        %1371 = vmatpush.bf16.msra.mxu0 %v1362
        %1372 = vmatmul.bf16.gmra.mxu0 %v1359
        %v1373 = vpop.f32.mrf.mxu0
        %v1374 = vadd.f32 0.0, %v1373
        %v1375 = vpop.f32.mrf.mxu0
        %1376 = vdwg.mxu0
        %v1378 = vsel %vm1152, %v1355, 0
        %v1381 = vsel %vm1272, %v1141, 0
        %1383 = vmatpush.bf16.msra.mxu0 0
        %1384 = vmatpush.bf16.msra.mxu0 0
        %1385 = vmatpush.bf16.msra.mxu0 0
        %1386 = vmatpush.bf16.msra.mxu0 0
        %1387 = vmatpush.bf16.msra.mxu0 0
        %1388 = vmatpush.bf16.msra.mxu0 0
        %1389 = vmatpush.bf16.msra.mxu0 0
        %1390 = vmatpush.bf16.msra.mxu0 %v1381
        %1391 = vmatmul.bf16.gmra.mxu0 %v1378
        %v1392 = vpop.f32.mrf.mxu0
        %v1393 = vadd.f32 0.0, %v1392
        %v1394 = vpop.f32.mrf.mxu0
        %1395 = vdwg.mxu0
        %v1397 = vsel %vm1152, %v1356, 0
        %v1400 = vsel %vm1272, %v1142, 0
        %1402 = vmatpush.bf16.msra.mxu0 0
        %1403 = vmatpush.bf16.msra.mxu0 0
        %1404 = vmatpush.bf16.msra.mxu0 0
        %1405 = vmatpush.bf16.msra.mxu0 0
        %1406 = vmatpush.bf16.msra.mxu0 0
        %1407 = vmatpush.bf16.msra.mxu0 0
        %1408 = vmatpush.bf16.msra.mxu0 0
        %1409 = vmatpush.bf16.msra.mxu0 %v1400
        %1410 = vmatmul.bf16.gmra.mxu0 %v1397
        %v1411 = vpop.f32.mrf.mxu0
        %v1412 = vadd.f32 0.0, %v1411
        %v1413 = vpop.f32.mrf.mxu0
        %1414 = vdwg.mxu0
        %v1416 = vsel %vm1152, %v1357, 0
        %v1419 = vsel %vm1272, %v1143, 0
        %1421 = vmatpush.bf16.msra.mxu0 0
        %1422 = vmatpush.bf16.msra.mxu0 0
        %1423 = vmatpush.bf16.msra.mxu0 0
        %1424 = vmatpush.bf16.msra.mxu0 0
        %1425 = vmatpush.bf16.msra.mxu0 0
        %1426 = vmatpush.bf16.msra.mxu0 0
        %1427 = vmatpush.bf16.msra.mxu0 0
        %1428 = vmatpush.bf16.msra.mxu0 %v1419
        %1429 = vmatmul.bf16.gmra.mxu0 %v1416
        %v1430 = vpop.f32.mrf.mxu0
        %v1431 = vadd.f32 0.0, %v1430
        %v1432 = vpop.f32.mrf.mxu0
        %1433 = vdwg.mxu0
        %v1434 = vsel %vm680, %v1374, 0.0
        %v1435 = vsel %vm680, %v1393, 0.0
        %v1436 = vadd.f32 %v1434, %v1435
        %v1437 = vsel %vm680, %v1412, 0.0
        %v1438 = vadd.f32 %v1436, %v1437
        %v1439 = vsel %vm680, %v1431, 0.0
        %v1440 = vadd.f32 %v1438, %v1439
        %v1442 = vperm.slane %v1144, 0
        %v1444 = vadd.f32 %v1440, %v1442
        %1445 = vst.msk [vmem:[#allocation3] sm:$0xff] %vm680, %v1444
        %v1446 = vld [vmem:[#allocation3] sm:$0xff]
        %v1447 = vadd.f32 %v1446, %v657
        %v1448 = vld [vmem:[%s10] sm:$0x1]
        %v1449 = vld [vmem:[%s11] sm:$0x1]
        %v1450 = vsel %vm680, %v1447, 0.0
        %1451 = vadd.xlane.f32.xlu0 %v1450
        %v1452 = vpop.xlane.xlu0 %1451
        %v1453 = vrcp.pop 32.0
        %v1454 = vmul.f32 32.0, %v1453
        %v1455 = vsub.f32 1.0, %v1454
        %v1456 = vmul.f32 %v1453, %v1455
        %v1457 = vadd.f32 %v1453, %v1456
        %vm1458 = vweird.f32 %v1453
        %v1459 = vsel %vm1458, %v1453, %v1457
        %v1460 = vmul.f32 %v1452, %v1459
        %v1461 = vsub.f32 %v1447, %v1460
        %v1462 = vmul.f32 %v1461, %v1461
        %v1463 = vsel %vm680, %v1462, 0.0
        %1464 = vadd.xlane.f32.xlu0 %v1463
        %v1465 = vpop.xlane.xlu0 %1464
        %v1466 = vmul.f32 %v1465, %v1459
        %v1467 = vadd.f32 %v1466, 1e-12
        %v1468 = vrsqrt.pop %v1467
        %v1469 = vmul.f32 %v1468, %v1467
        %v1470 = vmul.f32 %v1469, %v1468
        %v1471 = vmul.f32 0.5, %v1470
        %v1472 = vsub.f32 1.5, %v1471
        %v1473 = vmul.f32 %v1468, %v1472
        %v1474 = vmul.f32 %v1467, %v1473
        %vm1475 = vcmp.eq.f32.partialorder %v1467, inf
        %v1476 = vsel %vm1475, %v1467, %v1474
        %vm1477 = vcmp.eq.f32.partialorder %v1467, 0.0
        %v1478 = vand.u32 %v1467, 2147483648
        %v1479 = vsel %vm1477, %v1478, %v1476
        %v1480 = vrcp.pop %v1479
        %v1481 = vmul.f32 %v1479, %v1480
        %v1482 = vsub.f32 1.0, %v1481
        %v1483 = vmul.f32 %v1480, %v1482
        %v1484 = vadd.f32 %v1480, %v1483
        %vm1485 = vweird.f32 %v1479
        %vm1486 = vweird.f32 %v1480
        %vm1487 = vmor %vm1485, %vm1486
        %v1488 = vsel %vm1487, %v1480, %v1484
        %v1489 = vand.u32 2147483647, %v1479
        %vm1490 = vcmp.eq.f32.partialorder %v1489, 8.507059e+37
        %v1491 = vand.u32 %v1479, 2147483648
        %v1492 = vor.u32 1.1754944e-38, %v1491
        %v1493 = vsel %vm1490, %v1492, %v1488
        %v1494 = vmul.f32 %v1461, %v1493
        %v1496 = vperm.slane %v1448, 0
        %v1498 = vmul.f32 %v1496, %v1494
        %v1500 = vperm.slane %v1449, 0
        %v1502 = vadd.f32 %v1498, %v1500
        %v1503 = vpack.c.bf16 %v1502, %v1502
        %v1504 = vld [vmem:[#allocation10] sm:$0xf]
        %v1505 = vld [vmem:[#allocation10 + $0x4] sm:$0xf]
        %v1506 = vld [vmem:[#allocation10 + $0x8] sm:$0xf]
        %v1507 = vld [vmem:[#allocation10 + $0xc] sm:$0xf]
        %v1508 = vld [vmem:[%s13] sm:$0x1]
        %v1510 = vperm.slane %v1508, 0
        %v1516 = vunpack.c.l.b16 %v1504
        %v1517 = vunpack.c.l.b16 %v1505
        %v1518 = vunpack.c.l.b16 %v1506
        %v1519 = vunpack.c.l.b16 %v1507
        %v1520 = vpack.c.b16 %v1517, %v1516
        %v1521 = vpack.c.b16 %v1519, %v1518
        %v1525 = vsel %vm680, %v1503, 0
        %1527 = vmatpush.bf16.msra.mxu0 0
        %1528 = vmatpush.bf16.msra.mxu0 0
        %1529 = vmatpush.bf16.msra.mxu0 0
        %1530 = vmatpush.bf16.msra.mxu0 0
        %1531 = vmatpush.bf16.msra.mxu0 0
        %1532 = vmatpush.bf16.msra.mxu0 0
        %1533 = vmatpush.bf16.msra.mxu0 %v1521
        %1534 = vmatpush.bf16.msra.mxu0 %v1520
        %1535 = vmatmul.bf16.gmra.mxu0 %v1525
        %v1536 = vpop.f32.mrf.mxu0
        %v1537 = vadd.f32 %v1510, %v1536
        %v1538 = vpop.f32.mrf.mxu0
        %1539 = vdwg.mxu0
        %v1540 = vmul.f32 %v1537, 0.5
        %v1541 = vrcp.pop 1.4142135
        %v1542 = vmul.f32 1.4142135, %v1541
        %v1543 = vsub.f32 1.0, %v1542
        %v1544 = vmul.f32 %v1541, %v1543
        %v1545 = vadd.f32 %v1541, %v1544
        %vm1546 = vweird.f32 %v1541
        %v1547 = vsel %vm1546, %v1541, %v1545
        %v1548 = vmul.f32 %v1537, %v1547
        %v1549 = vmul.f32 %v1548, %v1548
        %v1550 = vmin.f32 16.0, %v1549
        %v1551 = vmul.f32 %v1550, 2.1237322e-06
        %v1552 = vadd.f32 %v1551, 0.00028619796
        %v1553 = vmul.f32 %v1550, %v1552
        %v1554 = vadd.f32 %v1553, 0.0036580483
        %v1555 = vmul.f32 %v1550, %v1554
        %v1556 = vadd.f32 %v1555, 0.05243302
        %v1557 = vmul.f32 %v1550, %v1556
        %v1558 = vadd.f32 %v1557, 0.18741608
        %v1559 = vmul.f32 %v1550, %v1558
        %v1560 = vadd.f32 %v1559, 1.1283791
        %v1561 = vmul.f32 %v1548, %v1560
        %v1562 = vmul.f32 %v1550, 3.8918573e-05
        %v1563 = vadd.f32 %v1562, 0.001143296
        %v1564 = vmul.f32 %v1550, %v1563
        %v1565 = vadd.f32 %v1564, 0.014752088
        %v1566 = vmul.f32 %v1550, %v1565
        %v1567 = vadd.f32 %v1566, 0.112945676
        %v1568 = vmul.f32 %v1550, %v1567
        %v1569 = vadd.f32 %v1568, 0.4994258
        %v1570 = vmul.f32 %v1550, %v1569
        %v1571 = vadd.f32 %v1570, 1.0
        %v1572 = vrcp.pop %v1571
        %v1573 = vmul.f32 %v1571, %v1572
        %v1574 = vsub.f32 1.0, %v1573
        %v1575 = vmul.f32 %v1572, %v1574
        %v1576 = vadd.f32 %v1572, %v1575
        %vm1577 = vweird.f32 %v1571
        %vm1578 = vweird.f32 %v1572
        %vm1579 = vmor %vm1577, %vm1578
        %v1580 = vsel %vm1579, %v1572, %v1576
        %v1581 = vand.u32 2147483647, %v1571
        %vm1582 = vcmp.eq.f32.partialorder %v1581, 8.507059e+37
        %v1583 = vand.u32 %v1571, 2147483648
        %v1584 = vor.u32 1.1754944e-38, %v1583
        %v1585 = vsel %vm1582, %v1584, %v1580
        %v1586 = vmul.f32 %v1561, %v1585
        %v1587 = vmin.f32 %v1586, 1.0
        %v1588 = vmax.f32 %v1587, -1.0
        %v1589 = vadd.f32 %v1588, 1.0
        %v1590 = vmul.f32 %v1540, %v1589
        %v1591 = vpack.c.bf16 %v1590, %v1590
        %v1592 = vld [vmem:[%s14] sm:$0xf]
        %v1593 = vld [vmem:[%s14 + $0x4] sm:$0xf]
        %v1594 = vld [vmem:[%s14 + $0x8] sm:$0xf]
        %v1595 = vld [vmem:[%s14 + $0xc] sm:$0xf]
        %v1596 = vld [vmem:[%s14 + $0x10] sm:$0xf]
        %v1597 = vld [vmem:[%s14 + $0x14] sm:$0xf]
        %v1598 = vld [vmem:[%s14 + $0x18] sm:$0xf]
        %v1599 = vld [vmem:[%s14 + $0x1c] sm:$0xf]
        %v1600 = vld [vmem:[%s15] sm:$0x1]
        %v1602 = vperm.slane %v1600, 0
        %v1612 = vunpack.c.l.b16 %v1592
        %v1613 = vunpack.c.l.b16 %v1593
        %v1614 = vunpack.c.l.b16 %v1594
        %v1615 = vunpack.c.l.b16 %v1595
        %v1616 = vunpack.c.l.b16 %v1596
        %v1617 = vunpack.c.l.b16 %v1597
        %v1618 = vunpack.c.l.b16 %v1598
        %v1619 = vunpack.c.l.b16 %v1599
        %v1620 = vpack.c.b16 %v1613, %v1612
        %v1621 = vpack.c.b16 %v1615, %v1614
        %v1622 = vpack.c.b16 %v1617, %v1616
        %v1623 = vpack.c.b16 %v1619, %v1618
        %vm1628 = vcmask 523264
        %v1630 = vsel %vm1628, %v1591, 0
        %1632 = vmatpush.bf16.msra.mxu0 0
        %1633 = vmatpush.bf16.msra.mxu0 0
        %1634 = vmatpush.bf16.msra.mxu0 0
        %1635 = vmatpush.bf16.msra.mxu0 0
        %1636 = vmatpush.bf16.msra.mxu0 %v1623
        %1637 = vmatpush.bf16.msra.mxu0 %v1622
        %1638 = vmatpush.bf16.msra.mxu0 %v1621
        %1639 = vmatpush.bf16.msra.mxu0 %v1620
        %1640 = vmatmul.bf16.gmra.mxu0 %v1630
        %v1641 = vpop.f32.mrf.mxu0
        %v1642 = vadd.f32 %v1602, %v1641
        %v1643 = vpop.f32.mrf.mxu0
        %1644 = vdwg.mxu0
        %v1645 = vadd.f32 %v1642, %v1502
        %v1646 = vld [vmem:[%s16] sm:$0x1]
        %v1647 = vld [vmem:[%s17] sm:$0x1]
        %v1648 = vsel %vm680, %v1645, 0.0
        %1649 = vadd.xlane.f32.xlu0 %v1648
        %v1650 = vpop.xlane.xlu0 %1649
        %v1651 = vmul.f32 %v1650, %v1459
        %v1652 = vsub.f32 %v1645, %v1651
        %v1653 = vmul.f32 %v1652, %v1652
        %v1654 = vsel %vm680, %v1653, 0.0
        %1655 = vadd.xlane.f32.xlu0 %v1654
        %v1656 = vpop.xlane.xlu0 %1655
        %v1657 = vmul.f32 %v1656, %v1459
        %v1658 = vadd.f32 %v1657, 1e-12
        %v1659 = vrsqrt.pop %v1658
        %v1660 = vmul.f32 %v1659, %v1658
        %v1661 = vmul.f32 %v1660, %v1659
        %v1662 = vmul.f32 0.5, %v1661
        %v1663 = vsub.f32 1.5, %v1662
        %v1664 = vmul.f32 %v1659, %v1663
        %v1665 = vmul.f32 %v1658, %v1664
        %vm1666 = vcmp.eq.f32.partialorder %v1658, inf
        %v1667 = vsel %vm1666, %v1658, %v1665
        %vm1668 = vcmp.eq.f32.partialorder %v1658, 0.0
        %v1669 = vand.u32 %v1658, 2147483648
        %v1670 = vsel %vm1668, %v1669, %v1667
        %v1671 = vrcp.pop %v1670
        %v1672 = vmul.f32 %v1670, %v1671
        %v1673 = vsub.f32 1.0, %v1672
        %v1674 = vmul.f32 %v1671, %v1673
        %v1675 = vadd.f32 %v1671, %v1674
        %vm1676 = vweird.f32 %v1670
        %vm1677 = vweird.f32 %v1671
        %vm1678 = vmor %vm1676, %vm1677
        %v1679 = vsel %vm1678, %v1671, %v1675
        %v1680 = vand.u32 2147483647, %v1670
        %vm1681 = vcmp.eq.f32.partialorder %v1680, 8.507059e+37
        %v1682 = vand.u32 %v1670, 2147483648
        %v1683 = vor.u32 1.1754944e-38, %v1682
        %v1684 = vsel %vm1681, %v1683, %v1679
        %v1685 = vmul.f32 %v1652, %v1684
        %v1687 = vperm.slane %v1646, 0
        %v1689 = vmul.f32 %v1687, %v1685
        %v1691 = vperm.slane %v1647, 0
        %v1693 = vadd.f32 %v1689, %v1691
        %1694 = vst.msk [vmem:[%s651] sm:$0xff] %vm680, %v1693
        %s1695 = sand.u32 %s433, 1
        %s1696 = scalar_lea.sflag [#allocation6], %s1695
        %s1697 = sand.u32 %s433, 1
        %s1698 = smul.addr %s1697, 8
        %s1699 = scalar_lea.vmem [#allocation12], %s1698
        // Predicated region
        $region109: #{tpu_custom_call.1} parent=91 // pred_check
          %p1700 = pneg %p443
        $region110: #{tpu_custom_call.1} parent=91 // pred_check_branch
          %1702 = sbr.rel (%p1700) target = $region112
        $region111: #{tpu_custom_call.1} parent=91 // pred_region
          %1704 = vsyncadd %s1696, 0
          %s1705 = smul.addr %s37, 8
          %s1706 = scalar_lea.hbm %s18, %s1705
          %s1708 = sshll.u32 %s1699, 4
          %s1709 = int_to_ptr.vmem [resolvable:$true] %s1708
          %s1710 = sshll.u32 %s1706, 4
          %s1711 = int_to_ptr.hbm [resolvable:$true] %s1710
          %1713 = dma.vmem_to_hbm [thread:$0]  %s1709, 128, %s1711, %s1696
        $region112: #{tpu_custom_call.1} parent=91 // pred_fallthru
          _
      $region92: #{tpu_custom_call.1} parent=5 // pred_fallthru
        _
      %p1714 = scmp.le.s32.totalorder 2, %s32
      // Predicated region
      $region113: #{tpu_custom_call.1} parent=5 // pred_check
        %p1715 = pneg %p1714
      $region114: #{tpu_custom_call.1} parent=5 // pred_check_branch
        %1717 = sbr.rel (%p1715) target = $region116
      $region115: #{tpu_custom_call.1} parent=5 // pred_region
        %s1718 = ssub.s32 %s32, 2
        // Predicated region
        $region117: #{tpu_custom_call.1} parent=115 // pred_check
          %p1719 = pneg %p449
        $region118: #{tpu_custom_call.1} parent=115 // pred_check_branch
          %1721 = sbr.rel (%p1719) target = $region120
        $region119: #{tpu_custom_call.1} parent=115 // pred_region
          %s1722 = sand.u32 %s434, 1
          %s1723 = scalar_lea.sflag [#allocation6], %s1722
          %s1724 = sand.u32 %s434, 1
          %s1725 = smul.addr %s1724, 8
          %s1726 = scalar_lea.vmem [#allocation12], %s1725
          %1728 = dma.done %s1723, 128
        $region120: #{tpu_custom_call.1} parent=115 // pred_fallthru
          _
      $region116: #{tpu_custom_call.1} parent=5 // pred_fallthru
        _
    $region6: #{tpu_custom_call.1} parent=1 // loop_footer
      %s36 = sadd.s32 1, %s32
    $region7: #{tpu_custom_call.1} parent=1 // loop_footer_branch
      %31 = sbr.rel target = $region3
    $region8: #{tpu_custom_call.1} parent=1 // loop_exit
      _
    %1729 = vsyncpa [#allocation5], 1
    %s1730 = scalar_lea.sflag [#allocation5], 1
    %1731 = vsyncpa %s1730, 1
    %1732 = vsyncpa [#allocation8], 1
    %1733 = vsyncpa [#allocation11], 1
    %1734 = vsyncpa [#allocation6], 1
    %s1735 = scalar_lea.sflag [#allocation6], 1
    %1736 = vsyncpa %s1735, 1

// kernel: tpu_custom_call.1
$region0: #{tpu_custom_call.1}
  #allocation0 [shape = 'u32[]', space=smem, size = 0x4, offset = 0x4, fixed_abs, tag = 'smem constant byte address 0x4 - core index']
  #allocation1 [shape = 'u32[72,128]{1,0:T(1,128)}', space=vmem, size = 0x9000, scoped, tag = 'internal scratch']
  #allocation2 [shape = 'bf16[4,8,8]{2,1,0:T(8,128)(2,1)}', space=vmem, size = 0x2000, scoped, tag = 'scratch operand']
  #allocation3 [shape = 'f32[8,32]{1,0:T(8,128)}', space=vmem, size = 0x1000, scoped, tag = 'scratch operand']
  %s0 = inlined_call_operand.vmem [shape: f32[2,8,32], index: 0, kind: input, shape index: {}]
  %s1 = inlined_call_operand.hbm [shape: f32[2,1,8], index: 1, kind: input, shape index: {}]
  %s2 = inlined_call_operand.vmem [shape: bf16[32,32], index: 2, kind: input, shape index: {}]
  %s3 = inlined_call_operand.vmem [shape: f32[1,32], index: 3, kind: input, shape index: {}]
  %s4 = inlined_call_operand.vmem [shape: bf16[32,32], index: 4, kind: input, shape index: {}]
  %s5 = inlined_call_operand.vmem [shape: f32[1,32], index: 5, kind: input, shape index: {}]
  %s6 = inlined_call_operand.hbm [shape: bf16[32,32], index: 6, kind: input, shape index: {}]
  %s7 = inlined_call_operand.vmem [shape: f32[1,32], index: 7, kind: input, shape index: {}]
  %s8 = inlined_call_operand.hbm [shape: bf16[4,8,32], index: 8, kind: input, shape index: {}]
  %s9 = inlined_call_operand.vmem [shape: f32[1,32], index: 9, kind: input, shape index: {}]
  %s10 = inlined_call_operand.vmem [shape: f32[1,32], index: 10, kind: input, shape index: {}]
  %s11 = inlined_call_operand.vmem [shape: f32[1,32], index: 11, kind: input, shape index: {}]
  %s12 = inlined_call_operand.hbm [shape: bf16[32,64], index: 12, kind: input, shape index: {}]
  %s13 = inlined_call_operand.vmem [shape: f32[1,64], index: 13, kind: input, shape index: {}]
  %s14 = inlined_call_operand.vmem [shape: bf16[64,32], index: 14, kind: input, shape index: {}]
  %s15 = inlined_call_operand.vmem [shape: f32[1,32], index: 15, kind: input, shape index: {}]
  %s16 = inlined_call_operand.vmem [shape: f32[1,32], index: 16, kind: input, shape index: {}]
  %s17 = inlined_call_operand.vmem [shape: f32[1,32], index: 17, kind: input, shape index: {}]
  %s18 = inlined_call_operand.hbm [shape: f32[2,8,32], index: 18, kind: output, shape index: {}]
  %s19 = sld [smem:[#allocation0]]
  $region121: #{tpu_custom_call.1} parent=0
    _
  %s21 = ssub.s32 1, %s19
  %s22 = scalar_select 0, %s21, %s19
  $region1: #{tpu_custom_call.1} parent=0
    #allocation4 [shape = 'u8[1024]{0}', space=vmem, size = 0x400, scoped, tag = 'input window, operand 1']
    #allocation5 [shape = 's32[2]{0}', space=sflag, size = 0x8, scoped, tag = 'scoped memory for tpu_custom_call.1']
    #allocation6 [shape = 's32[2]{0}', space=sflag, size = 0x8, scoped, tag = 'scoped memory for tpu_custom_call.1']
    #allocation7 [shape = 'u8[8192]{0}', space=vmem, size = 0x2000, scoped, tag = 'input window, operand 6, single buffered']
    #allocation8 [shape = 's32[1]{0}', space=sflag, size = 0x4, scoped, tag = 'scoped memory for tpu_custom_call.1']
    #allocation9 [shape = 'u8[8192]{0}', space=vmem, size = 0x2000, scoped, tag = 'input window, operand 8, single buffered']
    #allocation10 [shape = 'u8[8192]{0}', space=vmem, size = 0x2000, scoped, tag = 'input window, operand 12, single buffered']
    #allocation11 [shape = 's32[1]{0}', space=sflag, size = 0x4, scoped, tag = 'scoped memory for tpu_custom_call.1']
    #allocation12 [shape = 'u8[8192]{0}', space=vmem, size = 0x2000, scoped, tag = 'output window, operand 0']
    %23 = vsyncpa [#allocation5], 0
    %s24 = scalar_lea.sflag [#allocation5], 1
    %25 = vsyncpa %s24, 0
    %26 = vsyncpa [#allocation8], 0
    %27 = vsyncpa [#allocation11], 0
    %28 = vsyncpa [#allocation6], 0
    %s29 = scalar_lea.sflag [#allocation6], 1
    %30 = vsyncpa %s29, 0
    loop: start=0, step=1, limit=4
    $region2: #{tpu_custom_call.1} parent=1 // loop_pre_header
      _
    $region3: #{tpu_custom_call.1} parent=1 // loop_header
      %s32 = sphi 0, %s36
      %p33 = scmp.ge.s32.totalorder %s32, 4
      %s42 = sphi 0, %s44
      %s45 = sphi 0, %s42
      %s46 = sphi 0, %s45
      %s62 = sphi 0, %s46
      %s68 = sphi 0, %s70
      %s71 = sphi 0, %s68
      %s72 = sphi 0, %s71
      %s88 = sphi 0, %s72
      %s92 = sphi 0, %s92
      %s94 = sphi 0, %s92
      %s95 = sphi 0, %s94
      %s109 = sphi 0, %s95
      %s113 = sphi 0, %s113
      %s115 = sphi 0, %s113
      %s116 = sphi 0, %s115
      %s130 = sphi 0, %s116
      %s134 = sphi 0, %s134
      %s136 = sphi 0, %s134
      %s137 = sphi 0, %s136
      %s151 = sphi 0, %s137
      %s155 = sphi 0, %s155
      %s157 = sphi 0, %s155
      %s158 = sphi 0, %s157
      %s172 = sphi 0, %s158
      %s176 = sphi 0, %s176
      %s178 = sphi 0, %s176
      %s179 = sphi 0, %s178
      %s193 = sphi 0, %s179
      %s197 = sphi 0, %s197
      %s199 = sphi 0, %s197
      %s200 = sphi 0, %s199
      %s214 = sphi 0, %s200
      %s218 = sphi 0, %s218
      %s220 = sphi 0, %s218
      %s221 = sphi 0, %s220
      %s235 = sphi 0, %s221
      %s239 = sphi 0, %s239
      %s241 = sphi 0, %s239
      %s242 = sphi 0, %s241
      %s256 = sphi 0, %s242
      %s260 = sphi 0, %s260
      %s262 = sphi 0, %s260
      %s263 = sphi 0, %s262
      %s277 = sphi 0, %s263
      %s281 = sphi 0, %s281
      %s283 = sphi 0, %s281
      %s284 = sphi 0, %s283
      %s298 = sphi 0, %s284
      %s302 = sphi 0, %s302
      %s304 = sphi 0, %s302
      %s305 = sphi 0, %s304
      %s319 = sphi 0, %s305
      %s323 = sphi 0, %s323
      %s325 = sphi 0, %s323
      %s326 = sphi 0, %s325
      %s340 = sphi 0, %s326
      %s344 = sphi 0, %s344
      %s346 = sphi 0, %s344
      %s347 = sphi 0, %s346
      %s361 = sphi 0, %s347
      %s365 = sphi 0, %s365
      %s367 = sphi 0, %s365
      %s368 = sphi 0, %s367
      %s382 = sphi 0, %s368
      %s386 = sphi 0, %s386
      %s388 = sphi 0, %s386
      %s389 = sphi 0, %s388
      %s403 = sphi 0, %s389
      %s407 = sphi 0, %s407
      %s409 = sphi 0, %s407
      %s410 = sphi 0, %s409
      %s424 = sphi 0, %s410
      %s430 = sphi 0, %s432
      %s433 = sphi 0, %s430
      %s434 = sphi 0, %s433
      %s450 = sphi 0, %s434
    $region4: #{tpu_custom_call.1} parent=1 // loop_header_branch
      %35 = sbr.rel (%p33) target = $region8
    $region5: #{tpu_custom_call.1} parent=1 // loop_body
      %s37 = ssub.s32 %s32, 1
      %s38 = ssub.s32 %s32, 2
      %s39 = sadd.s32 %s32, 1
      %s40 = ssub.s32 %s32, %s39
      %p41 = scmp.eq.s32.totalorder %s40, 0
      %s43 = sadd.s32 %s42, 1
      %s44 = scalar_select %p41, %s42, %s43
      %p47 = pneg %p41
      %p48 = scmp.eq.s32.totalorder %s32, 1
      %p49 = por %p47, %p48
      %p50 = scmp.ne.s32.totalorder %s42, %s45
      %p51 = scmp.eq.s32.totalorder %s32, 0
      %p52 = por %p50, %p51
      %p53 = scmp.ne.s32.totalorder %s42, %s45
      %p54 = scmp.eq.s32.totalorder %s37, 1
      %p55 = por %p53, %p54
      %p56 = scmp.ne.s32.totalorder %s45, %s46
      %p57 = scmp.eq.s32.totalorder %s37, 0
      %p58 = por %p56, %p57
      %p59 = scmp.ne.s32.totalorder %s45, %s46
      %p60 = scmp.eq.s32.totalorder %s38, 1
      %p61 = por %p59, %p60
      %p63 = scmp.ne.s32.totalorder %s46, %s62
      %p64 = scmp.eq.s32.totalorder %s38, 0
      %p65 = por %p63, %p64
      %s66 = ssub.s32 %s32, %s39
      %p67 = scmp.eq.s32.totalorder %s66, 0
      %s69 = sadd.s32 %s68, 1
      %s70 = scalar_select %p67, %s68, %s69
      %p73 = pneg %p67
      %p74 = scmp.eq.s32.totalorder %s32, 1
      %p75 = por %p73, %p74
      %p76 = scmp.ne.s32.totalorder %s68, %s71
      %p77 = scmp.eq.s32.totalorder %s32, 0
      %p78 = por %p76, %p77
      %p79 = scmp.ne.s32.totalorder %s68, %s71
      %p80 = scmp.eq.s32.totalorder %s37, 1
      %p81 = por %p79, %p80
      %p82 = scmp.ne.s32.totalorder %s71, %s72
      %p83 = scmp.eq.s32.totalorder %s37, 0
      %p84 = por %p82, %p83
      %p85 = scmp.ne.s32.totalorder %s71, %s72
      %p86 = scmp.eq.s32.totalorder %s38, 1
      %p87 = por %p85, %p86
      %p89 = scmp.ne.s32.totalorder %s72, %s88
      %p90 = scmp.eq.s32.totalorder %s38, 0
      %p91 = por %p89, %p90
      %s93 = sadd.s32 %s92, 1
      %p96 = scmp.eq.s32.totalorder %s32, 1
      %p97 = scmp.ne.s32.totalorder %s92, %s94
      %p98 = scmp.eq.s32.totalorder %s32, 0
      %p99 = por %p97, %p98
      %p100 = scmp.ne.s32.totalorder %s92, %s94
      %p101 = scmp.eq.s32.totalorder %s37, 1
      %p102 = por %p100, %p101
      %p103 = scmp.ne.s32.totalorder %s94, %s95
      %p104 = scmp.eq.s32.totalorder %s37, 0
      %p105 = por %p103, %p104
      %p106 = scmp.ne.s32.totalorder %s94, %s95
      %p107 = scmp.eq.s32.totalorder %s38, 1
      %p108 = por %p106, %p107
      %p110 = scmp.ne.s32.totalorder %s95, %s109
      %p111 = scmp.eq.s32.totalorder %s38, 0
      %p112 = por %p110, %p111
      %s114 = sadd.s32 %s113, 1
      %p117 = scmp.eq.s32.totalorder %s32, 1
      %p118 = scmp.ne.s32.totalorder %s113, %s115
      %p119 = scmp.eq.s32.totalorder %s32, 0
      %p120 = por %p118, %p119
      %p121 = scmp.ne.s32.totalorder %s113, %s115
      %p122 = scmp.eq.s32.totalorder %s37, 1
      %p123 = por %p121, %p122
      %p124 = scmp.ne.s32.totalorder %s115, %s116
      %p125 = scmp.eq.s32.totalorder %s37, 0
      %p126 = por %p124, %p125
      %p127 = scmp.ne.s32.totalorder %s115, %s116
      %p128 = scmp.eq.s32.totalorder %s38, 1
      %p129 = por %p127, %p128
      %p131 = scmp.ne.s32.totalorder %s116, %s130
      %p132 = scmp.eq.s32.totalorder %s38, 0
      %p133 = por %p131, %p132
      %s135 = sadd.s32 %s134, 1
      %p138 = scmp.eq.s32.totalorder %s32, 1
      %p139 = scmp.ne.s32.totalorder %s134, %s136
      %p140 = scmp.eq.s32.totalorder %s32, 0
      %p141 = por %p139, %p140
      %p142 = scmp.ne.s32.totalorder %s134, %s136
      %p143 = scmp.eq.s32.totalorder %s37, 1
      %p144 = por %p142, %p143
      %p145 = scmp.ne.s32.totalorder %s136, %s137
      %p146 = scmp.eq.s32.totalorder %s37, 0
      %p147 = por %p145, %p146
      %p148 = scmp.ne.s32.totalorder %s136, %s137
      %p149 = scmp.eq.s32.totalorder %s38, 1
      %p150 = por %p148, %p149
      %p152 = scmp.ne.s32.totalorder %s137, %s151
      %p153 = scmp.eq.s32.totalorder %s38, 0
      %p154 = por %p152, %p153
      %s156 = sadd.s32 %s155, 1
      %p159 = scmp.eq.s32.totalorder %s32, 1
      %p160 = scmp.ne.s32.totalorder %s155, %s157
      %p161 = scmp.eq.s32.totalorder %s32, 0
      %p162 = por %p160, %p161
      %p163 = scmp.ne.s32.totalorder %s155, %s157
      %p164 = scmp.eq.s32.totalorder %s37, 1
      %p165 = por %p163, %p164
      %p166 = scmp.ne.s32.totalorder %s157, %s158
      %p167 = scmp.eq.s32.totalorder %s37, 0
      %p168 = por %p166, %p167
      %p169 = scmp.ne.s32.totalorder %s157, %s158
      %p170 = scmp.eq.s32.totalorder %s38, 1
      %p171 = por %p169, %p170
      %p173 = scmp.ne.s32.totalorder %s158, %s172
      %p174 = scmp.eq.s32.totalorder %s38, 0
      %p175 = por %p173, %p174
      %s177 = sadd.s32 %s176, 1
      %p180 = scmp.eq.s32.totalorder %s32, 1
      %p181 = scmp.ne.s32.totalorder %s176, %s178
      %p182 = scmp.eq.s32.totalorder %s32, 0
      %p183 = por %p181, %p182
      %p184 = scmp.ne.s32.totalorder %s176, %s178
      %p185 = scmp.eq.s32.totalorder %s37, 1
      %p186 = por %p184, %p185
      %p187 = scmp.ne.s32.totalorder %s178, %s179
      %p188 = scmp.eq.s32.totalorder %s37, 0
      %p189 = por %p187, %p188
      %p190 = scmp.ne.s32.totalorder %s178, %s179
      %p191 = scmp.eq.s32.totalorder %s38, 1
      %p192 = por %p190, %p191
      %p194 = scmp.ne.s32.totalorder %s179, %s193
      %p195 = scmp.eq.s32.totalorder %s38, 0
      %p196 = por %p194, %p195
      %s198 = sadd.s32 %s197, 1
      %p201 = scmp.eq.s32.totalorder %s32, 1
      %p202 = scmp.ne.s32.totalorder %s197, %s199
      %p203 = scmp.eq.s32.totalorder %s32, 0
      %p204 = por %p202, %p203
      %p205 = scmp.ne.s32.totalorder %s197, %s199
      %p206 = scmp.eq.s32.totalorder %s37, 1
      %p207 = por %p205, %p206
      %p208 = scmp.ne.s32.totalorder %s199, %s200
      %p209 = scmp.eq.s32.totalorder %s37, 0
      %p210 = por %p208, %p209
      %p211 = scmp.ne.s32.totalorder %s199, %s200
      %p212 = scmp.eq.s32.totalorder %s38, 1
      %p213 = por %p211, %p212
      %p215 = scmp.ne.s32.totalorder %s200, %s214
      %p216 = scmp.eq.s32.totalorder %s38, 0
      %p217 = por %p215, %p216
      %s219 = sadd.s32 %s218, 1
      %p222 = scmp.eq.s32.totalorder %s32, 1
      %p223 = scmp.ne.s32.totalorder %s218, %s220
      %p224 = scmp.eq.s32.totalorder %s32, 0
      %p225 = por %p223, %p224
      %p226 = scmp.ne.s32.totalorder %s218, %s220
      %p227 = scmp.eq.s32.totalorder %s37, 1
      %p228 = por %p226, %p227
      %p229 = scmp.ne.s32.totalorder %s220, %s221
      %p230 = scmp.eq.s32.totalorder %s37, 0
      %p231 = por %p229, %p230
      %p232 = scmp.ne.s32.totalorder %s220, %s221
      %p233 = scmp.eq.s32.totalorder %s38, 1
      %p234 = por %p232, %p233
      %p236 = scmp.ne.s32.totalorder %s221, %s235
      %p237 = scmp.eq.s32.totalorder %s38, 0
      %p238 = por %p236, %p237
      %s240 = sadd.s32 %s239, 1
      %p243 = scmp.eq.s32.totalorder %s32, 1
      %p244 = scmp.ne.s32.totalorder %s239, %s241
      %p245 = scmp.eq.s32.totalorder %s32, 0
      %p246 = por %p244, %p245
      %p247 = scmp.ne.s32.totalorder %s239, %s241
      %p248 = scmp.eq.s32.totalorder %s37, 1
      %p249 = por %p247, %p248
      %p250 = scmp.ne.s32.totalorder %s241, %s242
      %p251 = scmp.eq.s32.totalorder %s37, 0
      %p252 = por %p250, %p251
      %p253 = scmp.ne.s32.totalorder %s241, %s242
      %p254 = scmp.eq.s32.totalorder %s38, 1
      %p255 = por %p253, %p254
      %p257 = scmp.ne.s32.totalorder %s242, %s256
      %p258 = scmp.eq.s32.totalorder %s38, 0
      %p259 = por %p257, %p258
      %s261 = sadd.s32 %s260, 1
      %p264 = scmp.eq.s32.totalorder %s32, 1
      %p265 = scmp.ne.s32.totalorder %s260, %s262
      %p266 = scmp.eq.s32.totalorder %s32, 0
      %p267 = por %p265, %p266
      %p268 = scmp.ne.s32.totalorder %s260, %s262
      %p269 = scmp.eq.s32.totalorder %s37, 1
      %p270 = por %p268, %p269
      %p271 = scmp.ne.s32.totalorder %s262, %s263
      %p272 = scmp.eq.s32.totalorder %s37, 0
      %p273 = por %p271, %p272
      %p274 = scmp.ne.s32.totalorder %s262, %s263
      %p275 = scmp.eq.s32.totalorder %s38, 1
      %p276 = por %p274, %p275
      %p278 = scmp.ne.s32.totalorder %s263, %s277
      %p279 = scmp.eq.s32.totalorder %s38, 0
      %p280 = por %p278, %p279
      %s282 = sadd.s32 %s281, 1
      %p285 = scmp.eq.s32.totalorder %s32, 1
      %p286 = scmp.ne.s32.totalorder %s281, %s283
      %p287 = scmp.eq.s32.totalorder %s32, 0
      %p288 = por %p286, %p287
      %p289 = scmp.ne.s32.totalorder %s281, %s283
      %p290 = scmp.eq.s32.totalorder %s37, 1
      %p291 = por %p289, %p290
      %p292 = scmp.ne.s32.totalorder %s283, %s284
      %p293 = scmp.eq.s32.totalorder %s37, 0
      %p294 = por %p292, %p293
      %p295 = scmp.ne.s32.totalorder %s283, %s284
      %p296 = scmp.eq.s32.totalorder %s38, 1
      %p297 = por %p295, %p296
      %p299 = scmp.ne.s32.totalorder %s284, %s298
      %p300 = scmp.eq.s32.totalorder %s38, 0
      %p301 = por %p299, %p300
      %s303 = sadd.s32 %s302, 1
      %p306 = scmp.eq.s32.totalorder %s32, 1
      %p307 = scmp.ne.s32.totalorder %s302, %s304
      %p308 = scmp.eq.s32.totalorder %s32, 0
      %p309 = por %p307, %p308
      %p310 = scmp.ne.s32.totalorder %s302, %s304
      %p311 = scmp.eq.s32.totalorder %s37, 1
      %p312 = por %p310, %p311
      %p313 = scmp.ne.s32.totalorder %s304, %s305
      %p314 = scmp.eq.s32.totalorder %s37, 0
      %p315 = por %p313, %p314
      %p316 = scmp.ne.s32.totalorder %s304, %s305
      %p317 = scmp.eq.s32.totalorder %s38, 1
      %p318 = por %p316, %p317
      %p320 = scmp.ne.s32.totalorder %s305, %s319
      %p321 = scmp.eq.s32.totalorder %s38, 0
      %p322 = por %p320, %p321
      %s324 = sadd.s32 %s323, 1
      %p327 = scmp.eq.s32.totalorder %s32, 1
      %p328 = scmp.ne.s32.totalorder %s323, %s325
      %p329 = scmp.eq.s32.totalorder %s32, 0
      %p330 = por %p328, %p329
      %p331 = scmp.ne.s32.totalorder %s323, %s325
      %p332 = scmp.eq.s32.totalorder %s37, 1
      %p333 = por %p331, %p332
      %p334 = scmp.ne.s32.totalorder %s325, %s326
      %p335 = scmp.eq.s32.totalorder %s37, 0
      %p336 = por %p334, %p335
      %p337 = scmp.ne.s32.totalorder %s325, %s326
      %p338 = scmp.eq.s32.totalorder %s38, 1
      %p339 = por %p337, %p338
      %p341 = scmp.ne.s32.totalorder %s326, %s340
      %p342 = scmp.eq.s32.totalorder %s38, 0
      %p343 = por %p341, %p342
      %s345 = sadd.s32 %s344, 1
      %p348 = scmp.eq.s32.totalorder %s32, 1
      %p349 = scmp.ne.s32.totalorder %s344, %s346
      %p350 = scmp.eq.s32.totalorder %s32, 0
      %p351 = por %p349, %p350
      %p352 = scmp.ne.s32.totalorder %s344, %s346
      %p353 = scmp.eq.s32.totalorder %s37, 1
      %p354 = por %p352, %p353
      %p355 = scmp.ne.s32.totalorder %s346, %s347
      %p356 = scmp.eq.s32.totalorder %s37, 0
      %p357 = por %p355, %p356
      %p358 = scmp.ne.s32.totalorder %s346, %s347
      %p359 = scmp.eq.s32.totalorder %s38, 1
      %p360 = por %p358, %p359
      %p362 = scmp.ne.s32.totalorder %s347, %s361
      %p363 = scmp.eq.s32.totalorder %s38, 0
      %p364 = por %p362, %p363
      %s366 = sadd.s32 %s365, 1
      %p369 = scmp.eq.s32.totalorder %s32, 1
      %p370 = scmp.ne.s32.totalorder %s365, %s367
      %p371 = scmp.eq.s32.totalorder %s32, 0
      %p372 = por %p370, %p371
      %p373 = scmp.ne.s32.totalorder %s365, %s367
      %p374 = scmp.eq.s32.totalorder %s37, 1
      %p375 = por %p373, %p374
      %p376 = scmp.ne.s32.totalorder %s367, %s368
      %p377 = scmp.eq.s32.totalorder %s37, 0
      %p378 = por %p376, %p377
      %p379 = scmp.ne.s32.totalorder %s367, %s368
      %p380 = scmp.eq.s32.totalorder %s38, 1
      %p381 = por %p379, %p380
      %p383 = scmp.ne.s32.totalorder %s368, %s382
      %p384 = scmp.eq.s32.totalorder %s38, 0
      %p385 = por %p383, %p384
      %s387 = sadd.s32 %s386, 1
      %p390 = scmp.eq.s32.totalorder %s32, 1
      %p391 = scmp.ne.s32.totalorder %s386, %s388
      %p392 = scmp.eq.s32.totalorder %s32, 0
      %p393 = por %p391, %p392
      %p394 = scmp.ne.s32.totalorder %s386, %s388
      %p395 = scmp.eq.s32.totalorder %s37, 1
      %p396 = por %p394, %p395
      %p397 = scmp.ne.s32.totalorder %s388, %s389
      %p398 = scmp.eq.s32.totalorder %s37, 0
      %p399 = por %p397, %p398
      %p400 = scmp.ne.s32.totalorder %s388, %s389
      %p401 = scmp.eq.s32.totalorder %s38, 1
      %p402 = por %p400, %p401
      %p404 = scmp.ne.s32.totalorder %s389, %s403
      %p405 = scmp.eq.s32.totalorder %s38, 0
      %p406 = por %p404, %p405
      %s408 = sadd.s32 %s407, 1
      %p411 = scmp.eq.s32.totalorder %s32, 1
      %p412 = scmp.ne.s32.totalorder %s407, %s409
      %p413 = scmp.eq.s32.totalorder %s32, 0
      %p414 = por %p412, %p413
      %p415 = scmp.ne.s32.totalorder %s407, %s409
      %p416 = scmp.eq.s32.totalorder %s37, 1
      %p417 = por %p415, %p416
      %p418 = scmp.ne.s32.totalorder %s409, %s410
      %p419 = scmp.eq.s32.totalorder %s37, 0
      %p420 = por %p418, %p419
      %p421 = scmp.ne.s32.totalorder %s409, %s410
      %p422 = scmp.eq.s32.totalorder %s38, 1
      %p423 = por %p421, %p422
      %p425 = scmp.ne.s32.totalorder %s410, %s424
      %p426 = scmp.eq.s32.totalorder %s38, 0
      %p427 = por %p425, %p426
      %s428 = ssub.s32 %s32, %s39
      %p429 = scmp.eq.s32.totalorder %s428, 0
      %s431 = sadd.s32 %s430, 1
      %s432 = scalar_select %p429, %s430, %s431
      %p435 = pneg %p429
      %p436 = scmp.eq.s32.totalorder %s32, 1
      %p437 = por %p435, %p436
      %p438 = scmp.ne.s32.totalorder %s430, %s433
      %p439 = scmp.eq.s32.totalorder %s32, 0
      %p440 = por %p438, %p439
      %p441 = scmp.ne.s32.totalorder %s430, %s433
      %p442 = scmp.eq.s32.totalorder %s37, 1
      %p443 = por %p441, %p442
      %p444 = scmp.ne.s32.totalorder %s433, %s434
      %p445 = scmp.eq.s32.totalorder %s37, 0
      %p446 = por %p444, %p445
      %p447 = scmp.ne.s32.totalorder %s433, %s434
      %p448 = scmp.eq.s32.totalorder %s38, 1
      %p449 = por %p447, %p448
      %p451 = scmp.ne.s32.totalorder %s434, %s450
      %p452 = scmp.eq.s32.totalorder %s38, 0
      %p453 = por %p451, %p452
      %p454 = scmp.le.s32.totalorder 1, %s32
      %p455 = scmp.lt.s32.totalorder %s32, 3
      %p456 = pnand %p454, %p455
      %p457 = pneg %p456
      // Predicated region
      $region9: #{tpu_custom_call.1} parent=5 // pred_check
        _
      $region10: #{tpu_custom_call.1} parent=5 // pred_check_branch
        %459 = sbr.rel (%p456) target = $region12
      $region11: #{tpu_custom_call.1} parent=5 // pred_region
        %s460 = ssub.s32 %s32, 1
        // Predicated region
        $region13: #{tpu_custom_call.1} parent=11 // pred_check
          %p461 = pneg %p105
        $region14: #{tpu_custom_call.1} parent=11 // pred_check_branch
          %463 = sbr.rel (%p461) target = $region16
        $region15: #{tpu_custom_call.1} parent=11 // pred_region
          _
        $region16: #{tpu_custom_call.1} parent=11 // pred_fallthru
          _
        // Predicated region
        $region17: #{tpu_custom_call.1} parent=11 // pred_check
          %p464 = pneg %p126
        $region18: #{tpu_custom_call.1} parent=11 // pred_check_branch
          %466 = sbr.rel (%p464) target = $region20
        $region19: #{tpu_custom_call.1} parent=11 // pred_region
          _
        $region20: #{tpu_custom_call.1} parent=11 // pred_fallthru
          _
        // Predicated region
        $region21: #{tpu_custom_call.1} parent=11 // pred_check
          %p467 = pneg %p147
        $region22: #{tpu_custom_call.1} parent=11 // pred_check_branch
          %469 = sbr.rel (%p467) target = $region24
        $region23: #{tpu_custom_call.1} parent=11 // pred_region
          _
        $region24: #{tpu_custom_call.1} parent=11 // pred_fallthru
          _
        // Predicated region
        $region25: #{tpu_custom_call.1} parent=11 // pred_check
          %p470 = pneg %p168
        $region26: #{tpu_custom_call.1} parent=11 // pred_check_branch
          %472 = sbr.rel (%p470) target = $region28
        $region27: #{tpu_custom_call.1} parent=11 // pred_region
          _
        $region28: #{tpu_custom_call.1} parent=11 // pred_fallthru
          _
        // Predicated region
        $region29: #{tpu_custom_call.1} parent=11 // pred_check
          %p473 = pneg %p189
        $region30: #{tpu_custom_call.1} parent=11 // pred_check_branch
          %475 = sbr.rel (%p473) target = $region32
        $region31: #{tpu_custom_call.1} parent=11 // pred_region
          %477 = vsyncadd [#allocation8], 0
          %s478 = sshll.u32 %s6, 4
          %s479 = int_to_ptr.hbm [resolvable:$true] %s478
          %s480 = sshll.u32 [#allocation7], 4
          %s481 = int_to_ptr.vmem [resolvable:$true] %s480
          %486 = dma.hbm_to_vmem [thread:$0]  %s479, 256, %s481, [#allocation8], 64, 64, 4
        $region32: #{tpu_custom_call.1} parent=11 // pred_fallthru
          _
        // Predicated region
        $region33: #{tpu_custom_call.1} parent=11 // pred_check
          %p487 = pneg %p210
        $region34: #{tpu_custom_call.1} parent=11 // pred_check_branch
          %489 = sbr.rel (%p487) target = $region36
        $region35: #{tpu_custom_call.1} parent=11 // pred_region
          _
        $region36: #{tpu_custom_call.1} parent=11 // pred_fallthru
          _
        // Predicated region
        $region37: #{tpu_custom_call.1} parent=11 // pred_check
          %p490 = pneg %p231
        $region38: #{tpu_custom_call.1} parent=11 // pred_check_branch
          %492 = sbr.rel (%p490) target = $region40
        $region39: #{tpu_custom_call.1} parent=11 // pred_region
          %494 = vsyncadd [#allocation8], 0
          %s495 = sshll.u32 %s8, 4
          %s496 = int_to_ptr.hbm [resolvable:$true] %s495
          %s497 = sshll.u32 [#allocation9], 4
          %s498 = int_to_ptr.vmem [resolvable:$true] %s497
          %503 = dma.hbm_to_vmem [thread:$0]  %s496, 256, %s498, [#allocation8], 64, 64, 4
        $region40: #{tpu_custom_call.1} parent=11 // pred_fallthru
          _
        // Predicated region
        $region41: #{tpu_custom_call.1} parent=11 // pred_check
          %p504 = pneg %p252
        $region42: #{tpu_custom_call.1} parent=11 // pred_check_branch
          %506 = sbr.rel (%p504) target = $region44
        $region43: #{tpu_custom_call.1} parent=11 // pred_region
          _
        $region44: #{tpu_custom_call.1} parent=11 // pred_fallthru
          _
        // Predicated region
        $region45: #{tpu_custom_call.1} parent=11 // pred_check
          %p507 = pneg %p273
        $region46: #{tpu_custom_call.1} parent=11 // pred_check_branch
          %509 = sbr.rel (%p507) target = $region48
        $region47: #{tpu_custom_call.1} parent=11 // pred_region
          _
        $region48: #{tpu_custom_call.1} parent=11 // pred_fallthru
          _
        // Predicated region
        $region49: #{tpu_custom_call.1} parent=11 // pred_check
          %p510 = pneg %p294
        $region50: #{tpu_custom_call.1} parent=11 // pred_check_branch
          %512 = sbr.rel (%p510) target = $region52
        $region51: #{tpu_custom_call.1} parent=11 // pred_region
          _
        $region52: #{tpu_custom_call.1} parent=11 // pred_fallthru
          _
        // Predicated region
        $region53: #{tpu_custom_call.1} parent=11 // pred_check
          %p513 = pneg %p315
        $region54: #{tpu_custom_call.1} parent=11 // pred_check_branch
          %515 = sbr.rel (%p513) target = $region56
        $region55: #{tpu_custom_call.1} parent=11 // pred_region
          %517 = vsyncadd [#allocation11], 0
          %s518 = sshll.u32 %s12, 4
          %s519 = int_to_ptr.hbm [resolvable:$true] %s518
          %s520 = sshll.u32 [#allocation10], 4
          %s521 = int_to_ptr.vmem [resolvable:$true] %s520
          %526 = dma.hbm_to_vmem [thread:$0]  %s519, 256, %s521, [#allocation11], 64, 64, 4
        $region56: #{tpu_custom_call.1} parent=11 // pred_fallthru
          _
        // Predicated region
        $region57: #{tpu_custom_call.1} parent=11 // pred_check
          %p527 = pneg %p336
        $region58: #{tpu_custom_call.1} parent=11 // pred_check_branch
          %529 = sbr.rel (%p527) target = $region60
        $region59: #{tpu_custom_call.1} parent=11 // pred_region
          _
        $region60: #{tpu_custom_call.1} parent=11 // pred_fallthru
          _
        // Predicated region
        $region61: #{tpu_custom_call.1} parent=11 // pred_check
          %p530 = pneg %p357
        $region62: #{tpu_custom_call.1} parent=11 // pred_check_branch
          %532 = sbr.rel (%p530) target = $region64
        $region63: #{tpu_custom_call.1} parent=11 // pred_region
          _
        $region64: #{tpu_custom_call.1} parent=11 // pred_fallthru
          _
        // Predicated region
        $region65: #{tpu_custom_call.1} parent=11 // pred_check
          %p533 = pneg %p378
        $region66: #{tpu_custom_call.1} parent=11 // pred_check_branch
          %535 = sbr.rel (%p533) target = $region68
        $region67: #{tpu_custom_call.1} parent=11 // pred_region
          _
        $region68: #{tpu_custom_call.1} parent=11 // pred_fallthru
          _
        // Predicated region
        $region69: #{tpu_custom_call.1} parent=11 // pred_check
          %p536 = pneg %p399
        $region70: #{tpu_custom_call.1} parent=11 // pred_check_branch
          %538 = sbr.rel (%p536) target = $region72
        $region71: #{tpu_custom_call.1} parent=11 // pred_region
          _
        $region72: #{tpu_custom_call.1} parent=11 // pred_fallthru
          _
        // Predicated region
        $region73: #{tpu_custom_call.1} parent=11 // pred_check
          %p539 = pneg %p420
        $region74: #{tpu_custom_call.1} parent=11 // pred_check_branch
          %541 = sbr.rel (%p539) target = $region76
        $region75: #{tpu_custom_call.1} parent=11 // pred_region
          _
        $region76: #{tpu_custom_call.1} parent=11 // pred_fallthru
          _
      $region12: #{tpu_custom_call.1} parent=5 // pred_fallthru
        _
      %p542 = scmp.lt.s32.totalorder %s32, 2
      // Predicated region
      $region77: #{tpu_custom_call.1} parent=5 // pred_check
        %p543 = pneg %p542
      $region78: #{tpu_custom_call.1} parent=5 // pred_check_branch
        %545 = sbr.rel (%p543) target = $region80
      $region79: #{tpu_custom_call.1} parent=5 // pred_region
        // Predicated region
        $region81: #{tpu_custom_call.1} parent=79 // pred_check
          %p546 = pneg %p52
        $region82: #{tpu_custom_call.1} parent=79 // pred_check_branch
          %548 = sbr.rel (%p546) target = $region84
        $region83: #{tpu_custom_call.1} parent=79 // pred_region
          %p549 = scmp.lt.s32.totalorder %s32, 1
          %s550 = scalar_select %p549, %s32, 1
          %s551 = smul.addr %s550, 8
          %s552 = scalar_lea.vmem %s0, %s551
        $region84: #{tpu_custom_call.1} parent=79 // pred_fallthru
          _
        // Predicated region
        $region85: #{tpu_custom_call.1} parent=79 // pred_check
          %p553 = pneg %p78
        $region86: #{tpu_custom_call.1} parent=79 // pred_check_branch
          %555 = sbr.rel (%p553) target = $region88
        $region87: #{tpu_custom_call.1} parent=79 // pred_region
          %s556 = sand.u32 %s68, 1
          %s557 = scalar_lea.sflag [#allocation5], %s556
          %s558 = sand.u32 %s68, 1
          %s559 = scalar_lea.vmem [#allocation4], %s558
          %561 = vsyncadd %s557, 0
          %s562 = scalar_lea.hbm %s1, %s32
          %s564 = sshll.u32 %s562, 4
          %s565 = int_to_ptr.hbm [resolvable:$true] %s564
          %s566 = sshll.u32 %s559, 4
          %s567 = int_to_ptr.vmem [resolvable:$true] %s566
          %569 = dma.hbm_to_vmem [thread:$0]  %s565, 16, %s567, %s557
        $region88: #{tpu_custom_call.1} parent=79 // pred_fallthru
          _
      $region80: #{tpu_custom_call.1} parent=5 // pred_fallthru
        _
      %p570 = scmp.le.s32.totalorder 1, %s32
      %p571 = scmp.lt.s32.totalorder %s32, 3
      %p572 = pnand %p570, %p571
      %p573 = pneg %p572
      // Predicated region
      $region89: #{tpu_custom_call.1} parent=5 // pred_check
        _
      $region90: #{tpu_custom_call.1} parent=5 // pred_check_branch
        %575 = sbr.rel (%p572) target = $region92
      $region91: #{tpu_custom_call.1} parent=5 // pred_region
        %s576 = ssub.s32 %s32, 1
        %s577 = sand.u32 %s71, 1
        %s578 = scalar_lea.sflag [#allocation5], %s577
        %s579 = sand.u32 %s71, 1
        %s580 = scalar_lea.vmem [#allocation4], %s579
        // Predicated region
        $region93: #{tpu_custom_call.1} parent=91 // pred_check
          %p581 = pneg %p84
        $region94: #{tpu_custom_call.1} parent=91 // pred_check_branch
          %583 = sbr.rel (%p581) target = $region96
        $region95: #{tpu_custom_call.1} parent=91 // pred_region
          %585 = dma.done %s578, 16
        $region96: #{tpu_custom_call.1} parent=91 // pred_fallthru
          _
        // Predicated region
        $region97: #{tpu_custom_call.1} parent=91 // pred_check
          %p586 = pneg %p189
        $region98: #{tpu_custom_call.1} parent=91 // pred_check_branch
          %588 = sbr.rel (%p586) target = $region100
        $region99: #{tpu_custom_call.1} parent=91 // pred_region
          %590 = dma.done [#allocation8], 256
        $region100: #{tpu_custom_call.1} parent=91 // pred_fallthru
          _
        // Predicated region
        $region101: #{tpu_custom_call.1} parent=91 // pred_check
          %p591 = pneg %p231
        $region102: #{tpu_custom_call.1} parent=91 // pred_check_branch
          %593 = sbr.rel (%p591) target = $region104
        $region103: #{tpu_custom_call.1} parent=91 // pred_region
          %595 = dma.done [#allocation8], 256
        $region104: #{tpu_custom_call.1} parent=91 // pred_fallthru
          _
        // Predicated region
        $region105: #{tpu_custom_call.1} parent=91 // pred_check
          %p596 = pneg %p315
        $region106: #{tpu_custom_call.1} parent=91 // pred_check_branch
          %598 = sbr.rel (%p596) target = $region108
        $region107: #{tpu_custom_call.1} parent=91 // pred_region
          %600 = dma.done [#allocation11], 256
        $region108: #{tpu_custom_call.1} parent=91 // pred_fallthru
          _
        %p601 = scmp.lt.s32.totalorder %s37, 1
        %s602 = scalar_select %p601, %s37, 1
        %s603 = smul.addr %s602, 8
        %s604 = scalar_lea.vmem %s0, %s603
        %p605 = pneg %p58
        %p606 = pneg %p55
        %s607 = sand.u32 %s71, 1
        %s608 = scalar_lea.sflag [#allocation5], %s607
        %s609 = sand.u32 %s71, 1
        %s610 = scalar_lea.vmem [#allocation4], %s609
        %p611 = pneg %p84
        %p612 = pneg %p81
        %p613 = pneg %p105
        %p614 = pneg %p102
        %p615 = pneg %p126
        %p616 = pneg %p123
        %p617 = pneg %p147
        %p618 = pneg %p144
        %p619 = pneg %p168
        %p620 = pneg %p165
        %p621 = pneg %p189
        %p622 = pneg %p186
        %p623 = pneg %p210
        %p624 = pneg %p207
        %p625 = pneg %p231
        %p626 = pneg %p228
        %p627 = pneg %p252
        %p628 = pneg %p249
        %p629 = pneg %p273
        %p630 = pneg %p270
        %p631 = pneg %p294
        %p632 = pneg %p291
        %p633 = pneg %p315
        %p634 = pneg %p312
        %p635 = pneg %p336
        %p636 = pneg %p333
        %p637 = pneg %p357
        %p638 = pneg %p354
        %p639 = pneg %p378
        %p640 = pneg %p375
        %p641 = pneg %p399
        %p642 = pneg %p396
        %p643 = pneg %p420
        %p644 = pneg %p417
        %p645 = pneg %p446
        %p646 = pneg %p443
        %s647 = sand.u32 %s433, 1
        %s648 = scalar_lea.sflag [#allocation6], %s647
        %s649 = sand.u32 %s433, 1
        %s650 = smul.addr %s649, 8
        %s651 = scalar_lea.vmem [#allocation12], %s650
        %p652 = scmp.lt.s32.totalorder %s37, 1
        %s653 = scalar_select %p652, %s37, 1
        %s654 = smul.addr %s653, 8
        %s655 = scalar_lea.vmem %s0, %s654
        %v657 = vld [vmem:[%s655] sm:$0xff]
        %v658 = vld [vmem:[%s580] sm:$0x1]
        %v659 = vpack.c.bf16 %v657, %v657
        %v660 = vld [vmem:[%s2] sm:$0xf]
        %v661 = vld [vmem:[%s2 + $0x4] sm:$0xf]
        %v662 = vld [vmem:[%s2 + $0x8] sm:$0xf]
        %v663 = vld [vmem:[%s2 + $0xc] sm:$0xf]
        %v664 = vld [vmem:[%s3] sm:$0x1]
        %v666 = vperm.slane %v664, 0
        %v672 = vunpack.c.l.b16 %v660
        %v673 = vunpack.c.l.b16 %v661
        %v674 = vunpack.c.l.b16 %v662
        %v675 = vunpack.c.l.b16 %v663
        %v676 = vpack.c.b16 %v673, %v672
        %v677 = vpack.c.b16 %v675, %v674
        %vm680 = vcmask 261120
        %v682 = vsel %vm680, %v659, 0
        %684 = vmatpush.bf16.msra.mxu0 0
        %685 = vmatpush.bf16.msra.mxu0 0
        %686 = vmatpush.bf16.msra.mxu0 0
        %687 = vmatpush.bf16.msra.mxu0 0
        %688 = vmatpush.bf16.msra.mxu0 0
        %689 = vmatpush.bf16.msra.mxu0 0
        %690 = vmatpush.bf16.msra.mxu0 %v677
        %691 = vmatpush.bf16.msra.mxu0 %v676
        %692 = vmatmul.bf16.gmra.mxu0 %v682
        %v693 = vpop.f32.mrf.mxu0
        %v694 = vadd.f32 %v666, %v693
        %v695 = vpop.f32.mrf.mxu0
        %696 = vdwg.mxu0
        %v697 = vld [vmem:[%s4] sm:$0xf]
        %v698 = vld [vmem:[%s4 + $0x4] sm:$0xf]
        %v699 = vld [vmem:[%s4 + $0x8] sm:$0xf]
        %v700 = vld [vmem:[%s4 + $0xc] sm:$0xf]
        %v701 = vld [vmem:[%s5] sm:$0x1]
        %v703 = vperm.slane %v701, 0
        %v709 = vunpack.c.l.b16 %v697
        %v710 = vunpack.c.l.b16 %v698
        %v711 = vunpack.c.l.b16 %v699
        %v712 = vunpack.c.l.b16 %v700
        %v713 = vpack.c.b16 %v710, %v709
        %v714 = vpack.c.b16 %v712, %v711
        %717 = vmatpush.bf16.msra.mxu0 0
        %718 = vmatpush.bf16.msra.mxu0 0
        %719 = vmatpush.bf16.msra.mxu0 0
        %720 = vmatpush.bf16.msra.mxu0 0
        %721 = vmatpush.bf16.msra.mxu0 0
        %722 = vmatpush.bf16.msra.mxu0 0
        %723 = vmatpush.bf16.msra.mxu0 %v714
        %724 = vmatpush.bf16.msra.mxu0 %v713
        %725 = vmatmul.bf16.gmra.mxu0 %v682
        %v726 = vpop.f32.mrf.mxu0
        %v727 = vadd.f32 %v703, %v726
        %v728 = vpop.f32.mrf.mxu0
        %729 = vdwg.mxu0
        %v730 = vld [vmem:[#allocation7] sm:$0xf]
        %v731 = vld [vmem:[#allocation7 + $0x4] sm:$0xf]
        %v732 = vld [vmem:[#allocation7 + $0x8] sm:$0xf]
        %v733 = vld [vmem:[#allocation7 + $0xc] sm:$0xf]
        %v734 = vld [vmem:[%s7] sm:$0x1]
        %v736 = vperm.slane %v734, 0
        %v742 = vunpack.c.l.b16 %v730
        %v743 = vunpack.c.l.b16 %v731
        %v744 = vunpack.c.l.b16 %v732
        %v745 = vunpack.c.l.b16 %v733
        %v746 = vpack.c.b16 %v743, %v742
        %v747 = vpack.c.b16 %v745, %v744
        %750 = vmatpush.bf16.msra.mxu0 0
        %751 = vmatpush.bf16.msra.mxu0 0
        %752 = vmatpush.bf16.msra.mxu0 0
        %753 = vmatpush.bf16.msra.mxu0 0
        %754 = vmatpush.bf16.msra.mxu0 0
        %755 = vmatpush.bf16.msra.mxu0 0
        %756 = vmatpush.bf16.msra.mxu0 %v747
        %757 = vmatpush.bf16.msra.mxu0 %v746
        %758 = vmatmul.bf16.gmra.mxu0 %v682
        %v759 = vpop.f32.mrf.mxu0
        %v760 = vadd.f32 %v736, %v759
        %v761 = vpop.f32.mrf.mxu0
        %762 = vdwg.mxu0
        %v763 = vmul.f32 %v694, 0.35355338
        %v764 = vpack.c.bf16 %v763, %v763
        %766 = vrot.lane.b32.xlu0 %v764, 120
        %v767 = vpop.permute.xlu0 %766
        %768 = vrot.lane.b32.xlu0 %v764, 112
        %v769 = vpop.permute.xlu0 %768
        %770 = vrot.lane.b32.xlu0 %v764, 104
        %v771 = vpop.permute.xlu0 %770
        %v774 = vpack.i.b16 %v767, %v764
        %v775 = vshrl.u32 %v764, 16
        %v776 = vshrl.u32 %v767, 16
        %v777 = vpack.i.b16 %v776, %v775
        %v780 = vpack.i.b16 %v771, %v769
        %v781 = vshrl.u32 %v769, 16
        %v782 = vshrl.u32 %v771, 16
        %v783 = vpack.i.b16 %v782, %v781
        %v786 = vunpack.c.l.s4 1983009808
        %v787 = vunpack.c.0.s8 %v786
        %v788 = vperm.slane %v774, %v787
        %v791 = vunpack.c.l.s4 1983009808
        %v792 = vunpack.c.0.s8 %v791
        %v793 = vperm.slane %v780, %v792
        %v794 = vrot.slane %v793, 4
        %vm795 = vcmask 1047556
        %v796 = vsel %vm795, %v794, %v788
        %v797 = vrot.slane %v788, 4
        %v798 = vsel %vm795, %v793, %v797
        %v800 = vunpack.c.l.s4 1934713408
        %v801 = vunpack.c.0.s8 %v800
        %v802 = vperm.slane %v796, %v801
        %v804 = vunpack.c.l.s4 1934713408
        %v805 = vunpack.c.0.s8 %v804
        %v806 = vperm.slane %v798, %v805
        %v807 = vrot.slane %v802, 4
        %v808 = vsel %vm795, 0, %v807
        %v809 = vrot.slane %v806, 4
        %v810 = vsel %vm795, 0, %v809
        %v813 = vunpack.c.l.s4 1983009808
        %v814 = vunpack.c.0.s8 %v813
        %v815 = vperm.slane %v777, %v814
        %v818 = vunpack.c.l.s4 1983009808
        %v819 = vunpack.c.0.s8 %v818
        %v820 = vperm.slane %v783, %v819
        %v821 = vrot.slane %v820, 4
        %v822 = vsel %vm795, %v821, %v815
        %v823 = vrot.slane %v815, 4
        %v824 = vsel %vm795, %v820, %v823
        %v826 = vunpack.c.l.s4 1934713408
        %v827 = vunpack.c.0.s8 %v826
        %v828 = vperm.slane %v822, %v827
        %v830 = vunpack.c.l.s4 1934713408
        %v831 = vunpack.c.0.s8 %v830
        %v832 = vperm.slane %v824, %v831
        %v833 = vrot.slane %v828, 4
        %v834 = vsel %vm795, 0, %v833
        %v835 = vrot.slane %v832, 4
        %v836 = vsel %vm795, 0, %v835
        %v837 = vsel %vm795, %v809, %v802
        %v839 = vunpack.c.l.s4 1983009808
        %v840 = vunpack.c.0.s8 %v839
        %v841 = vperm.slane %v837, %v840
        %v842 = vrot.slane %v810, 4
        %v843 = vsel %vm795, %v842, %v808
        %v845 = vunpack.c.l.s4 1983009808
        %v846 = vunpack.c.0.s8 %v845
        %v847 = vperm.slane %v843, %v846
        %v848 = vrot.slane %v847, 4
        %v849 = vsel %vm795, %v848, %v841
        %v851 = vunpack.c.l.s4 1934713408
        %v852 = vunpack.c.0.s8 %v851
        %v853 = vperm.slane %v849, %v852
        %v854 = vrot.slane %v853, 4
        %v855 = vsel %vm795, 0, %v854
        %v856 = vsel %vm795, %v835, %v828
        %v858 = vunpack.c.l.s4 1983009808
        %v859 = vunpack.c.0.s8 %v858
        %v860 = vperm.slane %v856, %v859
        %v861 = vrot.slane %v836, 4
        %v862 = vsel %vm795, %v861, %v834
        %v864 = vunpack.c.l.s4 1983009808
        %v865 = vunpack.c.0.s8 %v864
        %v866 = vperm.slane %v862, %v865
        %v867 = vrot.slane %v866, 4
        %v868 = vsel %vm795, %v867, %v860
        %v870 = vunpack.c.l.s4 1934713408
        %v871 = vunpack.c.0.s8 %v870
        %v872 = vperm.slane %v868, %v871
        %v873 = vrot.slane %v872, 4
        %v874 = vsel %vm795, 0, %v873
        %v877 = vpack.i.b16 %v872, %v853
        %v879 = vshrl.u32 %v853, 16
        %v880 = vshrl.u32 %v872, 16
        %v881 = vpack.i.b16 %v880, %v879
        %v885 = vpack.i.b16 %v874, %v855
        %v887 = vshrl.u32 %v855, 16
        %v888 = vshrl.u32 %v874, 16
        %v889 = vpack.i.b16 %v888, %v887
        %vm891 = vcmask 60416
        %892 = vst.msk [vmem:[#allocation2] sm:$0xf] %vm891, %v877
        %893 = vst.msk [vmem:[#allocation2 + $0x4] sm:$0xf] %vm891, %v881
        %894 = vst.msk [vmem:[#allocation2 + $0x8] sm:$0xf] %vm891, %v885
        %895 = vst.msk [vmem:[#allocation2 + $0xc] sm:$0xf] %vm891, %v889
        %v896 = vpack.c.bf16 %v727, %v727
        %898 = vrot.lane.b32.xlu0 %v896, 120
        %v899 = vpop.permute.xlu0 %898
        %900 = vrot.lane.b32.xlu0 %v896, 112
        %v901 = vpop.permute.xlu0 %900
        %902 = vrot.lane.b32.xlu0 %v896, 104
        %v903 = vpop.permute.xlu0 %902
        %v906 = vpack.i.b16 %v899, %v896
        %v907 = vshrl.u32 %v896, 16
        %v908 = vshrl.u32 %v899, 16
        %v909 = vpack.i.b16 %v908, %v907
        %v912 = vpack.i.b16 %v903, %v901
        %v913 = vshrl.u32 %v901, 16
        %v914 = vshrl.u32 %v903, 16
        %v915 = vpack.i.b16 %v914, %v913
        %v918 = vunpack.c.l.s4 1983009808
        %v919 = vunpack.c.0.s8 %v918
        %v920 = vperm.slane %v906, %v919
        %v923 = vunpack.c.l.s4 1983009808
        %v924 = vunpack.c.0.s8 %v923
        %v925 = vperm.slane %v912, %v924
        %v926 = vrot.slane %v925, 4
        %v927 = vsel %vm795, %v926, %v920
        %v928 = vrot.slane %v920, 4
        %v929 = vsel %vm795, %v925, %v928
        %v931 = vunpack.c.l.s4 1934713408
        %v932 = vunpack.c.0.s8 %v931
        %v933 = vperm.slane %v927, %v932
        %v935 = vunpack.c.l.s4 1934713408
        %v936 = vunpack.c.0.s8 %v935
        %v937 = vperm.slane %v929, %v936
        %v938 = vrot.slane %v933, 4
        %v939 = vsel %vm795, 0, %v938
        %v940 = vrot.slane %v937, 4
        %v941 = vsel %vm795, 0, %v940
        %v944 = vunpack.c.l.s4 1983009808
        %v945 = vunpack.c.0.s8 %v944
        %v946 = vperm.slane %v909, %v945
        %v949 = vunpack.c.l.s4 1983009808
        %v950 = vunpack.c.0.s8 %v949
        %v951 = vperm.slane %v915, %v950
        %v952 = vrot.slane %v951, 4
        %v953 = vsel %vm795, %v952, %v946
        %v954 = vrot.slane %v946, 4
        %v955 = vsel %vm795, %v951, %v954
        %v957 = vunpack.c.l.s4 1934713408
        %v958 = vunpack.c.0.s8 %v957
        %v959 = vperm.slane %v953, %v958
        %v961 = vunpack.c.l.s4 1934713408
        %v962 = vunpack.c.0.s8 %v961
        %v963 = vperm.slane %v955, %v962
        %v964 = vrot.slane %v959, 4
        %v965 = vsel %vm795, 0, %v964
        %v966 = vrot.slane %v963, 4
        %v967 = vsel %vm795, 0, %v966
        %v968 = vsel %vm795, %v940, %v933
        %v970 = vunpack.c.l.s4 1983009808
        %v971 = vunpack.c.0.s8 %v970
        %v972 = vperm.slane %v968, %v971
        %v973 = vrot.slane %v941, 4
        %v974 = vsel %vm795, %v973, %v939
        %v976 = vunpack.c.l.s4 1983009808
        %v977 = vunpack.c.0.s8 %v976
        %v978 = vperm.slane %v974, %v977
        %v979 = vrot.slane %v978, 4
        %v980 = vsel %vm795, %v979, %v972
        %v982 = vunpack.c.l.s4 1934713408
        %v983 = vunpack.c.0.s8 %v982
        %v984 = vperm.slane %v980, %v983
        %v985 = vrot.slane %v984, 4
        %v986 = vsel %vm795, 0, %v985
        %v987 = vsel %vm795, %v966, %v959
        %v989 = vunpack.c.l.s4 1983009808
        %v990 = vunpack.c.0.s8 %v989
        %v991 = vperm.slane %v987, %v990
        %v992 = vrot.slane %v967, 4
        %v993 = vsel %vm795, %v992, %v965
        %v995 = vunpack.c.l.s4 1983009808
        %v996 = vunpack.c.0.s8 %v995
        %v997 = vperm.slane %v993, %v996
        %v998 = vrot.slane %v997, 4
        %v999 = vsel %vm795, %v998, %v991
        %v1001 = vunpack.c.l.s4 1934713408
        %v1002 = vunpack.c.0.s8 %v1001
        %v1003 = vperm.slane %v999, %v1002
        %v1004 = vrot.slane %v1003, 4
        %v1005 = vsel %vm795, 0, %v1004
        %v1008 = vpack.i.b16 %v1003, %v984
        %v1009 = vshrl.u32 %v984, 16
        %v1010 = vshrl.u32 %v1003, 16
        %v1011 = vpack.i.b16 %v1010, %v1009
        %v1014 = vpack.i.b16 %v1005, %v986
        %v1015 = vshrl.u32 %v986, 16
        %v1016 = vshrl.u32 %v1005, 16
        %v1017 = vpack.i.b16 %v1016, %v1015
        %v1018 = vpack.c.bf16 %v760, %v760
        %1020 = vrot.lane.b32.xlu0 %v1018, 120
        %v1021 = vpop.permute.xlu0 %1020
        %1022 = vrot.lane.b32.xlu0 %v1018, 112
        %v1023 = vpop.permute.xlu0 %1022
        %1024 = vrot.lane.b32.xlu0 %v1018, 104
        %v1025 = vpop.permute.xlu0 %1024
        %v1028 = vpack.i.b16 %v1021, %v1018
        %v1029 = vshrl.u32 %v1018, 16
        %v1030 = vshrl.u32 %v1021, 16
        %v1031 = vpack.i.b16 %v1030, %v1029
        %v1034 = vpack.i.b16 %v1025, %v1023
        %v1035 = vshrl.u32 %v1023, 16
        %v1036 = vshrl.u32 %v1025, 16
        %v1037 = vpack.i.b16 %v1036, %v1035
        %v1040 = vunpack.c.l.s4 1983009808
        %v1041 = vunpack.c.0.s8 %v1040
        %v1042 = vperm.slane %v1028, %v1041
        %v1045 = vunpack.c.l.s4 1983009808
        %v1046 = vunpack.c.0.s8 %v1045
        %v1047 = vperm.slane %v1034, %v1046
        %v1048 = vrot.slane %v1047, 4
        %v1049 = vsel %vm795, %v1048, %v1042
        %v1050 = vrot.slane %v1042, 4
        %v1051 = vsel %vm795, %v1047, %v1050
        %v1053 = vunpack.c.l.s4 1934713408
        %v1054 = vunpack.c.0.s8 %v1053
        %v1055 = vperm.slane %v1049, %v1054
        %v1057 = vunpack.c.l.s4 1934713408
        %v1058 = vunpack.c.0.s8 %v1057
        %v1059 = vperm.slane %v1051, %v1058
        %v1060 = vrot.slane %v1055, 4
        %v1061 = vsel %vm795, 0, %v1060
        %v1062 = vrot.slane %v1059, 4
        %v1063 = vsel %vm795, 0, %v1062
        %v1066 = vunpack.c.l.s4 1983009808
        %v1067 = vunpack.c.0.s8 %v1066
        %v1068 = vperm.slane %v1031, %v1067
        %v1071 = vunpack.c.l.s4 1983009808
        %v1072 = vunpack.c.0.s8 %v1071
        %v1073 = vperm.slane %v1037, %v1072
        %v1074 = vrot.slane %v1073, 4
        %v1075 = vsel %vm795, %v1074, %v1068
        %v1076 = vrot.slane %v1068, 4
        %v1077 = vsel %vm795, %v1073, %v1076
        %v1079 = vunpack.c.l.s4 1934713408
        %v1080 = vunpack.c.0.s8 %v1079
        %v1081 = vperm.slane %v1075, %v1080
        %v1083 = vunpack.c.l.s4 1934713408
        %v1084 = vunpack.c.0.s8 %v1083
        %v1085 = vperm.slane %v1077, %v1084
        %v1086 = vrot.slane %v1081, 4
        %v1087 = vsel %vm795, 0, %v1086
        %v1088 = vrot.slane %v1085, 4
        %v1089 = vsel %vm795, 0, %v1088
        %v1090 = vsel %vm795, %v1062, %v1055
        %v1092 = vunpack.c.l.s4 1983009808
        %v1093 = vunpack.c.0.s8 %v1092
        %v1094 = vperm.slane %v1090, %v1093
        %v1095 = vrot.slane %v1063, 4
        %v1096 = vsel %vm795, %v1095, %v1061
        %v1098 = vunpack.c.l.s4 1983009808
        %v1099 = vunpack.c.0.s8 %v1098
        %v1100 = vperm.slane %v1096, %v1099
        %v1101 = vrot.slane %v1100, 4
        %v1102 = vsel %vm795, %v1101, %v1094
        %v1104 = vunpack.c.l.s4 1934713408
        %v1105 = vunpack.c.0.s8 %v1104
        %v1106 = vperm.slane %v1102, %v1105
        %v1107 = vrot.slane %v1106, 4
        %v1108 = vsel %vm795, 0, %v1107
        %v1109 = vsel %vm795, %v1088, %v1081
        %v1111 = vunpack.c.l.s4 1983009808
        %v1112 = vunpack.c.0.s8 %v1111
        %v1113 = vperm.slane %v1109, %v1112
        %v1114 = vrot.slane %v1089, 4
        %v1115 = vsel %vm795, %v1114, %v1087
        %v1117 = vunpack.c.l.s4 1983009808
        %v1118 = vunpack.c.0.s8 %v1117
        %v1119 = vperm.slane %v1115, %v1118
        %v1120 = vrot.slane %v1119, 4
        %v1121 = vsel %vm795, %v1120, %v1113
        %v1123 = vunpack.c.l.s4 1934713408
        %v1124 = vunpack.c.0.s8 %v1123
        %v1125 = vperm.slane %v1121, %v1124
        %v1126 = vrot.slane %v1125, 4
        %v1127 = vsel %vm795, 0, %v1126
        %v1130 = vpack.i.b16 %v1125, %v1106
        %v1131 = vshrl.u32 %v1106, 16
        %v1132 = vshrl.u32 %v1125, 16
        %v1133 = vpack.i.b16 %v1132, %v1131
        %v1136 = vpack.i.b16 %v1127, %v1108
        %v1137 = vshrl.u32 %v1108, 16
        %v1138 = vshrl.u32 %v1127, 16
        %v1139 = vpack.i.b16 %v1138, %v1137
        %v1140 = vld [vmem:[#allocation9] sm:$0xf]
        %v1141 = vld [vmem:[#allocation9 + $0x4] sm:$0xf]
        %v1142 = vld [vmem:[#allocation9 + $0x8] sm:$0xf]
        %v1143 = vld [vmem:[#allocation9 + $0xc] sm:$0xf]
        %v1144 = vld [vmem:[%s9] sm:$0x1]
        %v1145 = vld [vmem:[#allocation2] sm:$0xf]
        %v1146 = vld [vmem:[#allocation2 + $0x4] sm:$0xf]
        %v1147 = vld [vmem:[#allocation2 + $0x8] sm:$0xf]
        %v1148 = vld [vmem:[#allocation2 + $0xc] sm:$0xf]
        %v1150 = vperm.slane %v658, 0
        %vm1152 = vcmask 64512
        %v1154 = vsel %vm1152, %v1145, 0
        %v1157 = vsel %vm1152, %v1008, 0
        %1159 = vmatpush.bf16.xpose.msra.mxu0 0
        %1160 = vmatpush.bf16.xpose.msra.mxu0 0
        %1161 = vmatpush.bf16.xpose.msra.mxu0 0
        %1162 = vmatpush.bf16.xpose.msra.mxu0 0
        %1163 = vmatpush.bf16.xpose.msra.mxu0 0
        %1164 = vmatpush.bf16.xpose.msra.mxu0 0
        %1165 = vmatpush.bf16.xpose.msra.mxu0 0
        %1166 = vmatpush.bf16.xpose.msra.mxu0 %v1157
        %1167 = vmatmul.bf16.gmra.mxu0 %v1154
        %v1168 = vpop.f32.mrf.mxu0
        %v1169 = vadd.f32 %v1150, %v1168
        %v1170 = vpop.f32.mrf.mxu0
        %1171 = vdwg.mxu0
        %v1173 = vsel %vm1152, %v1146, 0
        %v1176 = vsel %vm1152, %v1011, 0
        %1178 = vmatpush.bf16.xpose.msra.mxu0 0
        %1179 = vmatpush.bf16.xpose.msra.mxu0 0
        %1180 = vmatpush.bf16.xpose.msra.mxu0 0
        %1181 = vmatpush.bf16.xpose.msra.mxu0 0
        %1182 = vmatpush.bf16.xpose.msra.mxu0 0
        %1183 = vmatpush.bf16.xpose.msra.mxu0 0
        %1184 = vmatpush.bf16.xpose.msra.mxu0 0
        %1185 = vmatpush.bf16.xpose.msra.mxu0 %v1176
        %1186 = vmatmul.bf16.gmra.mxu0 %v1173
        %v1187 = vpop.f32.mrf.mxu0
        %v1188 = vadd.f32 %v1150, %v1187
        %v1189 = vpop.f32.mrf.mxu0
        %1190 = vdwg.mxu0
        %v1192 = vsel %vm1152, %v1147, 0
        %v1195 = vsel %vm1152, %v1014, 0
        %1197 = vmatpush.bf16.xpose.msra.mxu0 0
        %1198 = vmatpush.bf16.xpose.msra.mxu0 0
        %1199 = vmatpush.bf16.xpose.msra.mxu0 0
        %1200 = vmatpush.bf16.xpose.msra.mxu0 0
        %1201 = vmatpush.bf16.xpose.msra.mxu0 0
        %1202 = vmatpush.bf16.xpose.msra.mxu0 0
        %1203 = vmatpush.bf16.xpose.msra.mxu0 0
        %1204 = vmatpush.bf16.xpose.msra.mxu0 %v1195
        %1205 = vmatmul.bf16.gmra.mxu0 %v1192
        %v1206 = vpop.f32.mrf.mxu0
        %v1207 = vadd.f32 %v1150, %v1206
        %v1208 = vpop.f32.mrf.mxu0
        %1209 = vdwg.mxu0
        %v1211 = vsel %vm1152, %v1148, 0
        %v1214 = vsel %vm1152, %v1017, 0
        %1216 = vmatpush.bf16.xpose.msra.mxu0 0
        %1217 = vmatpush.bf16.xpose.msra.mxu0 0
        %1218 = vmatpush.bf16.xpose.msra.mxu0 0
        %1219 = vmatpush.bf16.xpose.msra.mxu0 0
        %1220 = vmatpush.bf16.xpose.msra.mxu0 0
        %1221 = vmatpush.bf16.xpose.msra.mxu0 0
        %1222 = vmatpush.bf16.xpose.msra.mxu0 0
        %1223 = vmatpush.bf16.xpose.msra.mxu0 %v1214
        %1224 = vmatmul.bf16.gmra.mxu0 %v1211
        %v1225 = vpop.f32.mrf.mxu0
        %v1226 = vadd.f32 %v1150, %v1225
        %v1227 = vpop.f32.mrf.mxu0
        %1228 = vdwg.mxu0
        %v1229 = vsel %vm1152, %v1169, -inf
        %1230 = vmax.xlane.f32.xlu0 %v1229
        %v1231 = vpop.xlane.xlu0 %1230
        %v1232 = vsel %vm1152, %v1188, -inf
        %1233 = vmax.xlane.f32.xlu0 %v1232
        %v1234 = vpop.xlane.xlu0 %1233
        %v1235 = vsel %vm1152, %v1207, -inf
        %1236 = vmax.xlane.f32.xlu0 %v1235
        %v1237 = vpop.xlane.xlu0 %1236
        %v1238 = vsel %vm1152, %v1226, -inf
        %1239 = vmax.xlane.f32.xlu0 %v1238
        %v1240 = vpop.xlane.xlu0 %1239
        %v1241 = vsub.f32 %v1169, %v1231
        %v1242 = vsub.f32 %v1188, %v1234
        %v1243 = vsub.f32 %v1207, %v1237
        %v1244 = vsub.f32 %v1226, %v1240
        %v1245 = vmul.f32 %v1241, 1.442695
        %v1246 = vpow.pop %v1245
        %v1247 = vmul.f32 %v1242, 1.442695
        %v1248 = vpow.pop %v1247
        %v1249 = vmul.f32 %v1243, 1.442695
        %v1250 = vpow.pop %v1249
        %v1251 = vmul.f32 %v1244, 1.442695
        %v1252 = vpow.pop %v1251
        %v1253 = vsel %vm1152, %v1246, 0.0
        %1254 = vadd.xlane.f32.xlu0 %v1253
        %v1255 = vpop.xlane.xlu0 %1254
        %v1256 = vsel %vm1152, %v1248, 0.0
        %1257 = vadd.xlane.f32.xlu0 %v1256
        %v1258 = vpop.xlane.xlu0 %1257
        %v1259 = vsel %vm1152, %v1250, 0.0
        %1260 = vadd.xlane.f32.xlu0 %v1259
        %v1261 = vpop.xlane.xlu0 %1260
        %v1262 = vsel %vm1152, %v1252, 0.0
        %1263 = vadd.xlane.f32.xlu0 %v1262
        %v1264 = vpop.xlane.xlu0 %1263
        %v1265 = vpack.c.bf16 %v1246, %v1246
        %v1266 = vpack.c.bf16 %v1248, %v1248
        %v1267 = vpack.c.bf16 %v1250, %v1250
        %v1268 = vpack.c.bf16 %v1252, %v1252
        %v1270 = vsel %vm1152, %v1265, 0
        %vm1272 = vcmask 1043456
        %v1274 = vsel %vm1272, %v1130, 0
        %1276 = vmatpush.bf16.msra.mxu0 0
        %1277 = vmatpush.bf16.msra.mxu0 0
        %1278 = vmatpush.bf16.msra.mxu0 0
        %1279 = vmatpush.bf16.msra.mxu0 0
        %1280 = vmatpush.bf16.msra.mxu0 0
        %1281 = vmatpush.bf16.msra.mxu0 0
        %1282 = vmatpush.bf16.msra.mxu0 0
        %1283 = vmatpush.bf16.msra.mxu0 %v1274
        %1284 = vmatmul.bf16.gmra.mxu0 %v1270
        %v1285 = vpop.f32.mrf.mxu0
        %v1286 = vadd.f32 0.0, %v1285
        %v1287 = vpop.f32.mrf.mxu0
        %1288 = vdwg.mxu0
        %v1290 = vsel %vm1152, %v1266, 0
        %v1293 = vsel %vm1272, %v1133, 0
        %1295 = vmatpush.bf16.msra.mxu0 0
        %1296 = vmatpush.bf16.msra.mxu0 0
        %1297 = vmatpush.bf16.msra.mxu0 0
        %1298 = vmatpush.bf16.msra.mxu0 0
        %1299 = vmatpush.bf16.msra.mxu0 0
        %1300 = vmatpush.bf16.msra.mxu0 0
        %1301 = vmatpush.bf16.msra.mxu0 0
        %1302 = vmatpush.bf16.msra.mxu0 %v1293
        %1303 = vmatmul.bf16.gmra.mxu0 %v1290
        %v1304 = vpop.f32.mrf.mxu0
        %v1305 = vadd.f32 0.0, %v1304
        %v1306 = vpop.f32.mrf.mxu0
        %1307 = vdwg.mxu0
        %v1309 = vsel %vm1152, %v1267, 0
        %v1312 = vsel %vm1272, %v1136, 0
        %1314 = vmatpush.bf16.msra.mxu0 0
        %1315 = vmatpush.bf16.msra.mxu0 0
        %1316 = vmatpush.bf16.msra.mxu0 0
        %1317 = vmatpush.bf16.msra.mxu0 0
        %1318 = vmatpush.bf16.msra.mxu0 0
        %1319 = vmatpush.bf16.msra.mxu0 0
        %1320 = vmatpush.bf16.msra.mxu0 0
        %1321 = vmatpush.bf16.msra.mxu0 %v1312
        %1322 = vmatmul.bf16.gmra.mxu0 %v1309
        %v1323 = vpop.f32.mrf.mxu0
        %v1324 = vadd.f32 0.0, %v1323
        %v1325 = vpop.f32.mrf.mxu0
        %1326 = vdwg.mxu0
        %v1328 = vsel %vm1152, %v1268, 0
        %v1331 = vsel %vm1272, %v1139, 0
        %1333 = vmatpush.bf16.msra.mxu0 0
        %1334 = vmatpush.bf16.msra.mxu0 0
        %1335 = vmatpush.bf16.msra.mxu0 0
        %1336 = vmatpush.bf16.msra.mxu0 0
        %1337 = vmatpush.bf16.msra.mxu0 0
        %1338 = vmatpush.bf16.msra.mxu0 0
        %1339 = vmatpush.bf16.msra.mxu0 0
        %1340 = vmatpush.bf16.msra.mxu0 %v1331
        %1341 = vmatmul.bf16.gmra.mxu0 %v1328
        %v1342 = vpop.f32.mrf.mxu0
        %v1343 = vadd.f32 0.0, %v1342
        %v1344 = vpop.f32.mrf.mxu0
        %1345 = vdwg.mxu0
        %v1346 = vrcp.pop %v1255
        %v1347 = vrcp.pop %v1258
        %v1348 = vrcp.pop %v1261
        %v1349 = vrcp.pop %v1264
        %v1350 = vmul.f32 %v1286, %v1346
        %v1351 = vmul.f32 %v1305, %v1347
        %v1352 = vmul.f32 %v1324, %v1348
        %v1353 = vmul.f32 %v1343, %v1349
        %v1354 = vpack.c.bf16 %v1350, %v1350
        %v1355 = vpack.c.bf16 %v1351, %v1351
        %v1356 = vpack.c.bf16 %v1352, %v1352
        %v1357 = vpack.c.bf16 %v1353, %v1353
        %v1359 = vsel %vm1152, %v1354, 0
        %v1362 = vsel %vm1272, %v1140, 0
        %1364 = vmatpush.bf16.msra.mxu0 0
        %1365 = vmatpush.bf16.msra.mxu0 0
        %1366 = vmatpush.bf16.msra.mxu0 0
        %1367 = vmatpush.bf16.msra.mxu0 0
        %1368 = vmatpush.bf16.msra.mxu0 0
        %1369 = vmatpush.bf16.msra.mxu0 0
        %1370 = vmatpush.bf16.msra.mxu0 0
        %1371 = vmatpush.bf16.msra.mxu0 %v1362
        %1372 = vmatmul.bf16.gmra.mxu0 %v1359
        %v1373 = vpop.f32.mrf.mxu0
        %v1374 = vadd.f32 0.0, %v1373
        %v1375 = vpop.f32.mrf.mxu0
        %1376 = vdwg.mxu0
        %v1378 = vsel %vm1152, %v1355, 0
        %v1381 = vsel %vm1272, %v1141, 0
        %1383 = vmatpush.bf16.msra.mxu0 0
        %1384 = vmatpush.bf16.msra.mxu0 0
        %1385 = vmatpush.bf16.msra.mxu0 0
        %1386 = vmatpush.bf16.msra.mxu0 0
        %1387 = vmatpush.bf16.msra.mxu0 0
        %1388 = vmatpush.bf16.msra.mxu0 0
        %1389 = vmatpush.bf16.msra.mxu0 0
        %1390 = vmatpush.bf16.msra.mxu0 %v1381
        %1391 = vmatmul.bf16.gmra.mxu0 %v1378
        %v1392 = vpop.f32.mrf.mxu0
        %v1393 = vadd.f32 0.0, %v1392
        %v1394 = vpop.f32.mrf.mxu0
        %1395 = vdwg.mxu0
        %v1397 = vsel %vm1152, %v1356, 0
        %v1400 = vsel %vm1272, %v1142, 0
        %1402 = vmatpush.bf16.msra.mxu0 0
        %1403 = vmatpush.bf16.msra.mxu0 0
        %1404 = vmatpush.bf16.msra.mxu0 0
        %1405 = vmatpush.bf16.msra.mxu0 0
        %1406 = vmatpush.bf16.msra.mxu0 0
        %1407 = vmatpush.bf16.msra.mxu0 0
        %1408 = vmatpush.bf16.msra.mxu0 0
        %1409 = vmatpush.bf16.msra.mxu0 %v1400
        %1410 = vmatmul.bf16.gmra.mxu0 %v1397
        %v1411 = vpop.f32.mrf.mxu0
        %v1412 = vadd.f32 0.0, %v1411
        %v1413 = vpop.f32.mrf.mxu0
        %1414 = vdwg.mxu0
        %v1416 = vsel %vm1152, %v1357, 0
        %v1419 = vsel %vm1272, %v1143, 0
        %1421 = vmatpush.bf16.msra.mxu0 0
        %1422 = vmatpush.bf16.msra.mxu0 0
        %1423 = vmatpush.bf16.msra.mxu0 0
        %1424 = vmatpush.bf16.msra.mxu0 0
        %1425 = vmatpush.bf16.msra.mxu0 0
        %1426 = vmatpush.bf16.msra.mxu0 0
        %1427 = vmatpush.bf16.msra.mxu0 0
        %1428 = vmatpush.bf16.msra.mxu0 %v1419
        %1429 = vmatmul.bf16.gmra.mxu0 %v1416
        %v1430 = vpop.f32.mrf.mxu0
        %v1431 = vadd.f32 0.0, %v1430
        %v1432 = vpop.f32.mrf.mxu0
        %1433 = vdwg.mxu0
        %v1434 = vsel %vm680, %v1374, 0.0
        %v1435 = vsel %vm680, %v1393, 0.0
        %v1436 = vadd.f32 %v1434, %v1435
        %v1437 = vsel %vm680, %v1412, 0.0
        %v1438 = vadd.f32 %v1436, %v1437
        %v1439 = vsel %vm680, %v1431, 0.0
        %v1440 = vadd.f32 %v1438, %v1439
        %v1442 = vperm.slane %v1144, 0
        %v1444 = vadd.f32 %v1440, %v1442
        %1445 = vst.msk [vmem:[#allocation3] sm:$0xff] %vm680, %v1444
        %v1446 = vld [vmem:[#allocation3] sm:$0xff]
        %v1447 = vadd.f32 %v1446, %v657
        %v1448 = vld [vmem:[%s10] sm:$0x1]
        %v1449 = vld [vmem:[%s11] sm:$0x1]
        %v1450 = vsel %vm680, %v1447, 0.0
        %1451 = vadd.xlane.f32.xlu0 %v1450
        %v1452 = vpop.xlane.xlu0 %1451
        %v1453 = vrcp.pop 32.0
        %v1454 = vmul.f32 32.0, %v1453
        %v1455 = vsub.f32 1.0, %v1454
        %v1456 = vmul.f32 %v1453, %v1455
        %v1457 = vadd.f32 %v1453, %v1456
        %vm1458 = vweird.f32 %v1453
        %v1459 = vsel %vm1458, %v1453, %v1457
        %v1460 = vmul.f32 %v1452, %v1459
        %v1461 = vsub.f32 %v1447, %v1460
        %v1462 = vmul.f32 %v1461, %v1461
        %v1463 = vsel %vm680, %v1462, 0.0
        %1464 = vadd.xlane.f32.xlu0 %v1463
        %v1465 = vpop.xlane.xlu0 %1464
        %v1466 = vmul.f32 %v1465, %v1459
        %v1467 = vadd.f32 %v1466, 1e-12
        %v1468 = vrsqrt.pop %v1467
        %v1469 = vmul.f32 %v1468, %v1467
        %v1470 = vmul.f32 %v1469, %v1468
        %v1471 = vmul.f32 0.5, %v1470
        %v1472 = vsub.f32 1.5, %v1471
        %v1473 = vmul.f32 %v1468, %v1472
        %v1474 = vmul.f32 %v1467, %v1473
        %vm1475 = vcmp.eq.f32.partialorder %v1467, inf
        %v1476 = vsel %vm1475, %v1467, %v1474
        %vm1477 = vcmp.eq.f32.partialorder %v1467, 0.0
        %v1478 = vand.u32 %v1467, 2147483648
        %v1479 = vsel %vm1477, %v1478, %v1476
        %v1480 = vrcp.pop %v1479
        %v1481 = vmul.f32 %v1479, %v1480
        %v1482 = vsub.f32 1.0, %v1481
        %v1483 = vmul.f32 %v1480, %v1482
        %v1484 = vadd.f32 %v1480, %v1483
        %vm1485 = vweird.f32 %v1479
        %vm1486 = vweird.f32 %v1480
        %vm1487 = vmor %vm1485, %vm1486
        %v1488 = vsel %vm1487, %v1480, %v1484
        %v1489 = vand.u32 2147483647, %v1479
        %vm1490 = vcmp.eq.f32.partialorder %v1489, 8.507059e+37
        %v1491 = vand.u32 %v1479, 2147483648
        %v1492 = vor.u32 1.1754944e-38, %v1491
        %v1493 = vsel %vm1490, %v1492, %v1488
        %v1494 = vmul.f32 %v1461, %v1493
        %v1496 = vperm.slane %v1448, 0
        %v1498 = vmul.f32 %v1496, %v1494
        %v1500 = vperm.slane %v1449, 0
        %v1502 = vadd.f32 %v1498, %v1500
        %v1503 = vpack.c.bf16 %v1502, %v1502
        %v1504 = vld [vmem:[#allocation10] sm:$0xf]
        %v1505 = vld [vmem:[#allocation10 + $0x4] sm:$0xf]
        %v1506 = vld [vmem:[#allocation10 + $0x8] sm:$0xf]
        %v1507 = vld [vmem:[#allocation10 + $0xc] sm:$0xf]
        %v1508 = vld [vmem:[%s13] sm:$0x1]
        %v1510 = vperm.slane %v1508, 0
        %v1516 = vunpack.c.l.b16 %v1504
        %v1517 = vunpack.c.l.b16 %v1505
        %v1518 = vunpack.c.l.b16 %v1506
        %v1519 = vunpack.c.l.b16 %v1507
        %v1520 = vpack.c.b16 %v1517, %v1516
        %v1521 = vpack.c.b16 %v1519, %v1518
        %v1525 = vsel %vm680, %v1503, 0
        %1527 = vmatpush.bf16.msra.mxu0 0
        %1528 = vmatpush.bf16.msra.mxu0 0
        %1529 = vmatpush.bf16.msra.mxu0 0
        %1530 = vmatpush.bf16.msra.mxu0 0
        %1531 = vmatpush.bf16.msra.mxu0 0
        %1532 = vmatpush.bf16.msra.mxu0 0
        %1533 = vmatpush.bf16.msra.mxu0 %v1521
        %1534 = vmatpush.bf16.msra.mxu0 %v1520
        %1535 = vmatmul.bf16.gmra.mxu0 %v1525
        %v1536 = vpop.f32.mrf.mxu0
        %v1537 = vadd.f32 %v1510, %v1536
        %v1538 = vpop.f32.mrf.mxu0
        %1539 = vdwg.mxu0
        %v1540 = vmul.f32 %v1537, 0.5
        %v1541 = vrcp.pop 1.4142135
        %v1542 = vmul.f32 1.4142135, %v1541
        %v1543 = vsub.f32 1.0, %v1542
        %v1544 = vmul.f32 %v1541, %v1543
        %v1545 = vadd.f32 %v1541, %v1544
        %vm1546 = vweird.f32 %v1541
        %v1547 = vsel %vm1546, %v1541, %v1545
        %v1548 = vmul.f32 %v1537, %v1547
        %v1549 = vmul.f32 %v1548, %v1548
        %v1550 = vmin.f32 16.0, %v1549
        %v1551 = vmul.f32 %v1550, 2.1237322e-06
        %v1552 = vadd.f32 %v1551, 0.00028619796
        %v1553 = vmul.f32 %v1550, %v1552
        %v1554 = vadd.f32 %v1553, 0.0036580483
        %v1555 = vmul.f32 %v1550, %v1554
        %v1556 = vadd.f32 %v1555, 0.05243302
        %v1557 = vmul.f32 %v1550, %v1556
        %v1558 = vadd.f32 %v1557, 0.18741608
        %v1559 = vmul.f32 %v1550, %v1558
        %v1560 = vadd.f32 %v1559, 1.1283791
        %v1561 = vmul.f32 %v1548, %v1560
        %v1562 = vmul.f32 %v1550, 3.8918573e-05
        %v1563 = vadd.f32 %v1562, 0.001143296
        %v1564 = vmul.f32 %v1550, %v1563
        %v1565 = vadd.f32 %v1564, 0.014752088
        %v1566 = vmul.f32 %v1550, %v1565
        %v1567 = vadd.f32 %v1566, 0.112945676
        %v1568 = vmul.f32 %v1550, %v1567
        %v1569 = vadd.f32 %v1568, 0.4994258
        %v1570 = vmul.f32 %v1550, %v1569
        %v1571 = vadd.f32 %v1570, 1.0
        %v1572 = vrcp.pop %v1571
        %v1573 = vmul.f32 %v1571, %v1572
        %v1574 = vsub.f32 1.0, %v1573
        %v1575 = vmul.f32 %v1572, %v1574
        %v1576 = vadd.f32 %v1572, %v1575
        %vm1577 = vweird.f32 %v1571
        %vm1578 = vweird.f32 %v1572
        %vm1579 = vmor %vm1577, %vm1578
        %v1580 = vsel %vm1579, %v1572, %v1576
        %v1581 = vand.u32 2147483647, %v1571
        %vm1582 = vcmp.eq.f32.partialorder %v1581, 8.507059e+37
        %v1583 = vand.u32 %v1571, 2147483648
        %v1584 = vor.u32 1.1754944e-38, %v1583
        %v1585 = vsel %vm1582, %v1584, %v1580
        %v1586 = vmul.f32 %v1561, %v1585
        %v1587 = vmin.f32 %v1586, 1.0
        %v1588 = vmax.f32 %v1587, -1.0
        %v1589 = vadd.f32 %v1588, 1.0
        %v1590 = vmul.f32 %v1540, %v1589
        %v1591 = vpack.c.bf16 %v1590, %v1590
        %v1592 = vld [vmem:[%s14] sm:$0xf]
        %v1593 = vld [vmem:[%s14 + $0x4] sm:$0xf]
        %v1594 = vld [vmem:[%s14 + $0x8] sm:$0xf]
        %v1595 = vld [vmem:[%s14 + $0xc] sm:$0xf]
        %v1596 = vld [vmem:[%s14 + $0x10] sm:$0xf]
        %v1597 = vld [vmem:[%s14 + $0x14] sm:$0xf]
        %v1598 = vld [vmem:[%s14 + $0x18] sm:$0xf]
        %v1599 = vld [vmem:[%s14 + $0x1c] sm:$0xf]
        %v1600 = vld [vmem:[%s15] sm:$0x1]
        %v1602 = vperm.slane %v1600, 0
        %v1612 = vunpack.c.l.b16 %v1592
        %v1613 = vunpack.c.l.b16 %v1593
        %v1614 = vunpack.c.l.b16 %v1594
        %v1615 = vunpack.c.l.b16 %v1595
        %v1616 = vunpack.c.l.b16 %v1596
        %v1617 = vunpack.c.l.b16 %v1597
        %v1618 = vunpack.c.l.b16 %v1598
        %v1619 = vunpack.c.l.b16 %v1599
        %v1620 = vpack.c.b16 %v1613, %v1612
        %v1621 = vpack.c.b16 %v1615, %v1614
        %v1622 = vpack.c.b16 %v1617, %v1616
        %v1623 = vpack.c.b16 %v1619, %v1618
        %vm1628 = vcmask 523264
        %v1630 = vsel %vm1628, %v1591, 0
        %1632 = vmatpush.bf16.msra.mxu0 0
        %1633 = vmatpush.bf16.msra.mxu0 0
        %1634 = vmatpush.bf16.msra.mxu0 0
        %1635 = vmatpush.bf16.msra.mxu0 0
        %1636 = vmatpush.bf16.msra.mxu0 %v1623
        %1637 = vmatpush.bf16.msra.mxu0 %v1622
        %1638 = vmatpush.bf16.msra.mxu0 %v1621
        %1639 = vmatpush.bf16.msra.mxu0 %v1620
        %1640 = vmatmul.bf16.gmra.mxu0 %v1630
        %v1641 = vpop.f32.mrf.mxu0
        %v1642 = vadd.f32 %v1602, %v1641
        %v1643 = vpop.f32.mrf.mxu0
        %1644 = vdwg.mxu0
        %v1645 = vadd.f32 %v1642, %v1502
        %v1646 = vld [vmem:[%s16] sm:$0x1]
        %v1647 = vld [vmem:[%s17] sm:$0x1]
        %v1648 = vsel %vm680, %v1645, 0.0
        %1649 = vadd.xlane.f32.xlu0 %v1648
        %v1650 = vpop.xlane.xlu0 %1649
        %v1651 = vmul.f32 %v1650, %v1459
        %v1652 = vsub.f32 %v1645, %v1651
        %v1653 = vmul.f32 %v1652, %v1652
        %v1654 = vsel %vm680, %v1653, 0.0
        %1655 = vadd.xlane.f32.xlu0 %v1654
        %v1656 = vpop.xlane.xlu0 %1655
        %v1657 = vmul.f32 %v1656, %v1459
        %v1658 = vadd.f32 %v1657, 1e-12
        %v1659 = vrsqrt.pop %v1658
        %v1660 = vmul.f32 %v1659, %v1658
        %v1661 = vmul.f32 %v1660, %v1659
        %v1662 = vmul.f32 0.5, %v1661
        %v1663 = vsub.f32 1.5, %v1662
        %v1664 = vmul.f32 %v1659, %v1663
        %v1665 = vmul.f32 %v1658, %v1664
        %vm1666 = vcmp.eq.f32.partialorder %v1658, inf
        %v1667 = vsel %vm1666, %v1658, %v1665
        %vm1668 = vcmp.eq.f32.partialorder %v1658, 0.0
        %v1669 = vand.u32 %v1658, 2147483648
        %v1670 = vsel %vm1668, %v1669, %v1667
        %v1671 = vrcp.pop %v1670
        %v1672 = vmul.f32 %v1670, %v1671
        %v1673 = vsub.f32 1.0, %v1672
        %v1674 = vmul.f32 %v1671, %v1673
        %v1675 = vadd.f32 %v1671, %v1674
        %vm1676 = vweird.f32 %v1670
        %vm1677 = vweird.f32 %v1671
        %vm1678 = vmor %vm1676, %vm1677
        %v1679 = vsel %vm1678, %v1671, %v1675
        %v1680 = vand.u32 2147483647, %v1670
        %vm1681 = vcmp.eq.f32.partialorder %v1680, 8.507059e+37
        %v1682 = vand.u32 %v1670, 2147483648
        %v1683 = vor.u32 1.1754944e-38, %v1682
        %v1684 = vsel %vm1681, %v1683, %v1679
        %v1685 = vmul.f32 %v1652, %v1684
        %v1687 = vperm.slane %v1646, 0
        %v1689 = vmul.f32 %v1687, %v1685
        %v1691 = vperm.slane %v1647, 0
        %v1693 = vadd.f32 %v1689, %v1691
        %1694 = vst.msk [vmem:[%s651] sm:$0xff] %vm680, %v1693
        %s1695 = sand.u32 %s433, 1
        %s1696 = scalar_lea.sflag [#allocation6], %s1695
        %s1697 = sand.u32 %s433, 1
        %s1698 = smul.addr %s1697, 8
        %s1699 = scalar_lea.vmem [#allocation12], %s1698
        // Predicated region
        $region109: #{tpu_custom_call.1} parent=91 // pred_check
          %p1700 = pneg %p443
        $region110: #{tpu_custom_call.1} parent=91 // pred_check_branch
          %1702 = sbr.rel (%p1700) target = $region112
        $region111: #{tpu_custom_call.1} parent=91 // pred_region
          %1704 = vsyncadd %s1696, 0
          %s1705 = smul.addr %s37, 8
          %s1706 = scalar_lea.hbm %s18, %s1705
          %s1708 = sshll.u32 %s1699, 4
          %s1709 = int_to_ptr.vmem [resolvable:$true] %s1708
          %s1710 = sshll.u32 %s1706, 4
          %s1711 = int_to_ptr.hbm [resolvable:$true] %s1710
          %1713 = dma.vmem_to_hbm [thread:$0]  %s1709, 128, %s1711, %s1696
        $region112: #{tpu_custom_call.1} parent=91 // pred_fallthru
          _
      $region92: #{tpu_custom_call.1} parent=5 // pred_fallthru
        _
      %p1714 = scmp.le.s32.totalorder 2, %s32
      // Predicated region
      $region113: #{tpu_custom_call.1} parent=5 // pred_check
        %p1715 = pneg %p1714
      $region114: #{tpu_custom_call.1} parent=5 // pred_check_branch
        %1717 = sbr.rel (%p1715) target = $region116
      $region115: #{tpu_custom_call.1} parent=5 // pred_region
        %s1718 = ssub.s32 %s32, 2
        // Predicated region
        $region117: #{tpu_custom_call.1} parent=115 // pred_check
          %p1719 = pneg %p449
        $region118: #{tpu_custom_call.1} parent=115 // pred_check_branch
          %1721 = sbr.rel (%p1719) target = $region120
        $region119: #{tpu_custom_call.1} parent=115 // pred_region
          %s1722 = sand.u32 %s434, 1
          %s1723 = scalar_lea.sflag [#allocation6], %s1722
          %s1724 = sand.u32 %s434, 1
          %s1725 = smul.addr %s1724, 8
          %s1726 = scalar_lea.vmem [#allocation12], %s1725
          %1728 = dma.done %s1723, 128
        $region120: #{tpu_custom_call.1} parent=115 // pred_fallthru
          _
      $region116: #{tpu_custom_call.1} parent=5 // pred_fallthru
        _
    $region6: #{tpu_custom_call.1} parent=1 // loop_footer
      %s36 = sadd.s32 1, %s32
    $region7: #{tpu_custom_call.1} parent=1 // loop_footer_branch
      %31 = sbr.rel target = $region3
    $region8: #{tpu_custom_call.1} parent=1 // loop_exit
      _
    %1729 = vsyncpa [#allocation5], 1
    %s1730 = scalar_lea.sflag [#allocation5], 1
    %1731 = vsyncpa %s1730, 1
    %1732 = vsyncpa [#allocation8], 1
    %1733 = vsyncpa [#allocation11], 1
    %1734 = vsyncpa [#allocation6], 1
    %s1735 = scalar_lea.sflag [#allocation6], 1
    %1736 = vsyncpa %s1735, 1

</llo_original>
